<compile_context>
chip_gen: v6e
topology: v6e:2x2x1
jax: 0.10.0
libtpu: 0.0.40
codegen_flags: <defaults>
</compile_context>

<pallas_src>
import functools

import jax
import jax.numpy as jnp
from jax.experimental import pallas as pl
from jax.experimental.pallas import tpu as pltpu


# ----------------------------- small helpers --------------------------------

def _round_up(x, m):
    return ((x + m - 1) // m) * m


def _fit_tile(pref, dim):
    """Largest tile <= pref that divides dim."""
    t = min(pref, dim)
    while t > 1 and dim % t:
        t //= 2
    return max(t, 1)


def _pad2d(x, rows, cols):
    r, c = x.shape
    return jnp.pad(x, ((0, rows - r), (0, cols - c)))


def _hw_config():
    """Generation-specific VMEM budgets. Tiles stay large on every generation."""
    vmem_cap = 128 << 20
    try:
        info = pltpu.get_tpu_info()
        vmem_cap = int(getattr(info, "vmem_capacity_bytes", vmem_cap) or vmem_cap)
    except Exception:
        pass
    if vmem_cap <= (64 << 20):   # v7x-class core: 64 MiB VMEM, 2 TC/chip
        return dict(tm=1024, tk=1024, vmem_limit=48 << 20, fuse_a_bytes=24 << 20)
    # v5e / v6e: 128 MiB VMEM
    return dict(tm=1024, tk=1024, vmem_limit=96 << 20, fuse_a_bytes=48 << 20)


# ----------------------------- Pallas kernels -------------------------------

def _edge_mlp_kernel(ea_ref, w1_ref, b1_ref, w2_ref, b2_ref, out_ref):
    # Linear(edge_dim -> hidden) + ReLU on the MXU ...
    h = jnp.dot(ea_ref[...], w1_ref[...], preferred_element_type=jnp.float32)
    h = jnp.maximum(h + b1_ref[...], 0.0)
    # ... hidden -> 1 projection as VPU multiply + lane reduction (avoids a
    # 1-wide MXU matmul that would waste 127/128 lanes).
    out_ref[...] = jnp.sum(h * w2_ref[...], axis=-1, keepdims=True) + b2_ref[...]


def edge_mlp(edge_attr_p, w1_p, b1_p, w2_row_p, b2, *, te, vmem_limit):
    Ep, EDp = edge_attr_p.shape
    Hp = w1_p.shape[1]
    return pl.pallas_call(
        _edge_mlp_kernel,
        out_shape=jax.ShapeDtypeStruct((Ep, 1), jnp.float32),
        grid_spec=pltpu.PrefetchScalarGridSpec(
            num_scalar_prefetch=0,
            grid=(Ep // te,),
            in_specs=[
                pl.BlockSpec((te, EDp), lambda e: (e, 0)),
                pl.BlockSpec((EDp, Hp), lambda e: (0, 0)),
                pl.BlockSpec((1, Hp), lambda e: (0, 0)),
                pl.BlockSpec((1, Hp), lambda e: (0, 0)),
                pl.BlockSpec((1, 1), lambda e: (0, 0)),
            ],
            out_specs=pl.BlockSpec((te, 1), lambda e: (e, 0)),
        ),
        compiler_params=pltpu.CompilerParams(
            dimension_semantics=("parallel",),
            vmem_limit_bytes=vmem_limit,
        ),
    )(edge_attr_p, w1_p, b1_p, w2_row_p, b2)


def _matmul_bias_kernel(a_ref, b_ref, bias_ref, o_ref, acc_ref, *, relu):
    # Generic tiled matmul: f32 accumulator scratch, init/finalize on K axis.
    @pl.when(pl.program_id(2) == 0)
    def _init():
        acc_ref[...] = jnp.zeros_like(acc_ref)

    acc_ref[...] += jnp.dot(a_ref[...], b_ref[...],
                            preferred_element_type=jnp.float32)

    @pl.when(pl.program_id(2) == pl.num_programs(2) - 1)
    def _fini():
        r = acc_ref[...] + bias_ref[...]
        if relu:
            r = jnp.maximum(r, 0.0)
        o_ref[...] = r.astype(o_ref.dtype)


def matmul_bias(a, b, bias, *, tm, tn, tk, relu=False,
                out_dtype=jnp.float32, vmem_limit=64 << 20):
    M, K = a.shape
    _, N = b.shape
    grid = (M // tm, N // tn, K // tk)
    flops = 2 * M * N * K
    bytes_accessed = (M * K * a.dtype.itemsize + K * N * b.dtype.itemsize
                      + M * N * jnp.dtype(out_dtype).itemsize)
    return pl.pallas_call(
        functools.partial(_matmul_bias_kernel, relu=relu),
        out_shape=jax.ShapeDtypeStruct((M, N), out_dtype),
        grid_spec=pltpu.PrefetchScalarGridSpec(
            num_scalar_prefetch=0,
            grid=grid,
            in_specs=[
                pl.BlockSpec((tm, tk), lambda i, j, k: (i, k)),
                pl.BlockSpec((tk, tn), lambda i, j, k: (k, j)),
                pl.BlockSpec((1, tn), lambda i, j, k: (0, j)),
            ],
            out_specs=pl.BlockSpec((tm, tn), lambda i, j, k: (i, j)),
            scratch_shapes=[pltpu.VMEM((tm, tn), jnp.float32)],
        ),
        compiler_params=pltpu.CompilerParams(
            dimension_semantics=("parallel", "parallel", "arbitrary"),
            vmem_limit_bytes=vmem_limit,
        ),
        cost_estimate=pl.CostEstimate(flops=flops, transcendentals=0,
                                      bytes_accessed=bytes_accessed),
    )(a, b, bias)


def _agg_resident_kernel(a_ref, xw_ref, bias_ref, o_ref, acc_ref, *, tk, relu):
    # Aggregation matmul relu(A @ XW + b) with XW resident in VMEM:
    # xw_ref is the full (Np, Hp) array (constant block index -> DMA'd once);
    # only the A row/col tiles stream from HBM.
    k = pl.program_id(1)

    @pl.when(k == 0)
    def _init():
        acc_ref[...] = jnp.zeros_like(acc_ref)

    k0 = pl.multiple_of(k * tk, tk)
    acc_ref[...] += jnp.dot(a_ref[...], xw_ref[pl.ds(k0, tk), :],
                            preferred_element_type=jnp.float32)

    @pl.when(k == pl.num_programs(1) - 1)
    def _fini():
        r = acc_ref[...] + bias_ref[...]
        if relu:
            r = jnp.maximum(r, 0.0)
        o_ref[...] = r.astype(o_ref.dtype)


def agg_resident(a, xw, bias, *, tm, tk, relu=True,
                 out_dtype=jnp.float32, vmem_limit=64 << 20):
    M, K = a.shape
    Kx, N = xw.shape
    grid = (M // tm, K // tk)
    flops = 2 * M * N * K
    bytes_accessed = (M * K * a.dtype.itemsize + Kx * N * xw.dtype.itemsize
                      + M * N * jnp.dtype(out_dtype).itemsize)
    return pl.pallas_call(
        functools.partial(_agg_resident_kernel, tk=tk, relu=relu),
        out_shape=jax.ShapeDtypeStruct((M, N), out_dtype),
        grid_spec=pltpu.PrefetchScalarGridSpec(
            num_scalar_prefetch=0,
            grid=grid,
            in_specs=[
                pl.BlockSpec((tm, tk), lambda i, k: (i, k)),
                pl.BlockSpec((Kx, N), lambda i, k: (0, 0)),   # resident, DMA'd once
                pl.BlockSpec((1, N), lambda i, k: (0, 0)),
            ],
            out_specs=pl.BlockSpec((tm, N), lambda i, k: (i, 0)),
            scratch_shapes=[pltpu.VMEM((tm, N), jnp.float32)],
        ),
        compiler_params=pltpu.CompilerParams(
            dimension_semantics=("parallel", "arbitrary"),
            vmem_limit_bytes=vmem_limit,
        ),
        cost_estimate=pl.CostEstimate(flops=flops, transcendentals=0,
                                      bytes_accessed=bytes_accessed),
    )(a, xw, bias)


def _pool_regress_kernel(p_ref, h_ref, wr_ref, br_ref, o_ref, acc_ref):
    # global_mean_pool as tiled P @ H (K reduction) fused with the regressor.
    @pl.when(pl.program_id(0) == 0)
    def _init():
        acc_ref[...] = jnp.zeros_like(acc_ref)

    acc_ref[...] += jnp.dot(p_ref[...], h_ref[...],
                            preferred_element_type=jnp.float32)

    @pl.when(pl.program_id(0) == pl.num_programs(0) - 1)
    def _fini():
        # hidden -> 1 regressor as VPU multiply + lane reduce.
        o_ref[...] = (jnp.sum(acc_ref[...] * wr_ref[...], axis=-1, keepdims=True)
                      + br_ref[...])


def pool_regress(p, h, wr_row, br, *, tk, vmem_limit):
    Gp, Np = p.shape
    _, Hp = h.shape
    return pl.pallas_call(
        _pool_regress_kernel,
        out_shape=jax.ShapeDtypeStruct((Gp, 1), jnp.float32),
        grid_spec=pltpu.PrefetchScalarGridSpec(
            num_scalar_prefetch=0,
            grid=(Np // tk,),
            in_specs=[
                pl.BlockSpec((Gp, tk), lambda k: (0, k)),
                pl.BlockSpec((tk, Hp), lambda k: (k, 0)),
                pl.BlockSpec((1, Hp), lambda k: (0, 0)),
                pl.BlockSpec((1, 1), lambda k: (0, 0)),
            ],
            out_specs=pl.BlockSpec((Gp, 1), lambda k: (0, 0)),
            scratch_shapes=[pltpu.VMEM((Gp, Hp), jnp.float32)],
        ),
        compiler_params=pltpu.CompilerParams(
            dimension_semantics=("arbitrary",),
            vmem_limit_bytes=vmem_limit,
        ),
    )(p, h, wr_row, br)


def _fused_gcn_kernel(a_hbm, x_ref, w1_ref, b1_ref, w2_ref, b2_ref,
                      w3_ref, b3_ref, p_ref, wr_ref, br_ref, out_ref,
                      a_vmem, h_vmem, h3_vmem, sems,
                      *, n_chunks, chunk_rows):
    # Small-graph path: A_norm is DMA'd from HBM ONCE into a resident VMEM
    # scratch, in row-chunks so that the DMA of chunk c+1.. overlaps the
    # layer-1 MXU work on chunk c; layers 2 and 3 reuse the resident copy.
    cdt = a_vmem.dtype

    def a_copy(c):
        r0 = pl.multiple_of(c * chunk_rows, chunk_rows)
        return pltpu.make_async_copy(a_hbm.at[pl.ds(r0, chunk_rows)],
                                     a_vmem.at[pl.ds(r0, chunk_rows)],
                                     sems.at[c])

    # Kick off every row-chunk DMA of A up front.
    @pl.loop(0, n_chunks)
    def _start(c):
        a_copy(c).start()

    # Layer-1 XW overlaps with the A DMA.
    xw1 = jnp.dot(x_ref[...], w1_ref[...],
                  preferred_element_type=jnp.float32).astype(cdt)

    # Layer 1 aggregation: consume A chunks as they land.
    @pl.loop(0, n_chunks)
    def _layer1(c):
        r0 = pl.multiple_of(c * chunk_rows, chunk_rows)
        a_copy(c).wait()
        agg = jnp.dot(a_vmem[pl.ds(r0, chunk_rows), :], xw1,
                      preferred_element_type=jnp.float32)
        h_vmem[pl.ds(r0, chunk_rows), :] = jnp.maximum(
            agg + b1_ref[...], 0.0).astype(cdt)

    # Layer 2 (A fully resident; chunked so A is never loaded as one big value).
    xw2 = jnp.dot(h_vmem[...], w2_ref[...],
                  preferred_element_type=jnp.float32).astype(cdt)

    @pl.loop(0, n_chunks)
    def _layer2(c):
        r0 = pl.multiple_of(c * chunk_rows, chunk_rows)
        agg = jnp.dot(a_vmem[pl.ds(r0, chunk_rows), :], xw2,
                      preferred_element_type=jnp.float32)
        h_vmem[pl.ds(r0, chunk_rows), :] = jnp.maximum(
            agg + b2_ref[...], 0.0).astype(cdt)

    # Layer 3 (kept in f32 for the pooling that follows).
    xw3 = jnp.dot(h_vmem[...], w3_ref[...],
                  preferred_element_type=jnp.float32).astype(cdt)

    @pl.loop(0, n_chunks)
    def _layer3(c):
        r0 = pl.multiple_of(c * chunk_rows, chunk_rows)
        agg = jnp.dot(a_vmem[pl.ds(r0, chunk_rows), :], xw3,
                      preferred_element_type=jnp.float32)
        h3_vmem[pl.ds(r0, chunk_rows), :] = jnp.maximum(agg + b3_ref[...], 0.0)

    # Mean-pool + regressor (hidden -> 1 as VPU multiply + lane reduce).
    pooled = jnp.dot(p_ref[...], h3_vmem[...], preferred_element_type=jnp.float32)
    out_ref[...] = (jnp.sum(pooled * wr_ref[...], axis=-1, keepdims=True)
                    + br_ref[...])


def fused_gcn(a, x, w1, b1, w2, b2, w3, b3, p, wr_row, br, *,
              chunk_rows, vmem_limit):
    Np = a.shape[0]
    Hp = w1.shape[1]
    Gp = p.shape[0]
    n_chunks = Np // chunk_rows
    vmem = pltpu.MemorySpace.VMEM
    return pl.pallas_call(
        functools.partial(_fused_gcn_kernel,
                          n_chunks=n_chunks, chunk_rows=chunk_rows),
        out_shape=jax.ShapeDtypeStruct((Gp, 1), jnp.float32),
        in_specs=[pl.BlockSpec(memory_space=pl.ANY)]          # A stays in HBM
                 + [pl.BlockSpec(memory_space=vmem) for _ in range(10)],
        out_specs=pl.BlockSpec(memory_space=vmem),
        scratch_shapes=[
            pltpu.VMEM((Np, Np), a.dtype),        # resident A
            pltpu.VMEM((Np, Hp), a.dtype),        # h scratch (reused layer 1/2)
            pltpu.VMEM((Np, Hp), jnp.float32),    # layer-3 output (f32)
            pltpu.SemaphoreType.DMA((n_chunks,)),
        ],
        compiler_params=pltpu.CompilerParams(vmem_limit_bytes=vmem_limit),
    )(a, x, w1, b1, w2, b2, w3, b3, p, wr_row, br)


# ------------------------------- JAX glue ------------------------------------
# Data-dependent scatters (self-loops, symmetric GCN normalization, pooling
# assignment) are built in plain JAX and handed to the kernels as dense mats.

def build_norm_adj(edge_index, edge_weight, num_nodes):
    # TODO(synk): build A_norm directly in the MXU dtype and/or switch to a
    # CSR/scalar-prefetch SpMM for graphs where the dense O(N^2) adjacency is
    # the scalability wall.
    src = edge_index[0]
    dst = edge_index[1]
    loop = jnp.arange(num_nodes, dtype=edge_index.dtype)
    src_f = jnp.concatenate([src, loop])
    dst_f = jnp.concatenate([dst, loop])
    ew_f = jnp.concatenate([edge_weight, jnp.ones((num_nodes,), jnp.float32)])
    deg = jnp.zeros((num_nodes,), jnp.float32).at[dst_f].add(ew_f)
    dinv = jnp.where(deg > 0, jax.lax.rsqrt(deg), 0.0)
    norm = dinv[src_f] * ew_f * dinv[dst_f]
    # row = destination (aggregation target), col = source (message origin)
    return jnp.zeros((num_nodes, num_nodes), jnp.float32).at[dst_f, src_f].add(norm)


def build_pool_matrix(batch, num_graphs, num_nodes):
    onehot = (jnp.arange(num_graphs)[:, None] == batch[None, :]).astype(jnp.float32)
    counts = jnp.maximum(onehot.sum(axis=1, keepdims=True), 1.0)
    return onehot / counts  # [G, N], rows sum to 1 -> mean pool


def init_params(key, node_dim, edge_dim, hidden, out_channels=1):
    ks = jax.random.split(key, 12)

    def lin(kw, fan_in, fan_out):
        scale = 1.0 / jnp.sqrt(jnp.float32(fan_in))
        return jax.random.normal(kw, (fan_in, fan_out), jnp.float32) * scale

    return {
        "conv1_w": lin(ks[0], node_dim, hidden),
        "conv1_b": jnp.zeros((1, hidden), jnp.float32),
        "conv2_w": lin(ks[1], hidden, hidden),
        "conv2_b": jnp.zeros((1, hidden), jnp.float32),
        "conv3_w": lin(ks[2], hidden, hidden),
        "conv3_b": jnp.zeros((1, hidden), jnp.float32),
        "emlp_w1": lin(ks[3], edge_dim, hidden),
        "emlp_b1": jax.random.normal(ks[4], (1, hidden), jnp.float32) * 0.01,
        "emlp_w2": lin(ks[5], hidden, 1),
        "emlp_b2": jax.random.normal(ks[6], (1, 1), jnp.float32) * 0.01,
        "reg_w": lin(ks[7], hidden, out_channels),
        "reg_b": jnp.zeros((1, out_channels), jnp.float32),
    }


def gcn_model_forward(params, x, edge_index, edge_attr, batch, num_graphs,
                      *, use_bf16=True, force_tiled=False):
    cfg = _hw_config()
    vmem_limit = cfg["vmem_limit"]

    n_nodes, node_dim = x.shape
    n_edges, edge_dim = edge_attr.shape
    hidden = params["conv1_w"].shape[1]

    # Lane-dense padding.  Node axis is padded to a multiple of 512 so the
    # 512/1024 tiles divide it exactly.  Invariant: padded COLUMNS of A and P
    # are zero, so padded rows (which evaluate to relu(bias)) never reach real
    # outputs.
    Hp = _round_up(hidden, 128)
    Fp = _round_up(node_dim, 128)
    EDp = _round_up(edge_dim, 8)          # don't inflate the edge-MLP K to 128
    Np = _round_up(n_nodes, 512)
    Gp = _round_up(num_graphs, 8)
    Ep = _round_up(n_edges, 128)

    mxu_dtype = jnp.bfloat16 if use_bf16 else jnp.float32

    # ---- edge MLP (Pallas, tiled over edges) --------------------------------
    ea_p = _pad2d(edge_attr, Ep, EDp).astype(mxu_dtype)
    ew1 = _pad2d(params["emlp_w1"], EDp, Hp).astype(mxu_dtype)
    eb1 = _pad2d(params["emlp_b1"], 1, Hp)
    ew2_row = _pad2d(params["emlp_w2"].T, 1, Hp)           # (1, Hp)
    eb2 = params["emlp_b2"]                                # (1, 1)
    te = _fit_tile(1024, Ep)
    edge_weight = edge_mlp(ea_p, ew1, eb1, ew2_row, eb2,
                           te=te, vmem_limit=vmem_limit)[:n_edges, 0]

    # ---- graph structure (plain-JAX scatters) -------------------------------
    a = build_norm_adj(edge_index, edge_weight, n_nodes)
    a_p = _pad2d(a, Np, Np).astype(mxu_dtype)
    p_mat = _pad2d(build_pool_matrix(batch, num_graphs, n_nodes), Gp, Np)

    # ---- padded parameters / features (bf16 MXU inputs, f32 accumulation) ----
    x_p = _pad2d(x, Np, Fp).astype(mxu_dtype)
    w1 = _pad2d(params["conv1_w"], Fp, Hp).astype(mxu_dtype)
    w2 = _pad2d(params["conv2_w"], Hp, Hp).astype(mxu_dtype)
    w3 = _pad2d(params["conv3_w"], Hp, Hp).astype(mxu_dtype)
    b1 = _pad2d(params["conv1_b"], 1, Hp)
    b2 = _pad2d(params["conv2_b"], 1, Hp)
    b3 = _pad2d(params["conv3_b"], 1, Hp)
    wr_row = _pad2d(params["reg_w"].T, 1, Hp)              # (1, Hp)
    br = params["reg_b"]                                   # (1, 1)

    a_bytes = Np * Np * jnp.dtype(mxu_dtype).itemsize
    if (not force_tiled) and a_bytes <= cfg["fuse_a_bytes"]:
        # Small graph: fuse 3 GCN layers + pool + regress; A is DMA'd from HBM
        # once, chunk-wise, overlapping layer-1 compute.
        out_p = fused_gcn(a_p, x_p, w1, b1, w2, b2, w3, b3,
                          p_mat, wr_row, br,
                          chunk_rows=128, vmem_limit=vmem_limit)
    else:
        # Large graph: tiled, pipelined per-layer path (megacore-parallel).
        tm = _fit_tile(cfg["tm"], Np)
        tk = _fit_tile(cfg["tk"], Np)
        zero_bias = jnp.zeros((1, Hp), jnp.float32)
        # Keep XW resident in VMEM during the aggregation unless it is too big
        # (double-buffered footprint kept well inside the scoped limit).
        xw_resident = (2 * Np * Hp * jnp.dtype(mxu_dtype).itemsize) <= vmem_limit // 4

        def gcn_layer(h, w, b, out_dtype):
            # XW = h @ W (row-tiled), then relu(A @ XW + b) (tiled K reduction).
            xw = matmul_bias(h, w, zero_bias, tm=tm, tn=Hp, tk=h.shape[1],
                             relu=False, out_dtype=mxu_dtype,
                             vmem_limit=vmem_limit)
            if xw_resident:
                return agg_resident(a_p, xw, b, tm=tm, tk=tk, relu=True,
                                    out_dtype=out_dtype, vmem_limit=vmem_limit)
            return matmul_bias(a_p, xw, b, tm=tm, tn=Hp, tk=tk,
                               relu=True, out_dtype=out_dtype,
                               vmem_limit=vmem_limit)

        h = gcn_layer(x_p, w1, b1, mxu_dtype)
        h = gcn_layer(h, w2, b2, mxu_dtype)
        h = gcn_layer(h, w3, b3, jnp.float32)
        out_p = pool_regress(p_mat, h, wr_row, br, tk=tk, vmem_limit=vmem_limit)

    return jnp.squeeze(out_p[:num_graphs, :1])  # matches torch .squeeze()


def gcn_model_forward_ref(params, x, edge_index, edge_attr, batch, num_graphs):
    """Pure-JAX f32 reference for correctness checking."""
    h = jnp.maximum(edge_attr @ params["emlp_w1"] + params["emlp_b1"], 0.0)
    edge_weight = (h @ params["emlp_w2"] + params["emlp_b2"])[:, 0]
    a = build_norm_adj(edge_index, edge_weight, x.shape[0])

    def layer(hh, w, b):
        return jnp.maximum(a @ (hh @ w) + b, 0.0)

    hh = layer(x, params["conv1_w"], params["conv1_b"])
    hh = layer(hh, params["conv2_w"], params["conv2_b"])
    hh = layer(hh, params["conv3_w"], params["conv3_b"])
    p = build_pool_matrix(batch, num_graphs, x.shape[0])
    return jnp.squeeze(p @ hh @ params["reg_w"] + params["reg_b"])


# --------------------------------- main --------------------------------------

if __name__ == "__main__":
    NODE_DIM = 8
    EDGE_DIM = 4
    HIDDEN = 32
    N_NODES = 16
    N_EDGES = 32
    N_GRAPHS = 2

    key = jax.random.PRNGKey(0)
    k_param, k_x, k_src, k_dst, k_ea = jax.random.split(key, 5)

    params = init_params(k_param, NODE_DIM, EDGE_DIM, HIDDEN)

    x = jax.random.normal(k_x, (N_NODES, NODE_DIM), jnp.float32)
    src = jax.random.randint(k_src, (N_EDGES,), 0, N_NODES, jnp.int32)
    dst = jax.random.randint(k_dst, (N_EDGES,), 0, N_NODES, jnp.int32)
    edge_index = jnp.stack([src, dst], axis=0)
    edge_attr = jax.random.normal(k_ea, (N_EDGES, EDGE_DIM), jnp.float32)
    batch = jnp.concatenate(
        [jnp.zeros((N_NODES // 2,), jnp.int32),
         jnp.ones((N_NODES // 2,), jnp.int32)]
    )

    fwd = jax.jit(gcn_model_forward,
                  static_argnames=("num_graphs", "use_bf16", "force_tiled"))

    # Fused (A-resident, chunk-overlapped DMA) path — automatic for small graphs.
    out_fused = fwd(params, x, edge_index, edge_attr, batch,
                    num_graphs=N_GRAPHS)
    # Tiled per-layer path (resident-XW aggregation) — exercised explicitly.
    out_tiled = fwd(params, x, edge_index, edge_attr, batch,
                    num_graphs=N_GRAPHS, force_tiled=True)
    jax.block_until_ready((out_fused, out_tiled))

    ref = gcn_model_forward_ref(params, x, edge_index, edge_attr, batch, N_GRAPHS)

    assert out_fused.shape == (N_GRAPHS,)
    assert out_tiled.shape == (N_GRAPHS,)
    assert bool(jnp.all(jnp.isfinite(out_fused)))
    assert bool(jnp.allclose(out_fused, out_tiled, rtol=5e-2, atol=5e-2)), (
        out_fused, out_tiled)
    assert bool(jnp.allclose(out_fused, ref, rtol=2e-1, atol=2e-1)), (
        out_fused, ref)
    print("KERNEL_OK")
</pallas_src>

<mosaic_0001>
module attributes {stable_mosaic.version = 11 : i64} {
  func.func private @main(%arg0: i32) attributes {dimension_semantics = [#tpu.dimension_semantics<core_parallel>], iteration_bounds = array<i64: 2>, tpu.core_type = #tpu.core_type<sc_scalar_subcore>, window_params = []} {
    return
  }
}

module attributes {stable_mosaic.version = 11 : i64} {
  func.func private @main(%arg0: i32) attributes {dimension_semantics = [#tpu.dimension_semantics<core_parallel>], iteration_bounds = array<i64: 2>, tpu.core_type = #tpu.core_type<sc_scalar_subcore>, window_params = []} {
    return
  }
}

module attributes {stable_mosaic.version = 11 : i64} {
  func.func @_edge_mlp_kernel(%arg0: i32, %arg1: memref<128x8xbf16, #tpu.memory_space<vmem>>, %arg2: memref<8x128xbf16, #tpu.memory_space<vmem>>, %arg3: memref<1x128xf32, #tpu.memory_space<vmem>>, %arg4: memref<1x128xf32, #tpu.memory_space<vmem>>, %arg5: memref<1x1xf32, #tpu.memory_space<vmem>>, %arg6: memref<128x1xf32, #tpu.memory_space<vmem>>) attributes {dimension_semantics = [#tpu.dimension_semantics<parallel>], iteration_bounds = array<i64: 1>, scalar_prefetch = 0 : i64, scratch_operands = 0 : i64, tpu.core_type = #tpu.core_type<tc>, window_params = [{transform_indices = @transform_0, window_bounds = array<i64: 128, 8>}, {pipeline_mode = #tpu.pipeline_mode<synchronous>, transform_indices = @transform_1, window_bounds = array<i64: 8, 128>}, {pipeline_mode = #tpu.pipeline_mode<synchronous>, transform_indices = @transform_2, window_bounds = array<i64: 1, 128>}, {pipeline_mode = #tpu.pipeline_mode<synchronous>, transform_indices = @transform_3, window_bounds = array<i64: 1, 128>}, {pipeline_mode = #tpu.pipeline_mode<synchronous>, transform_indices = @transform_4, window_bounds = array<i64: 1, 1>}, {transform_indices = @transform_5, window_bounds = array<i64: 128, 1>}]} {
    %c0 = arith.constant 0 : index
    %c0_0 = arith.constant 0 : index
    %0 = vector.load %arg1[%c0, %c0_0] : memref<128x8xbf16, #tpu.memory_space<vmem>>, vector<128x8xbf16>
    %c0_1 = arith.constant 0 : index
    %c0_2 = arith.constant 0 : index
    %1 = vector.load %arg2[%c0_1, %c0_2] : memref<8x128xbf16, #tpu.memory_space<vmem>>, vector<8x128xbf16>
    %cst = arith.constant dense<0.000000e+00> : vector<128x128xf32>
    %2 = tpu.matmul %0, %1, %cst {dimension_numbers = #tpu.dot_dimension_numbers<[1], [0], [0], [1], [0, 0, 1, 1], [], []>} : vector<128x8xbf16>, vector<8x128xbf16>, vector<128x128xf32> -> vector<128x128xf32>
    %c0_3 = arith.constant 0 : index
    %c0_4 = arith.constant 0 : index
    %3 = vector.load %arg3[%c0_3, %c0_4] : memref<1x128xf32, #tpu.memory_space<vmem>>, vector<1x128xf32>
    %4 = vector.broadcast %3 : vector<1x128xf32> to vector<128x128xf32>
    %5 = arith.addf %2, %4 : vector<128x128xf32>
    %cst_5 = arith.constant 0.000000e+00 : f32
    %6 = vector.broadcast %cst_5 : f32 to vector<128x128xf32>
    %7 = arith.maximumf %5, %6 : vector<128x128xf32>
    %c0_6 = arith.constant 0 : index
    %c0_7 = arith.constant 0 : index
    %8 = vector.load %arg4[%c0_6, %c0_7] : memref<1x128xf32, #tpu.memory_space<vmem>>, vector<1x128xf32>
    %9 = vector.broadcast %8 : vector<1x128xf32> to vector<128x128xf32>
    %10 = arith.mulf %7, %9 : vector<128x128xf32>
    %cst_8 = arith.constant dense<0.000000e+00> : vector<128xf32>
    %11 = vector.multi_reduction <add>, %10, %cst_8 [1] : vector<128x128xf32> to vector<128xf32>
    %12 = vector.shape_cast %11 : vector<128xf32> to vector<128x1xf32>
    %c0_9 = arith.constant 0 : index
    %c0_10 = arith.constant 0 : index
    %13 = vector.load %arg5[%c0_9, %c0_10] : memref<1x1xf32, #tpu.memory_space<vmem>>, vector<1x1xf32>
    %14 = vector.broadcast %13 : vector<1x1xf32> to vector<128x1xf32>
    %15 = arith.addf %12, %14 : vector<128x1xf32>
    %c0_11 = arith.constant 0 : index
    %c0_12 = arith.constant 0 : index
    %16 = vector.load %arg6[%c0_11, %c0_12] : memref<128x1xf32, #tpu.memory_space<vmem>>, vector<128x1xf32>
    tpu.vector_store %arg6[%c0_11, %c0_12], %15 {strides = array<i32>} : memref<128x1xf32, #tpu.memory_space<vmem>>, vector<128x1xf32>,
    return
  }
  func.func @transform_0(%arg0: i32) -> (i32, i32) {
    %c0_i32 = arith.constant 0 : i32
    %c0_i32_0 = arith.constant 0 : i32
    return %arg0, %c0_i32 : i32, i32
  }
  func.func @transform_1(%arg0: i32) -> (i32, i32) {
    %c0_i32 = arith.constant 0 : i32
    %c0_i32_0 = arith.constant 0 : i32
    %c0_i32_1 = arith.constant 0 : i32
    return %c0_i32, %c0_i32_0 : i32, i32
  }
  func.func @transform_2(%arg0: i32) -> (i32, i32) {
    %c0_i32 = arith.constant 0 : i32
    %c0_i32_0 = arith.constant 0 : i32
    %c0_i32_1 = arith.constant 0 : i32
    return %c0_i32, %c0_i32_0 : i32, i32
  }
  func.func @transform_3(%arg0: i32) -> (i32, i32) {
    %c0_i32 = arith.constant 0 : i32
    %c0_i32_0 = arith.constant 0 : i32
    %c0_i32_1 = arith.constant 0 : i32
    return %c0_i32, %c0_i32_0 : i32, i32
  }
  func.func @transform_4(%arg0: i32) -> (i32, i32) {
    %c0_i32 = arith.constant 0 : i32
    %c0_i32_0 = arith.constant 0 : i32
    %c0_i32_1 = arith.constant 0 : i32
    return %c0_i32, %c0_i32_0 : i32, i32
  }
  func.func @transform_5(%arg0: i32) -> (i32, i32) {
    %c0_i32 = arith.constant 0 : i32
    %c0_i32_0 = arith.constant 0 : i32
    return %arg0, %c0_i32 : i32, i32
  }
}

module attributes {stable_mosaic.version = 11 : i64} {
  func.func @_fused_gcn_kernel(%arg0: memref<512x512xbf16, #tpu.memory_space<any>>, %arg1: memref<512x128xbf16, #tpu.memory_space<vmem>>, %arg2: memref<128x128xbf16, #tpu.memory_space<vmem>>, %arg3: memref<1x128xf32, #tpu.memory_space<vmem>>, %arg4: memref<128x128xbf16, #tpu.memory_space<vmem>>, %arg5: memref<1x128xf32, #tpu.memory_space<vmem>>, %arg6: memref<128x128xbf16, #tpu.memory_space<vmem>>, %arg7: memref<1x128xf32, #tpu.memory_space<vmem>>, %arg8: memref<8x512xf32, #tpu.memory_space<vmem>>, %arg9: memref<1x128xf32, #tpu.memory_space<vmem>>, %arg10: memref<1x1xf32, #tpu.memory_space<vmem>>, %arg11: memref<8x1xf32, #tpu.memory_space<vmem>>, %arg12: memref<512x512xbf16, #tpu.memory_space<vmem>>, %arg13: memref<512x128xbf16, #tpu.memory_space<vmem>>, %arg14: memref<512x128xf32, #tpu.memory_space<vmem>>, %arg15: memref<4x!tpu.dma_semaphore, #tpu.memory_space<semaphore_mem>>) attributes {dimension_semantics = [], scalar_prefetch = 0 : i64, scratch_operands = 4 : i64, tpu.core_type = #tpu.core_type<tc>} {
    %c0_i32 = arith.constant 0 : i32
    %c4_i32 = arith.constant 4 : i32
    %0 = arith.addi %c0_i32, %c4_i32 : i32
    %c1_i32 = arith.constant 1 : i32
    scf.for %arg16 = %c0_i32 to %0 step %c1_i32  : i32 {
      %c1_i32_38 = arith.constant 1 : i32
      %28 = arith.muli %arg16, %c1_i32_38 : i32
      %c0_i32_39 = arith.constant 0 : i32
      %29 = arith.addi %c0_i32_39, %28 : i32
      %c128_i32 = arith.constant 128 : i32
      %30 = arith.muli %29, %c128_i32 : i32
      %31 = tpu.assume_multiple %30, 128 : i32
      %c0_i32_40 = arith.constant 0 : i32
      %32 = tpu.memref_slice %arg0[%31, %c0_i32_40] : memref<512x512xbf16, #tpu.memory_space<any>> -> memref<128x512xbf16, #tpu.memory_space<any>>
      %c0_i32_41 = arith.constant 0 : i32
      %33 = tpu.memref_slice %arg12[%31, %c0_i32_41] : memref<512x512xbf16, #tpu.memory_space<vmem>> -> memref<128x512xbf16, #tpu.memory_space<vmem>>
      %34 = tpu.memref_slice %arg15[%29] : memref<4x!tpu.dma_semaphore, #tpu.memory_space<semaphore_mem>> -> memref<1x!tpu.dma_semaphore, #tpu.memory_space<semaphore_mem>>
      %35 = tpu.memref_squeeze %34 : memref<1x!tpu.dma_semaphore, #tpu.memory_space<semaphore_mem>> -> memref<!tpu.dma_semaphore, #tpu.memory_space<semaphore_mem>>
      tpu.enqueue_dma source(%32 : memref<128x512xbf16, #tpu.memory_space<any>>) target(%33 : memref<128x512xbf16, #tpu.memory_space<vmem>>) target_semaphore(%35 : memref<!tpu.dma_semaphore, #tpu.memory_space<semaphore_mem>>)
    }
    %c4_i32_0 = arith.constant 4 : i32
    %c0 = arith.constant 0 : index
    %c0_1 = arith.constant 0 : index
    %1 = vector.load %arg1[%c0, %c0_1] : memref<512x128xbf16, #tpu.memory_space<vmem>>, vector<512x128xbf16>
    %c0_2 = arith.constant 0 : index
    %c0_3 = arith.constant 0 : index
    %2 = vector.load %arg2[%c0_2, %c0_3] : memref<128x128xbf16, #tpu.memory_space<vmem>>, vector<128x128xbf16>
    %cst = arith.constant dense<0.000000e+00> : vector<512x128xf32>
    %3 = tpu.matmul %1, %2, %cst {dimension_numbers = #tpu.dot_dimension_numbers<[1], [0], [0], [1], [0, 0, 1, 1], [], []>} : vector<512x128xbf16>, vector<128x128xbf16>, vector<512x128xf32> -> vector<512x128xf32>
    %4 = arith.truncf %3 : vector<512x128xf32> to vector<512x128xbf16>
    %c0_i32_4 = arith.constant 0 : i32
    %c4_i32_5 = arith.constant 4 : i32
    %5 = arith.addi %c0_i32_4, %c4_i32_5 : i32
    %c1_i32_6 = arith.constant 1 : i32
    scf.for %arg16 = %c0_i32_4 to %5 step %c1_i32_6  : i32 {
      %c1_i32_38 = arith.constant 1 : i32
      %28 = arith.muli %arg16, %c1_i32_38 : i32
      %c0_i32_39 = arith.constant 0 : i32
      %29 = arith.addi %c0_i32_39, %28 : i32
      %c128_i32 = arith.constant 128 : i32
      %30 = arith.muli %29, %c128_i32 : i32
      %31 = tpu.assume_multiple %30, 128 : i32
      %c128_i32_40 = arith.constant 128 : i32
      %32 = arith.muli %29, %c128_i32_40 : i32
      %33 = tpu.assume_multiple %32, 128 : i32
      %c0_i32_41 = arith.constant 0 : i32
      %34 = tpu.memref_slice %arg0[%33, %c0_i32_41] : memref<512x512xbf16, #tpu.memory_space<any>> -> memref<128x512xbf16, #tpu.memory_space<any>>
      %c0_i32_42 = arith.constant 0 : i32
      %35 = tpu.memref_slice %arg12[%33, %c0_i32_42] : memref<512x512xbf16, #tpu.memory_space<vmem>> -> memref<128x512xbf16, #tpu.memory_space<vmem>>
      %36 = tpu.memref_slice %arg15[%29] : memref<4x!tpu.dma_semaphore, #tpu.memory_space<semaphore_mem>> -> memref<1x!tpu.dma_semaphore, #tpu.memory_space<semaphore_mem>>
      %37 = tpu.memref_squeeze %36 : memref<1x!tpu.dma_semaphore, #tpu.memory_space<semaphore_mem>> -> memref<!tpu.dma_semaphore, #tpu.memory_space<semaphore_mem>>
      tpu.wait_dma2 semaphore(%37 : memref<!tpu.dma_semaphore, #tpu.memory_space<semaphore_mem>>) src(%34 : memref<128x512xbf16, #tpu.memory_space<any>>) dst(%35 : memref<128x512xbf16, #tpu.memory_space<vmem>>)
      %38 = arith.index_cast %31 : i32 to index
      %c0_43 = arith.constant 0 : index
      %39 = vector.load %arg12[%38, %c0_43] : memref<512x512xbf16, #tpu.memory_space<vmem>>, vector<128x512xbf16>
      %cst_44 = arith.constant dense<0.000000e+00> : vector<128x128xf32>
      %40 = tpu.matmul %39, %4, %cst_44 {dimension_numbers = #tpu.dot_dimension_numbers<[1], [0], [0], [1], [0, 0, 1, 1], [], []>} : vector<128x512xbf16>, vector<512x128xbf16>, vector<128x128xf32> -> vector<128x128xf32>
      %c0_45 = arith.constant 0 : index
      %c0_46 = arith.constant 0 : index
      %41 = vector.load %arg3[%c0_45, %c0_46] : memref<1x128xf32, #tpu.memory_space<vmem>>, vector<1x128xf32>
      %42 = vector.broadcast %41 : vector<1x128xf32> to vector<128x128xf32>
      %43 = arith.addf %40, %42 : vector<128x128xf32>
      %cst_47 = arith.constant 0.000000e+00 : f32
      %44 = vector.broadcast %cst_47 : f32 to vector<128x128xf32>
      %45 = arith.maximumf %43, %44 : vector<128x128xf32>
      %46 = arith.truncf %45 : vector<128x128xf32> to vector<128x128xbf16>
      %47 = arith.index_cast %31 : i32 to index
      %c0_48 = arith.constant 0 : index
      %48 = vector.load %arg13[%47, %c0_48] : memref<512x128xbf16, #tpu.memory_space<vmem>>, vector<128x128xbf16>
      tpu.vector_store %arg13[%47, %c0_48], %46 {strides = array<i32>} : memref<512x128xbf16, #tpu.memory_space<vmem>>, vector<128x128xbf16>,
    }
    %c4_i32_7 = arith.constant 4 : i32
    %c0_8 = arith.constant 0 : index
    %c0_9 = arith.constant 0 : index
    %6 = vector.load %arg13[%c0_8, %c0_9] : memref<512x128xbf16, #tpu.memory_space<vmem>>, vector<512x128xbf16>
    %c0_10 = arith.constant 0 : index
    %c0_11 = arith.constant 0 : index
    %7 = vector.load %arg4[%c0_10, %c0_11] : memref<128x128xbf16, #tpu.memory_space<vmem>>, vector<128x128xbf16>
    %cst_12 = arith.constant dense<0.000000e+00> : vector<512x128xf32>
    %8 = tpu.matmul %6, %7, %cst_12 {dimension_numbers = #tpu.dot_dimension_numbers<[1], [0], [0], [1], [0, 0, 1, 1], [], []>} : vector<512x128xbf16>, vector<128x128xbf16>, vector<512x128xf32> -> vector<512x128xf32>
    %9 = arith.truncf %8 : vector<512x128xf32> to vector<512x128xbf16>
    %c0_i32_13 = arith.constant 0 : i32
    %c4_i32_14 = arith.constant 4 : i32
    %10 = arith.addi %c0_i32_13, %c4_i32_14 : i32
    %c1_i32_15 = arith.constant 1 : i32
    scf.for %arg16 = %c0_i32_13 to %10 step %c1_i32_15  : i32 {
      %c1_i32_38 = arith.constant 1 : i32
      %28 = arith.muli %arg16, %c1_i32_38 : i32
      %c0_i32_39 = arith.constant 0 : i32
      %29 = arith.addi %c0_i32_39, %28 : i32
      %c128_i32 = arith.constant 128 : i32
      %30 = arith.muli %29, %c128_i32 : i32
      %31 = tpu.assume_multiple %30, 128 : i32
      %32 = arith.index_cast %31 : i32 to index
      %c0_40 = arith.constant 0 : index
      %33 = vector.load %arg12[%32, %c0_40] : memref<512x512xbf16, #tpu.memory_space<vmem>>, vector<128x512xbf16>
      %cst_41 = arith.constant dense<0.000000e+00> : vector<128x128xf32>
      %34 = tpu.matmul %33, %9, %cst_41 {dimension_numbers = #tpu.dot_dimension_numbers<[1], [0], [0], [1], [0, 0, 1, 1], [], []>} : vector<128x512xbf16>, vector<512x128xbf16>, vector<128x128xf32> -> vector<128x128xf32>
      %c0_42 = arith.constant 0 : index
      %c0_43 = arith.constant 0 : index
      %35 = vector.load %arg5[%c0_42, %c0_43] : memref<1x128xf32, #tpu.memory_space<vmem>>, vector<1x128xf32>
      %36 = vector.broadcast %35 : vector<1x128xf32> to vector<128x128xf32>
      %37 = arith.addf %34, %36 : vector<128x128xf32>
      %cst_44 = arith.constant 0.000000e+00 : f32
      %38 = vector.broadcast %cst_44 : f32 to vector<128x128xf32>
      %39 = arith.maximumf %37, %38 : vector<128x128xf32>
      %40 = arith.truncf %39 : vector<128x128xf32> to vector<128x128xbf16>
      %41 = arith.index_cast %31 : i32 to index
      %c0_45 = arith.constant 0 : index
      %42 = vector.load %arg13[%41, %c0_45] : memref<512x128xbf16, #tpu.memory_space<vmem>>, vector<128x128xbf16>
      tpu.vector_store %arg13[%41, %c0_45], %40 {strides = array<i32>} : memref<512x128xbf16, #tpu.memory_space<vmem>>, vector<128x128xbf16>,
    }
    %c4_i32_16 = arith.constant 4 : i32
    %c0_17 = arith.constant 0 : index
    %c0_18 = arith.constant 0 : index
    %11 = vector.load %arg13[%c0_17, %c0_18] : memref<512x128xbf16, #tpu.memory_space<vmem>>, vector<512x128xbf16>
    %c0_19 = arith.constant 0 : index
    %c0_20 = arith.constant 0 : index
    %12 = vector.load %arg6[%c0_19, %c0_20] : memref<128x128xbf16, #tpu.memory_space<vmem>>, vector<128x128xbf16>
    %cst_21 = arith.constant dense<0.000000e+00> : vector<512x128xf32>
    %13 = tpu.matmul %11, %12, %cst_21 {dimension_numbers = #tpu.dot_dimension_numbers<[1], [0], [0], [1], [0, 0, 1, 1], [], []>} : vector<512x128xbf16>, vector<128x128xbf16>, vector<512x128xf32> -> vector<512x128xf32>
    %14 = arith.truncf %13 : vector<512x128xf32> to vector<512x128xbf16>
    %c0_i32_22 = arith.constant 0 : i32
    %c4_i32_23 = arith.constant 4 : i32
    %15 = arith.addi %c0_i32_22, %c4_i32_23 : i32
    %c1_i32_24 = arith.constant 1 : i32
    scf.for %arg16 = %c0_i32_22 to %15 step %c1_i32_24  : i32 {
      %c1_i32_38 = arith.constant 1 : i32
      %28 = arith.muli %arg16, %c1_i32_38 : i32
      %c0_i32_39 = arith.constant 0 : i32
      %29 = arith.addi %c0_i32_39, %28 : i32
      %c128_i32 = arith.constant 128 : i32
      %30 = arith.muli %29, %c128_i32 : i32
      %31 = tpu.assume_multiple %30, 128 : i32
      %32 = arith.index_cast %31 : i32 to index
      %c0_40 = arith.constant 0 : index
      %33 = vector.load %arg12[%32, %c0_40] : memref<512x512xbf16, #tpu.memory_space<vmem>>, vector<128x512xbf16>
      %cst_41 = arith.constant dense<0.000000e+00> : vector<128x128xf32>
      %34 = tpu.matmul %33, %14, %cst_41 {dimension_numbers = #tpu.dot_dimension_numbers<[1], [0], [0], [1], [0, 0, 1, 1], [], []>} : vector<128x512xbf16>, vector<512x128xbf16>, vector<128x128xf32> -> vector<128x128xf32>
      %c0_42 = arith.constant 0 : index
      %c0_43 = arith.constant 0 : index
      %35 = vector.load %arg7[%c0_42, %c0_43] : memref<1x128xf32, #tpu.memory_space<vmem>>, vector<1x128xf32>
      %36 = vector.broadcast %35 : vector<1x128xf32> to vector<128x128xf32>
      %37 = arith.addf %34, %36 : vector<128x128xf32>
      %cst_44 = arith.constant 0.000000e+00 : f32
      %38 = vector.broadcast %cst_44 : f32 to vector<128x128xf32>
      %39 = arith.maximumf %37, %38 : vector<128x128xf32>
      %40 = arith.index_cast %31 : i32 to index
      %c0_45 = arith.constant 0 : index
      %41 = vector.load %arg14[%40, %c0_45] : memref<512x128xf32, #tpu.memory_space<vmem>>, vector<128x128xf32>
      tpu.vector_store %arg14[%40, %c0_45], %39 {strides = array<i32>} : memref<512x128xf32, #tpu.memory_space<vmem>>, vector<128x128xf32>,
    }
    %c4_i32_25 = arith.constant 4 : i32
    %c0_26 = arith.constant 0 : index
    %c0_27 = arith.constant 0 : index
    %16 = vector.load %arg8[%c0_26, %c0_27] : memref<8x512xf32, #tpu.memory_space<vmem>>, vector<8x512xf32>
    %c0_28 = arith.constant 0 : index
    %c0_29 = arith.constant 0 : index
    %17 = vector.load %arg14[%c0_28, %c0_29] : memref<512x128xf32, #tpu.memory_space<vmem>>, vector<512x128xf32>
    %cst_30 = arith.constant dense<0.000000e+00> : vector<8x128xf32>
    %18 = tpu.matmul %16, %17, %cst_30 {dimension_numbers = #tpu.dot_dimension_numbers<[1], [0], [0], [1], [0, 0, 1, 1], [], []>} : vector<8x512xf32>, vector<512x128xf32>, vector<8x128xf32> -> vector<8x128xf32>
    %c0_31 = arith.constant 0 : index
    %c0_32 = arith.constant 0 : index
    %19 = vector.load %arg9[%c0_31, %c0_32] : memref<1x128xf32, #tpu.memory_space<vmem>>, vector<1x128xf32>
    %20 = vector.broadcast %19 : vector<1x128xf32> to vector<8x128xf32>
    %21 = arith.mulf %18, %20 : vector<8x128xf32>
    %cst_33 = arith.constant dense<0.000000e+00> : vector<8xf32>
    %22 = vector.multi_reduction <add>, %21, %cst_33 [1] : vector<8x128xf32> to vector<8xf32>
    %23 = vector.shape_cast %22 : vector<8xf32> to vector<8x1xf32>
    %c0_34 = arith.constant 0 : index
    %c0_35 = arith.constant 0 : index
    %24 = vector.load %arg10[%c0_34, %c0_35] : memref<1x1xf32, #tpu.memory_space<vmem>>, vector<1x1xf32>
    %25 = vector.broadcast %24 : vector<1x1xf32> to vector<8x1xf32>
    %26 = arith.addf %23, %25 : vector<8x1xf32>
    %c0_36 = arith.constant 0 : index
    %c0_37 = arith.constant 0 : index
    %27 = vector.load %arg11[%c0_36, %c0_37] : memref<8x1xf32, #tpu.memory_space<vmem>>, vector<8x1xf32>
    tpu.vector_store %arg11[%c0_36, %c0_37], %26 {strides = array<i32>} : memref<8x1xf32, #tpu.memory_space<vmem>>, vector<8x1xf32>,
    return
  }
}

</mosaic_0001>

<llo_original>
// kernel: gcn_model_forward.2
$region0: #{gcn_model_forward.2}
  #allocation0 [shape = 'u32[]', space=smem, size = 0x4, offset = 0x4, fixed_abs, tag = 'smem constant byte address 0x4 - core index']
  #allocation1 [shape = 'u32[144,128]{1,0:T(1,128)}', space=vmem, size = 0x12000, scoped, tag = 'internal scratch']
  #allocation2 [shape = 'f32[1,1]{1,0:T(1,128)S(1)}', space=vmem, size = 0x200, scoped, tag = 'scoped memory for gcn_model_forward.2']
  %s0 = inlined_call_operand.vmem [shape: bf16[128,8], index: 0, kind: input, shape index: {}]
  %s1 = inlined_call_operand.vmem [shape: bf16[8,128], index: 1, kind: input, shape index: {}]
  %s2 = inlined_call_operand.vmem [shape: f32[1,128], index: 2, kind: input, shape index: {}]
  %s3 = inlined_call_operand.vmem [shape: f32[1,128], index: 3, kind: input, shape index: {}]
  %s4 = inlined_call_operand.<no memory space> [shape: f32[1,1], index: 4, kind: input, shape index: {}]
  %s5 = inlined_call_operand.vmem [shape: f32[128,1], index: 5, kind: output, shape index: {}]
  %s6 = sld [smem:[#allocation0]]
  $region30: #{gcn_model_forward.2} parent=0
    _
  %s8 = ssub.s32 1, %s6
  %s9 = scalar_select 0, %s8, %s6
  %v10 = vstv %s4
  %11 = vst [vmem:[#allocation2] sm:$0x1] %v10
  // Predicated region
  $region2: #{gcn_model_forward.2} parent=0 // pred_check
    _
  $region3: #{gcn_model_forward.2} parent=0 // pred_check_branch
    %13 = sbr.rel (0) target = $region5
  $region4: #{gcn_model_forward.2} parent=0 // pred_region
    _
  $region5: #{gcn_model_forward.2} parent=0 // pred_fallthru
    _
  // Predicated region
  $region6: #{gcn_model_forward.2} parent=0 // pred_check
    _
  $region7: #{gcn_model_forward.2} parent=0 // pred_check_branch
    %15 = sbr.rel (0) target = $region9
  $region8: #{gcn_model_forward.2} parent=0 // pred_region
    _
  $region9: #{gcn_model_forward.2} parent=0 // pred_fallthru
    _
  // Predicated region
  $region10: #{gcn_model_forward.2} parent=0 // pred_check
    _
  $region11: #{gcn_model_forward.2} parent=0 // pred_check_branch
    %17 = sbr.rel (0) target = $region13
  $region12: #{gcn_model_forward.2} parent=0 // pred_region
    _
  $region13: #{gcn_model_forward.2} parent=0 // pred_fallthru
    _
  // Predicated region
  $region14: #{gcn_model_forward.2} parent=0 // pred_check
    _
  $region15: #{gcn_model_forward.2} parent=0 // pred_check_branch
    %19 = sbr.rel (0) target = $region17
  $region16: #{gcn_model_forward.2} parent=0 // pred_region
    _
  $region17: #{gcn_model_forward.2} parent=0 // pred_fallthru
    _
  // Predicated region
  $region18: #{gcn_model_forward.2} parent=0 // pred_check
    _
  $region19: #{gcn_model_forward.2} parent=0 // pred_check_branch
    %21 = sbr.rel (0) target = $region21
  $region20: #{gcn_model_forward.2} parent=0 // pred_region
    _
  $region21: #{gcn_model_forward.2} parent=0 // pred_fallthru
    _
  %v23 = vld [vmem:[%s0] sm:$0xf]
  %v24 = vld [vmem:[%s0 + $0x4] sm:$0xf]
  %v25 = vld [vmem:[%s0 + $0x8] sm:$0xf]
  %v26 = vld [vmem:[%s0 + $0xc] sm:$0xf]
  %v27 = vld [vmem:[%s0 + $0x10] sm:$0xf]
  %v28 = vld [vmem:[%s0 + $0x14] sm:$0xf]
  %v29 = vld [vmem:[%s0 + $0x18] sm:$0xf]
  %v30 = vld [vmem:[%s0 + $0x1c] sm:$0xf]
  %v31 = vld [vmem:[%s0 + $0x20] sm:$0xf]
  %v32 = vld [vmem:[%s0 + $0x24] sm:$0xf]
  %v33 = vld [vmem:[%s0 + $0x28] sm:$0xf]
  %v34 = vld [vmem:[%s0 + $0x2c] sm:$0xf]
  %v35 = vld [vmem:[%s0 + $0x30] sm:$0xf]
  %v36 = vld [vmem:[%s0 + $0x34] sm:$0xf]
  %v37 = vld [vmem:[%s0 + $0x38] sm:$0xf]
  %v38 = vld [vmem:[%s0 + $0x3c] sm:$0xf]
  %v39 = vld [vmem:[%s1] sm:$0xf]
  %v40 = vld [vmem:[%s2] sm:$0x1]
  %v42 = vlaneseq
  %v43 = vshrl.u32 %v42, 7
  %v44 = vsub.s32 0, %v43
  %v45 = vrot.slane %v40, %v44
  %v63 = vunpack.c.l.b16 %v23
  %v64 = vunpack.c.l.b16 %v24
  %v65 = vunpack.c.l.b16 %v25
  %v66 = vunpack.c.l.b16 %v26
  %v67 = vunpack.c.l.b16 %v27
  %v68 = vunpack.c.l.b16 %v28
  %v69 = vunpack.c.l.b16 %v29
  %v70 = vunpack.c.l.b16 %v30
  %v71 = vunpack.c.l.b16 %v31
  %v72 = vunpack.c.l.b16 %v32
  %v73 = vunpack.c.l.b16 %v33
  %v74 = vunpack.c.l.b16 %v34
  %v75 = vunpack.c.l.b16 %v35
  %v76 = vunpack.c.l.b16 %v36
  %v77 = vunpack.c.l.b16 %v37
  %v78 = vunpack.c.l.b16 %v38
  %v79 = vpack.c.b16 %v64, %v63
  %v80 = vpack.c.b16 %v66, %v65
  %v81 = vpack.c.b16 %v68, %v67
  %v82 = vpack.c.b16 %v70, %v69
  %v83 = vpack.c.b16 %v72, %v71
  %v84 = vpack.c.b16 %v74, %v73
  %v85 = vpack.c.b16 %v76, %v75
  %v86 = vpack.c.b16 %v78, %v77
  %vm87 = vcmask 64512
  %v89 = vsel %vm87, %v79, 0
  %v92 = vsel %vm87, %v80, 0
  %v95 = vsel %vm87, %v81, 0
  %v98 = vsel %vm87, %v82, 0
  %v101 = vsel %vm87, %v83, 0
  %v104 = vsel %vm87, %v84, 0
  %v107 = vsel %vm87, %v85, 0
  %v110 = vsel %vm87, %v86, 0
  %vm112 = vcmask 1043456
  %v114 = vsel %vm112, %v39, 0
  %116 = vmatprep.subr.bf16.mxu0 0
  %117 = vmatpush1.bf16.msra.mxu0 0
  %118 = vmatprep.subr.bf16.mxu0 0
  %119 = vmatpush1.bf16.msra.mxu0 0
  %120 = vmatprep.subr.bf16.mxu0 0
  %121 = vmatpush1.bf16.msra.mxu0 0
  %122 = vmatprep.subr.bf16.mxu0 0
  %123 = vmatpush1.bf16.msra.mxu0 0
  %124 = vmatprep.subr.bf16.mxu0 0
  %125 = vmatpush1.bf16.msra.mxu0 0
  %126 = vmatprep.subr.bf16.mxu0 0
  %127 = vmatpush1.bf16.msra.mxu0 0
  %128 = vmatprep.subr.bf16.mxu0 0
  %129 = vmatpush1.bf16.msra.mxu0 0
  %130 = vmatprep.subr.bf16.mxu0 0
  %131 = vmatpush1.bf16.msra.mxu0 %v114
  %132 = vmatprep.subr.bf16.mxu0 0
  %133 = vmatpush2.bf16.msra.mxu0 0
  %134 = vmatprep.subr.bf16.mxu0 0
  %135 = vmatpush2.bf16.msra.mxu0 0
  %136 = vmatprep.subr.bf16.mxu0 0
  %137 = vmatpush2.bf16.msra.mxu0 0
  %138 = vmatprep.subr.bf16.mxu0 0
  %139 = vmatpush2.bf16.msra.mxu0 0
  %140 = vmatprep.subr.bf16.mxu0 0
  %141 = vmatpush2.bf16.msra.mxu0 0
  %142 = vmatprep.subr.bf16.mxu0 0
  %143 = vmatpush2.bf16.msra.mxu0 0
  %144 = vmatprep.subr.bf16.mxu0 0
  %145 = vmatpush2.bf16.msra.mxu0 0
  %146 = vmatprep.subr.bf16.mxu0 0
  %147 = vmatpush2.bf16.msra.mxu0 0
  %148 = vmatprep.mubr.bf16.mxu0 0
  %149 = vmatmul.mubr.bf16.gmra.mxu0 %v89
  %v150 = vpop.f32.mrf.mxu0
  %v151 = vadd.f32 %v45, %v150
  %v152 = vpop.f32.mrf.mxu0
  %v153 = vpop.f32.mrf.mxu0
  %v154 = vadd.f32 %v45, %v153
  %v155 = vpop.f32.mrf.mxu0
  %156 = vmatprep.mubr.bf16.mxu0 0
  %157 = vmatmul.mubr.bf16.gmra.mxu0 %v92
  %v158 = vpop.f32.mrf.mxu0
  %v159 = vadd.f32 %v45, %v158
  %v160 = vpop.f32.mrf.mxu0
  %v161 = vpop.f32.mrf.mxu0
  %v162 = vadd.f32 %v45, %v161
  %v163 = vpop.f32.mrf.mxu0
  %164 = vmatprep.mubr.bf16.mxu0 0
  %165 = vmatmul.mubr.bf16.gmra.mxu0 %v95
  %v166 = vpop.f32.mrf.mxu0
  %v167 = vadd.f32 %v45, %v166
  %v168 = vpop.f32.mrf.mxu0
  %v169 = vpop.f32.mrf.mxu0
  %v170 = vadd.f32 %v45, %v169
  %v171 = vpop.f32.mrf.mxu0
  %172 = vmatprep.mubr.bf16.mxu0 0
  %173 = vmatmul.mubr.bf16.gmra.mxu0 %v98
  %v174 = vpop.f32.mrf.mxu0
  %v175 = vadd.f32 %v45, %v174
  %v176 = vpop.f32.mrf.mxu0
  %v177 = vpop.f32.mrf.mxu0
  %v178 = vadd.f32 %v45, %v177
  %v179 = vpop.f32.mrf.mxu0
  %180 = vmatprep.mubr.bf16.mxu0 0
  %181 = vmatmul.mubr.bf16.gmra.mxu0 %v101
  %v182 = vpop.f32.mrf.mxu0
  %v183 = vadd.f32 %v45, %v182
  %v184 = vpop.f32.mrf.mxu0
  %v185 = vpop.f32.mrf.mxu0
  %v186 = vadd.f32 %v45, %v185
  %v187 = vpop.f32.mrf.mxu0
  %188 = vmatprep.mubr.bf16.mxu0 0
  %189 = vmatmul.mubr.bf16.gmra.mxu0 %v104
  %v190 = vpop.f32.mrf.mxu0
  %v191 = vadd.f32 %v45, %v190
  %v192 = vpop.f32.mrf.mxu0
  %v193 = vpop.f32.mrf.mxu0
  %v194 = vadd.f32 %v45, %v193
  %v195 = vpop.f32.mrf.mxu0
  %196 = vmatprep.mubr.bf16.mxu0 0
  %197 = vmatmul.mubr.bf16.gmra.mxu0 %v107
  %v198 = vpop.f32.mrf.mxu0
  %v199 = vadd.f32 %v45, %v198
  %v200 = vpop.f32.mrf.mxu0
  %v201 = vpop.f32.mrf.mxu0
  %v202 = vadd.f32 %v45, %v201
  %v203 = vpop.f32.mrf.mxu0
  %204 = vmatprep.mubr.bf16.mxu0 0
  %205 = vmatmul.mubr.bf16.gmra.mxu0 %v110
  %v206 = vpop.f32.mrf.mxu0
  %v207 = vadd.f32 %v45, %v206
  %v208 = vpop.f32.mrf.mxu0
  %v209 = vpop.f32.mrf.mxu0
  %v210 = vadd.f32 %v45, %v209
  %v211 = vpop.f32.mrf.mxu0
  %212 = vdwg.mxu0
  %v213 = vmax.f32 %v151, 0.0
  %v214 = vmax.f32 %v154, 0.0
  %v215 = vmax.f32 %v159, 0.0
  %v216 = vmax.f32 %v162, 0.0
  %v217 = vmax.f32 %v167, 0.0
  %v218 = vmax.f32 %v170, 0.0
  %v219 = vmax.f32 %v175, 0.0
  %v220 = vmax.f32 %v178, 0.0
  %v221 = vmax.f32 %v183, 0.0
  %v222 = vmax.f32 %v186, 0.0
  %v223 = vmax.f32 %v191, 0.0
  %v224 = vmax.f32 %v194, 0.0
  %v225 = vmax.f32 %v199, 0.0
  %v226 = vmax.f32 %v202, 0.0
  %v227 = vmax.f32 %v207, 0.0
  %v228 = vmax.f32 %v210, 0.0
  %v229 = vld [vmem:[%s3] sm:$0x1]
  %v231 = vlaneseq
  %v232 = vshrl.u32 %v231, 7
  %v233 = vsub.s32 0, %v232
  %v234 = vrot.slane %v229, %v233
  %v236 = vmul.f32 %v213, %v234
  %v237 = vmul.f32 %v214, %v234
  %v238 = vmul.f32 %v215, %v234
  %v239 = vmul.f32 %v216, %v234
  %v240 = vmul.f32 %v217, %v234
  %v241 = vmul.f32 %v218, %v234
  %v242 = vmul.f32 %v219, %v234
  %v243 = vmul.f32 %v220, %v234
  %v244 = vmul.f32 %v221, %v234
  %v245 = vmul.f32 %v222, %v234
  %v246 = vmul.f32 %v223, %v234
  %v247 = vmul.f32 %v224, %v234
  %v248 = vmul.f32 %v225, %v234
  %v249 = vmul.f32 %v226, %v234
  %v250 = vmul.f32 %v227, %v234
  %v251 = vmul.f32 %v228, %v234
  %252 = vadd.xlane.f32.xlu0 %v236
  %v253 = vpop.xlane.xlu0 %252
  %254 = vadd.xlane.f32.xlu0 %v237
  %v255 = vpop.xlane.xlu0 %254
  %256 = vadd.xlane.f32.xlu0 %v238
  %v257 = vpop.xlane.xlu0 %256
  %258 = vadd.xlane.f32.xlu0 %v239
  %v259 = vpop.xlane.xlu0 %258
  %260 = vadd.xlane.f32.xlu0 %v240
  %v261 = vpop.xlane.xlu0 %260
  %262 = vadd.xlane.f32.xlu0 %v241
  %v263 = vpop.xlane.xlu0 %262
  %264 = vadd.xlane.f32.xlu0 %v242
  %v265 = vpop.xlane.xlu0 %264
  %266 = vadd.xlane.f32.xlu0 %v243
  %v267 = vpop.xlane.xlu0 %266
  %268 = vadd.xlane.f32.xlu0 %v244
  %v269 = vpop.xlane.xlu0 %268
  %270 = vadd.xlane.f32.xlu0 %v245
  %v271 = vpop.xlane.xlu0 %270
  %272 = vadd.xlane.f32.xlu0 %v246
  %v273 = vpop.xlane.xlu0 %272
  %274 = vadd.xlane.f32.xlu0 %v247
  %v275 = vpop.xlane.xlu0 %274
  %276 = vadd.xlane.f32.xlu0 %v248
  %v277 = vpop.xlane.xlu0 %276
  %278 = vadd.xlane.f32.xlu0 %v249
  %v279 = vpop.xlane.xlu0 %278
  %280 = vadd.xlane.f32.xlu0 %v250
  %v281 = vpop.xlane.xlu0 %280
  %282 = vadd.xlane.f32.xlu0 %v251
  %v283 = vpop.xlane.xlu0 %282
  %v284 = vld [vmem:[#allocation2] sm:$0x1]
  %v286 = vlaneseq
  %v287 = vshrl.u32 %v286, 7
  %v288 = vsub.s32 0, %v287
  %v289 = vrot.slane %v284, %v288
  %v291 = vadd.f32 %v253, %v289
  %v292 = vadd.f32 %v255, %v289
  %v293 = vadd.f32 %v257, %v289
  %v294 = vadd.f32 %v259, %v289
  %v295 = vadd.f32 %v261, %v289
  %v296 = vadd.f32 %v263, %v289
  %v297 = vadd.f32 %v265, %v289
  %v298 = vadd.f32 %v267, %v289
  %v299 = vadd.f32 %v269, %v289
  %v300 = vadd.f32 %v271, %v289
  %v301 = vadd.f32 %v273, %v289
  %v302 = vadd.f32 %v275, %v289
  %v303 = vadd.f32 %v277, %v289
  %v304 = vadd.f32 %v279, %v289
  %v305 = vadd.f32 %v281, %v289
  %v306 = vadd.f32 %v283, %v289
  %vm307 = vcmask 7168
  %308 = vst.msk [vmem:[%s5] sm:$0xff] %vm307, %v291
  %309 = vst.msk [vmem:[%s5 + $0x8] sm:$0xff] %vm307, %v292
  %310 = vst.msk [vmem:[%s5 + $0x10] sm:$0xff] %vm307, %v293
  %311 = vst.msk [vmem:[%s5 + $0x18] sm:$0xff] %vm307, %v294
  %312 = vst.msk [vmem:[%s5 + $0x20] sm:$0xff] %vm307, %v295
  %313 = vst.msk [vmem:[%s5 + $0x28] sm:$0xff] %vm307, %v296
  %314 = vst.msk [vmem:[%s5 + $0x30] sm:$0xff] %vm307, %v297
  %315 = vst.msk [vmem:[%s5 + $0x38] sm:$0xff] %vm307, %v298
  %316 = vst.msk [vmem:[%s5 + $0x40] sm:$0xff] %vm307, %v299
  %317 = vst.msk [vmem:[%s5 + $0x48] sm:$0xff] %vm307, %v300
  %318 = vst.msk [vmem:[%s5 + $0x50] sm:$0xff] %vm307, %v301
  %319 = vst.msk [vmem:[%s5 + $0x58] sm:$0xff] %vm307, %v302
  %320 = vst.msk [vmem:[%s5 + $0x60] sm:$0xff] %vm307, %v303
  %321 = vst.msk [vmem:[%s5 + $0x68] sm:$0xff] %vm307, %v304
  %322 = vst.msk [vmem:[%s5 + $0x70] sm:$0xff] %vm307, %v305
  %323 = vst.msk [vmem:[%s5 + $0x78] sm:$0xff] %vm307, %v306
  // Predicated region
  $region22: #{gcn_model_forward.2} parent=0 // pred_check
    _
  $region23: #{gcn_model_forward.2} parent=0 // pred_check_branch
    %325 = sbr.rel (0) target = $region25
  $region24: #{gcn_model_forward.2} parent=0 // pred_region
    _
  $region25: #{gcn_model_forward.2} parent=0 // pred_fallthru
    _
  // Predicated region
  $region26: #{gcn_model_forward.2} parent=0 // pred_check
    _
  $region27: #{gcn_model_forward.2} parent=0 // pred_check_branch
    %327 = sbr.rel (0) target = $region29
  $region28: #{gcn_model_forward.2} parent=0 // pred_region
    _
  $region29: #{gcn_model_forward.2} parent=0 // pred_fallthru
    _

// kernel: gcn_model_forward.3
$region0: #{gcn_model_forward.3}
  #allocation0 [shape = 'u32[]', space=smem, size = 0x4, offset = 0x4, fixed_abs, tag = 'smem constant byte address 0x4 - core index']
  #allocation1 [shape = 'u32[144,128]{1,0:T(1,128)}', space=vmem, size = 0x12000, scoped, tag = 'internal scratch']
  #allocation2 [shape = 'bf16[512,512]{1,0:T(8,128)(2,1)}', space=vmem, size = 0x80000, scoped, tag = 'scratch operand']
  #allocation3 [shape = 'bf16[512,128]{1,0:T(8,128)(2,1)}', space=vmem, size = 0x20000, scoped, tag = 'scratch operand']
  #allocation4 [shape = 'f32[512,128]{1,0:T(8,128)}', space=vmem, size = 0x40000, scoped, tag = 'scratch operand']
  #allocation5 [shape = 's32[4]{0}', space=sflag, size = 0x10, scoped, tag = 'scratch operand']
  #allocation6 [shape = 'f32[1,1]{1,0:T(1,128)S(1)}', space=vmem, size = 0x200, scoped, tag = 'scoped memory for gcn_model_forward.3']
  #allocation7 [shape = 's32[]', space=sflag, size = 0x4, offset = 0, fixed_abs, tag = 'sflag constant byte address 0x0 - dummy sync flag']
  %s0 = inlined_call_operand.vmem [shape: bf16[512,512], index: 0, kind: input, shape index: {}]
  %s1 = inlined_call_operand.vmem [shape: bf16[512,128], index: 1, kind: input, shape index: {}]
  %s2 = inlined_call_operand.vmem [shape: bf16[128,128], index: 2, kind: input, shape index: {}]
  %s3 = inlined_call_operand.vmem [shape: f32[1,128], index: 3, kind: input, shape index: {}]
  %s4 = inlined_call_operand.vmem [shape: bf16[128,128], index: 4, kind: input, shape index: {}]
  %s5 = inlined_call_operand.vmem [shape: f32[1,128], index: 5, kind: input, shape index: {}]
  %s6 = inlined_call_operand.vmem [shape: bf16[128,128], index: 6, kind: input, shape index: {}]
  %s7 = inlined_call_operand.vmem [shape: f32[1,128], index: 7, kind: input, shape index: {}]
  %s8 = inlined_call_operand.vmem [shape: f32[8,512], index: 8, kind: input, shape index: {}]
  %s9 = inlined_call_operand.vmem [shape: f32[1,128], index: 9, kind: input, shape index: {}]
  %s10 = inlined_call_operand.<no memory space> [shape: f32[1,1], index: 10, kind: input, shape index: {}]
  %s11 = inlined_call_operand.vmem [shape: f32[8,1], index: 11, kind: output, shape index: {}]
  %s12 = sld [smem:[#allocation0]]
  $region112: #{gcn_model_forward.3} parent=0
    _
  %s14 = ssub.s32 1, %s12
  %s15 = scalar_select 0, %s14, %s12
  %v16 = vstv %s10
  %17 = vst [vmem:[#allocation6] sm:$0x1] %v16
  // Predicated region
  $region2: #{gcn_model_forward.3} parent=0 // pred_check
    _
  $region3: #{gcn_model_forward.3} parent=0 // pred_check_branch
    %19 = sbr.rel (0) target = $region5
  $region4: #{gcn_model_forward.3} parent=0 // pred_region
    _
  $region5: #{gcn_model_forward.3} parent=0 // pred_fallthru
    _
  // Predicated region
  $region6: #{gcn_model_forward.3} parent=0 // pred_check
    _
  $region7: #{gcn_model_forward.3} parent=0 // pred_check_branch
    %21 = sbr.rel (0) target = $region9
  $region8: #{gcn_model_forward.3} parent=0 // pred_region
    _
  $region9: #{gcn_model_forward.3} parent=0 // pred_fallthru
    _
  // Predicated region
  $region10: #{gcn_model_forward.3} parent=0 // pred_check
    _
  $region11: #{gcn_model_forward.3} parent=0 // pred_check_branch
    %23 = sbr.rel (0) target = $region13
  $region12: #{gcn_model_forward.3} parent=0 // pred_region
    _
  $region13: #{gcn_model_forward.3} parent=0 // pred_fallthru
    _
  // Predicated region
  $region14: #{gcn_model_forward.3} parent=0 // pred_check
    _
  $region15: #{gcn_model_forward.3} parent=0 // pred_check_branch
    %25 = sbr.rel (0) target = $region17
  $region16: #{gcn_model_forward.3} parent=0 // pred_region
    _
  $region17: #{gcn_model_forward.3} parent=0 // pred_fallthru
    _
  // Predicated region
  $region18: #{gcn_model_forward.3} parent=0 // pred_check
    _
  $region19: #{gcn_model_forward.3} parent=0 // pred_check_branch
    %27 = sbr.rel (0) target = $region21
  $region20: #{gcn_model_forward.3} parent=0 // pred_region
    _
  $region21: #{gcn_model_forward.3} parent=0 // pred_fallthru
    _
  // Predicated region
  $region22: #{gcn_model_forward.3} parent=0 // pred_check
    _
  $region23: #{gcn_model_forward.3} parent=0 // pred_check_branch
    %29 = sbr.rel (0) target = $region25
  $region24: #{gcn_model_forward.3} parent=0 // pred_region
    _
  $region25: #{gcn_model_forward.3} parent=0 // pred_fallthru
    _
  // Predicated region
  $region26: #{gcn_model_forward.3} parent=0 // pred_check
    _
  $region27: #{gcn_model_forward.3} parent=0 // pred_check_branch
    %31 = sbr.rel (0) target = $region29
  $region28: #{gcn_model_forward.3} parent=0 // pred_region
    _
  $region29: #{gcn_model_forward.3} parent=0 // pred_fallthru
    _
  // Predicated region
  $region30: #{gcn_model_forward.3} parent=0 // pred_check
    _
  $region31: #{gcn_model_forward.3} parent=0 // pred_check_branch
    %33 = sbr.rel (0) target = $region33
  $region32: #{gcn_model_forward.3} parent=0 // pred_region
    _
  $region33: #{gcn_model_forward.3} parent=0 // pred_fallthru
    _
  // Predicated region
  $region34: #{gcn_model_forward.3} parent=0 // pred_check
    _
  $region35: #{gcn_model_forward.3} parent=0 // pred_check_branch
    %35 = sbr.rel (0) target = $region37
  $region36: #{gcn_model_forward.3} parent=0 // pred_region
    _
  $region37: #{gcn_model_forward.3} parent=0 // pred_fallthru
    _
  // Predicated region
  $region38: #{gcn_model_forward.3} parent=0 // pred_check
    _
  $region39: #{gcn_model_forward.3} parent=0 // pred_check_branch
    %37 = sbr.rel (0) target = $region41
  $region40: #{gcn_model_forward.3} parent=0 // pred_region
    _
  $region41: #{gcn_model_forward.3} parent=0 // pred_fallthru
    _
  loop: start=0, step=1, limit=4
  $region42: #{gcn_model_forward.3} parent=0 // loop_pre_header
    _
  $region43: #{gcn_model_forward.3} parent=0 // loop_header
    %s40 = sphi 0, %s44
    %p41 = scmp.ge.s32.totalorder %s40, 4
  $region44: #{gcn_model_forward.3} parent=0 // loop_header_branch
    %43 = sbr.rel (%p41) target = $region48
  $region45: #{gcn_model_forward.3} parent=0 // loop_body
    %s45 = smul.u32 %s40, 128
    %s46 = sshra.s32 %s45, 3
    %s47 = sand.u32 %s45, 7
    %s48 = smul.u32 %s46, 4
    %s49 = smul.addr %s48, 4
    %s50 = scalar_lea.vmem %s0, %s49
    %s51 = smul.addr %s48, 4
    %s52 = scalar_lea.vmem [#allocation2], %s51
    %s53 = scalar_lea.sflag [#allocation5], %s40
    %p55 = scmp.lt.u32.totalorder 256, 8
    %p56 = pneg %p55
    // Predicated region
    $region49: #{gcn_model_forward.3} parent=45 // pred_check
      _
    $region50: #{gcn_model_forward.3} parent=45 // pred_check_branch
      %58 = sbr.rel (%p55) target = $region52
    $region51: #{gcn_model_forward.3} parent=45 // pred_region
      %s74 = sand.u32 256, 7
      %p75 = scmp.eq.s32.totalorder %s74, 0
      // Predicated region
      $region64: #{gcn_model_forward.3} parent=51 // pred_check
        %p76 = pneg %p75
      $region65: #{gcn_model_forward.3} parent=51 // pred_check_branch
        %78 = sbr.rel (%p76) target = $region67
      $region66: #{gcn_model_forward.3} parent=51 // pred_region
        loop: start=0, step=1, limit=1
        $region68: #{gcn_model_forward.3} parent=66 // loop_pre_header
          _
        $region69: #{gcn_model_forward.3} parent=66 // loop_header
          %s80 = sphi 0, %s84
          %p81 = scmp.ge.s32.totalorder %s80, 1
          %s85 = sphi %s50, %s50
          %s86 = sphi %s52, %s52
        $region70: #{gcn_model_forward.3} parent=66 // loop_header_branch
          %83 = sbr.rel (%p81) target = $region74
        $region71: #{gcn_model_forward.3} parent=66 // loop_body
          %v87 = vld [vmem:[%s85] sm:$0xff]
          %88 = vst [vmem:[%s86] sm:$0xff] %v87
          %v89 = vld [vmem:[%s85 + $0x8] sm:$0xff]
          %90 = vst [vmem:[%s86 + $0x8] sm:$0xff] %v89
          %v91 = vld [vmem:[%s85 + $0x10] sm:$0xff]
          %92 = vst [vmem:[%s86 + $0x10] sm:$0xff] %v91
          %v93 = vld [vmem:[%s85 + $0x18] sm:$0xff]
          %94 = vst [vmem:[%s86 + $0x18] sm:$0xff] %v93
          %v95 = vld [vmem:[%s85 + $0x20] sm:$0xff]
          %96 = vst [vmem:[%s86 + $0x20] sm:$0xff] %v95
          %v97 = vld [vmem:[%s85 + $0x28] sm:$0xff]
          %98 = vst [vmem:[%s86 + $0x28] sm:$0xff] %v97
          %v99 = vld [vmem:[%s85 + $0x30] sm:$0xff]
          %100 = vst [vmem:[%s86 + $0x30] sm:$0xff] %v99
          %v101 = vld [vmem:[%s85 + $0x38] sm:$0xff]
          %102 = vst [vmem:[%s86 + $0x38] sm:$0xff] %v101
          %v103 = vld [vmem:[%s85 + $0x40] sm:$0xff]
          %104 = vst [vmem:[%s86 + $0x40] sm:$0xff] %v103
          %v105 = vld [vmem:[%s85 + $0x48] sm:$0xff]
          %106 = vst [vmem:[%s86 + $0x48] sm:$0xff] %v105
          %v107 = vld [vmem:[%s85 + $0x50] sm:$0xff]
          %108 = vst [vmem:[%s86 + $0x50] sm:$0xff] %v107
          %v109 = vld [vmem:[%s85 + $0x58] sm:$0xff]
          %110 = vst [vmem:[%s86 + $0x58] sm:$0xff] %v109
          %v111 = vld [vmem:[%s85 + $0x60] sm:$0xff]
          %112 = vst [vmem:[%s86 + $0x60] sm:$0xff] %v111
          %v113 = vld [vmem:[%s85 + $0x68] sm:$0xff]
          %114 = vst [vmem:[%s86 + $0x68] sm:$0xff] %v113
          %v115 = vld [vmem:[%s85 + $0x70] sm:$0xff]
          %116 = vst [vmem:[%s86 + $0x70] sm:$0xff] %v115
          %v117 = vld [vmem:[%s85 + $0x78] sm:$0xff]
          %118 = vst [vmem:[%s86 + $0x78] sm:$0xff] %v117
          %v119 = vld [vmem:[%s85 + $0x80] sm:$0xff]
          %120 = vst [vmem:[%s86 + $0x80] sm:$0xff] %v119
          %v121 = vld [vmem:[%s85 + $0x88] sm:$0xff]
          %122 = vst [vmem:[%s86 + $0x88] sm:$0xff] %v121
          %v123 = vld [vmem:[%s85 + $0x90] sm:$0xff]
          %124 = vst [vmem:[%s86 + $0x90] sm:$0xff] %v123
          %v125 = vld [vmem:[%s85 + $0x98] sm:$0xff]
          %126 = vst [vmem:[%s86 + $0x98] sm:$0xff] %v125
          %v127 = vld [vmem:[%s85 + $0xa0] sm:$0xff]
          %128 = vst [vmem:[%s86 + $0xa0] sm:$0xff] %v127
          %v129 = vld [vmem:[%s85 + $0xa8] sm:$0xff]
          %130 = vst [vmem:[%s86 + $0xa8] sm:$0xff] %v129
          %v131 = vld [vmem:[%s85 + $0xb0] sm:$0xff]
          %132 = vst [vmem:[%s86 + $0xb0] sm:$0xff] %v131
          %v133 = vld [vmem:[%s85 + $0xb8] sm:$0xff]
          %134 = vst [vmem:[%s86 + $0xb8] sm:$0xff] %v133
          %v135 = vld [vmem:[%s85 + $0xc0] sm:$0xff]
          %136 = vst [vmem:[%s86 + $0xc0] sm:$0xff] %v135
          %v137 = vld [vmem:[%s85 + $0xc8] sm:$0xff]
          %138 = vst [vmem:[%s86 + $0xc8] sm:$0xff] %v137
          %v139 = vld [vmem:[%s85 + $0xd0] sm:$0xff]
          %140 = vst [vmem:[%s86 + $0xd0] sm:$0xff] %v139
          %v141 = vld [vmem:[%s85 + $0xd8] sm:$0xff]
          %142 = vst [vmem:[%s86 + $0xd8] sm:$0xff] %v141
          %v143 = vld [vmem:[%s85 + $0xe0] sm:$0xff]
          %144 = vst [vmem:[%s86 + $0xe0] sm:$0xff] %v143
          %v145 = vld [vmem:[%s85 + $0xe8] sm:$0xff]
          %146 = vst [vmem:[%s86 + $0xe8] sm:$0xff] %v145
          %v147 = vld [vmem:[%s85 + $0xf0] sm:$0xff]
          %148 = vst [vmem:[%s86 + $0xf0] sm:$0xff] %v147
          %v149 = vld [vmem:[%s85 + $0xf8] sm:$0xff]
          %150 = vst [vmem:[%s86 + $0xf8] sm:$0xff] %v149
        $region72: #{gcn_model_forward.3} parent=66 // loop_footer
          %s84 = sadd.s32 1, %s80
        $region73: #{gcn_model_forward.3} parent=66 // loop_footer_branch
          %79 = sbr.rel target = $region69
        $region74: #{gcn_model_forward.3} parent=66 // loop_exit
          _
      $region67: #{gcn_model_forward.3} parent=51 // pred_fallthru
        _
      %p151 = pneg %p75
      // Predicated region
      $region75: #{gcn_model_forward.3} parent=51 // pred_check
        _
      $region76: #{gcn_model_forward.3} parent=51 // pred_check_branch
        %153 = sbr.rel (%p75) target = $region78
      $region77: #{gcn_model_forward.3} parent=51 // pred_region
        %s154 = sand.u32 256, 7
      $region78: #{gcn_model_forward.3} parent=51 // pred_fallthru
        _
    $region52: #{gcn_model_forward.3} parent=45 // pred_fallthru
      _
    // Predicated region
    $region53: #{gcn_model_forward.3} parent=45 // pred_check
      %p59 = pneg %p55
    $region54: #{gcn_model_forward.3} parent=45 // pred_check_branch
      %61 = sbr.rel (%p59) target = $region56
    $region55: #{gcn_model_forward.3} parent=45 // pred_region
      %s62 = sshll.u32 1, 256
      %s63 = ssub.s32 %s62, 1
      loop: start=0, step=1, limit=1
      $region57: #{gcn_model_forward.3} parent=55 // loop_pre_header
        _
      $region58: #{gcn_model_forward.3} parent=55 // loop_header
        %s65 = sphi 0, %s69
        %p66 = scmp.ge.s32.totalorder %s65, 1
        %s70 = sphi %s50, %s50
        %s71 = sphi %s52, %s52
      $region59: #{gcn_model_forward.3} parent=55 // loop_header_branch
        %68 = sbr.rel (%p66) target = $region63
      $region60: #{gcn_model_forward.3} parent=55 // loop_body
        %v72 = vld [vmem:[%s70] sm:%s63]
        %73 = vst [vmem:[%s71] sm:%s63] %v72
      $region61: #{gcn_model_forward.3} parent=55 // loop_footer
        %s69 = sadd.s32 1, %s65
      $region62: #{gcn_model_forward.3} parent=55 // loop_footer_branch
        %64 = sbr.rel target = $region58
      $region63: #{gcn_model_forward.3} parent=55 // loop_exit
        _
    $region56: #{gcn_model_forward.3} parent=45 // pred_fallthru
      _
    // Predicated region
    $region79: #{gcn_model_forward.3} parent=45 // pred_check
      _
    $region80: #{gcn_model_forward.3} parent=45 // pred_check_branch
      %157 = sbr.rel (0) target = $region82
    $region81: #{gcn_model_forward.3} parent=45 // pred_region
      %158 = vsyncadd %s53, 4096
    $region82: #{gcn_model_forward.3} parent=45 // pred_fallthru
      _
  $region46: #{gcn_model_forward.3} parent=0 // loop_footer
    %s44 = sadd.s32 1, %s40
  $region47: #{gcn_model_forward.3} parent=0 // loop_footer_branch
    %39 = sbr.rel target = $region43
  $region48: #{gcn_model_forward.3} parent=0 // loop_exit
    _
  %v159 = vld [vmem:[%s1] sm:$0xf]
  %v160 = vld [vmem:[%s1 + $0x4] sm:$0xf]
  %v161 = vld [vmem:[%s1 + $0x8] sm:$0xf]
  %v162 = vld [vmem:[%s1 + $0xc] sm:$0xf]
  %v163 = vld [vmem:[%s1 + $0x10] sm:$0xf]
  %v164 = vld [vmem:[%s1 + $0x14] sm:$0xf]
  %v165 = vld [vmem:[%s1 + $0x18] sm:$0xf]
  %v166 = vld [vmem:[%s1 + $0x1c] sm:$0xf]
  %v167 = vld [vmem:[%s1 + $0x20] sm:$0xf]
  %v168 = vld [vmem:[%s1 + $0x24] sm:$0xf]
  %v169 = vld [vmem:[%s1 + $0x28] sm:$0xf]
  %v170 = vld [vmem:[%s1 + $0x2c] sm:$0xf]
  %v171 = vld [vmem:[%s1 + $0x30] sm:$0xf]
  %v172 = vld [vmem:[%s1 + $0x34] sm:$0xf]
  %v173 = vld [vmem:[%s1 + $0x38] sm:$0xf]
  %v174 = vld [vmem:[%s1 + $0x3c] sm:$0xf]
  %v175 = vld [vmem:[%s1 + $0x40] sm:$0xf]
  %v176 = vld [vmem:[%s1 + $0x44] sm:$0xf]
  %v177 = vld [vmem:[%s1 + $0x48] sm:$0xf]
  %v178 = vld [vmem:[%s1 + $0x4c] sm:$0xf]
  %v179 = vld [vmem:[%s1 + $0x50] sm:$0xf]
  %v180 = vld [vmem:[%s1 + $0x54] sm:$0xf]
  %v181 = vld [vmem:[%s1 + $0x58] sm:$0xf]
  %v182 = vld [vmem:[%s1 + $0x5c] sm:$0xf]
  %v183 = vld [vmem:[%s1 + $0x60] sm:$0xf]
  %v184 = vld [vmem:[%s1 + $0x64] sm:$0xf]
  %v185 = vld [vmem:[%s1 + $0x68] sm:$0xf]
  %v186 = vld [vmem:[%s1 + $0x6c] sm:$0xf]
  %v187 = vld [vmem:[%s1 + $0x70] sm:$0xf]
  %v188 = vld [vmem:[%s1 + $0x74] sm:$0xf]
  %v189 = vld [vmem:[%s1 + $0x78] sm:$0xf]
  %v190 = vld [vmem:[%s1 + $0x7c] sm:$0xf]
  %v191 = vld [vmem:[%s1 + $0x80] sm:$0xf]
  %v192 = vld [vmem:[%s1 + $0x84] sm:$0xf]
  %v193 = vld [vmem:[%s1 + $0x88] sm:$0xf]
  %v194 = vld [vmem:[%s1 + $0x8c] sm:$0xf]
  %v195 = vld [vmem:[%s1 + $0x90] sm:$0xf]
  %v196 = vld [vmem:[%s1 + $0x94] sm:$0xf]
  %v197 = vld [vmem:[%s1 + $0x98] sm:$0xf]
  %v198 = vld [vmem:[%s1 + $0x9c] sm:$0xf]
  %v199 = vld [vmem:[%s1 + $0xa0] sm:$0xf]
  %v200 = vld [vmem:[%s1 + $0xa4] sm:$0xf]
  %v201 = vld [vmem:[%s1 + $0xa8] sm:$0xf]
  %v202 = vld [vmem:[%s1 + $0xac] sm:$0xf]
  %v203 = vld [vmem:[%s1 + $0xb0] sm:$0xf]
  %v204 = vld [vmem:[%s1 + $0xb4] sm:$0xf]
  %v205 = vld [vmem:[%s1 + $0xb8] sm:$0xf]
  %v206 = vld [vmem:[%s1 + $0xbc] sm:$0xf]
  %v207 = vld [vmem:[%s1 + $0xc0] sm:$0xf]
  %v208 = vld [vmem:[%s1 + $0xc4] sm:$0xf]
  %v209 = vld [vmem:[%s1 + $0xc8] sm:$0xf]
  %v210 = vld [vmem:[%s1 + $0xcc] sm:$0xf]
  %v211 = vld [vmem:[%s1 + $0xd0] sm:$0xf]
  %v212 = vld [vmem:[%s1 + $0xd4] sm:$0xf]
  %v213 = vld [vmem:[%s1 + $0xd8] sm:$0xf]
  %v214 = vld [vmem:[%s1 + $0xdc] sm:$0xf]
  %v215 = vld [vmem:[%s1 + $0xe0] sm:$0xf]
  %v216 = vld [vmem:[%s1 + $0xe4] sm:$0xf]
  %v217 = vld [vmem:[%s1 + $0xe8] sm:$0xf]
  %v218 = vld [vmem:[%s1 + $0xec] sm:$0xf]
  %v219 = vld [vmem:[%s1 + $0xf0] sm:$0xf]
  %v220 = vld [vmem:[%s1 + $0xf4] sm:$0xf]
  %v221 = vld [vmem:[%s1 + $0xf8] sm:$0xf]
  %v222 = vld [vmem:[%s1 + $0xfc] sm:$0xf]
  %v223 = vld [vmem:[%s2] sm:$0xf]
  %v224 = vld [vmem:[%s2 + $0x4] sm:$0xf]
  %v225 = vld [vmem:[%s2 + $0x8] sm:$0xf]
  %v226 = vld [vmem:[%s2 + $0xc] sm:$0xf]
  %v227 = vld [vmem:[%s2 + $0x10] sm:$0xf]
  %v228 = vld [vmem:[%s2 + $0x14] sm:$0xf]
  %v229 = vld [vmem:[%s2 + $0x18] sm:$0xf]
  %v230 = vld [vmem:[%s2 + $0x1c] sm:$0xf]
  %v231 = vld [vmem:[%s2 + $0x20] sm:$0xf]
  %v232 = vld [vmem:[%s2 + $0x24] sm:$0xf]
  %v233 = vld [vmem:[%s2 + $0x28] sm:$0xf]
  %v234 = vld [vmem:[%s2 + $0x2c] sm:$0xf]
  %v235 = vld [vmem:[%s2 + $0x30] sm:$0xf]
  %v236 = vld [vmem:[%s2 + $0x34] sm:$0xf]
  %v237 = vld [vmem:[%s2 + $0x38] sm:$0xf]
  %v238 = vld [vmem:[%s2 + $0x3c] sm:$0xf]
  %v303 = vunpack.c.l.b16 %v159
  %v304 = vunpack.c.l.b16 %v160
  %v305 = vunpack.c.l.b16 %v161
  %v306 = vunpack.c.l.b16 %v162
  %v307 = vunpack.c.l.b16 %v163
  %v308 = vunpack.c.l.b16 %v164
  %v309 = vunpack.c.l.b16 %v165
  %v310 = vunpack.c.l.b16 %v166
  %v311 = vunpack.c.l.b16 %v167
  %v312 = vunpack.c.l.b16 %v168
  %v313 = vunpack.c.l.b16 %v169
  %v314 = vunpack.c.l.b16 %v170
  %v315 = vunpack.c.l.b16 %v171
  %v316 = vunpack.c.l.b16 %v172
  %v317 = vunpack.c.l.b16 %v173
  %v318 = vunpack.c.l.b16 %v174
  %v319 = vunpack.c.l.b16 %v175
  %v320 = vunpack.c.l.b16 %v176
  %v321 = vunpack.c.l.b16 %v177
  %v322 = vunpack.c.l.b16 %v178
  %v323 = vunpack.c.l.b16 %v179
  %v324 = vunpack.c.l.b16 %v180
  %v325 = vunpack.c.l.b16 %v181
  %v326 = vunpack.c.l.b16 %v182
  %v327 = vunpack.c.l.b16 %v183
  %v328 = vunpack.c.l.b16 %v184
  %v329 = vunpack.c.l.b16 %v185
  %v330 = vunpack.c.l.b16 %v186
  %v331 = vunpack.c.l.b16 %v187
  %v332 = vunpack.c.l.b16 %v188
  %v333 = vunpack.c.l.b16 %v189
  %v334 = vunpack.c.l.b16 %v190
  %v335 = vunpack.c.l.b16 %v191
  %v336 = vunpack.c.l.b16 %v192
  %v337 = vunpack.c.l.b16 %v193
  %v338 = vunpack.c.l.b16 %v194
  %v339 = vunpack.c.l.b16 %v195
  %v340 = vunpack.c.l.b16 %v196
  %v341 = vunpack.c.l.b16 %v197
  %v342 = vunpack.c.l.b16 %v198
  %v343 = vunpack.c.l.b16 %v199
  %v344 = vunpack.c.l.b16 %v200
  %v345 = vunpack.c.l.b16 %v201
  %v346 = vunpack.c.l.b16 %v202
  %v347 = vunpack.c.l.b16 %v203
  %v348 = vunpack.c.l.b16 %v204
  %v349 = vunpack.c.l.b16 %v205
  %v350 = vunpack.c.l.b16 %v206
  %v351 = vunpack.c.l.b16 %v207
  %v352 = vunpack.c.l.b16 %v208
  %v353 = vunpack.c.l.b16 %v209
  %v354 = vunpack.c.l.b16 %v210
  %v355 = vunpack.c.l.b16 %v211
  %v356 = vunpack.c.l.b16 %v212
  %v357 = vunpack.c.l.b16 %v213
  %v358 = vunpack.c.l.b16 %v214
  %v359 = vunpack.c.l.b16 %v215
  %v360 = vunpack.c.l.b16 %v216
  %v361 = vunpack.c.l.b16 %v217
  %v362 = vunpack.c.l.b16 %v218
  %v363 = vunpack.c.l.b16 %v219
  %v364 = vunpack.c.l.b16 %v220
  %v365 = vunpack.c.l.b16 %v221
  %v366 = vunpack.c.l.b16 %v222
  %v367 = vpack.c.b16 %v304, %v303
  %v368 = vpack.c.b16 %v306, %v305
  %v369 = vpack.c.b16 %v308, %v307
  %v370 = vpack.c.b16 %v310, %v309
  %v371 = vpack.c.b16 %v312, %v311
  %v372 = vpack.c.b16 %v314, %v313
  %v373 = vpack.c.b16 %v316, %v315
  %v374 = vpack.c.b16 %v318, %v317
  %v375 = vpack.c.b16 %v320, %v319
  %v376 = vpack.c.b16 %v322, %v321
  %v377 = vpack.c.b16 %v324, %v323
  %v378 = vpack.c.b16 %v326, %v325
  %v379 = vpack.c.b16 %v328, %v327
  %v380 = vpack.c.b16 %v330, %v329
  %v381 = vpack.c.b16 %v332, %v331
  %v382 = vpack.c.b16 %v334, %v333
  %v383 = vpack.c.b16 %v336, %v335
  %v384 = vpack.c.b16 %v338, %v337
  %v385 = vpack.c.b16 %v340, %v339
  %v386 = vpack.c.b16 %v342, %v341
  %v387 = vpack.c.b16 %v344, %v343
  %v388 = vpack.c.b16 %v346, %v345
  %v389 = vpack.c.b16 %v348, %v347
  %v390 = vpack.c.b16 %v350, %v349
  %v391 = vpack.c.b16 %v352, %v351
  %v392 = vpack.c.b16 %v354, %v353
  %v393 = vpack.c.b16 %v356, %v355
  %v394 = vpack.c.b16 %v358, %v357
  %v395 = vpack.c.b16 %v360, %v359
  %v396 = vpack.c.b16 %v362, %v361
  %v397 = vpack.c.b16 %v364, %v363
  %v398 = vpack.c.b16 %v366, %v365
  %v447 = vunpack.c.l.b16 %v223
  %v448 = vunpack.c.l.b16 %v224
  %v449 = vunpack.c.l.b16 %v225
  %v450 = vunpack.c.l.b16 %v226
  %v451 = vunpack.c.l.b16 %v227
  %v452 = vunpack.c.l.b16 %v228
  %v453 = vunpack.c.l.b16 %v229
  %v454 = vunpack.c.l.b16 %v230
  %v455 = vunpack.c.l.b16 %v231
  %v456 = vunpack.c.l.b16 %v232
  %v457 = vunpack.c.l.b16 %v233
  %v458 = vunpack.c.l.b16 %v234
  %v459 = vunpack.c.l.b16 %v235
  %v460 = vunpack.c.l.b16 %v236
  %v461 = vunpack.c.l.b16 %v237
  %v462 = vunpack.c.l.b16 %v238
  %v463 = vpack.c.b16 %v448, %v447
  %v464 = vpack.c.b16 %v450, %v449
  %v465 = vpack.c.b16 %v452, %v451
  %v466 = vpack.c.b16 %v454, %v453
  %v467 = vpack.c.b16 %v456, %v455
  %v468 = vpack.c.b16 %v458, %v457
  %v469 = vpack.c.b16 %v460, %v459
  %v470 = vpack.c.b16 %v462, %v461
  %479 = vmatprep.subr.bf16.mxu0 0
  %480 = vmatpush1.bf16.msra.mxu0 %v470
  %481 = vmatprep.subr.bf16.mxu0 0
  %482 = vmatpush1.bf16.msra.mxu0 %v469
  %483 = vmatprep.subr.bf16.mxu0 0
  %484 = vmatpush1.bf16.msra.mxu0 %v468
  %485 = vmatprep.subr.bf16.mxu0 0
  %486 = vmatpush1.bf16.msra.mxu0 %v467
  %487 = vmatprep.subr.bf16.mxu0 0
  %488 = vmatpush1.bf16.msra.mxu0 %v466
  %489 = vmatprep.subr.bf16.mxu0 0
  %490 = vmatpush1.bf16.msra.mxu0 %v465
  %491 = vmatprep.subr.bf16.mxu0 0
  %492 = vmatpush1.bf16.msra.mxu0 %v464
  %493 = vmatprep.subr.bf16.mxu0 0
  %494 = vmatpush1.bf16.msra.mxu0 %v463
  %495 = vmatprep.subr.bf16.mxu0 0
  %496 = vmatpush2.bf16.msra.mxu0 0
  %497 = vmatprep.subr.bf16.mxu0 0
  %498 = vmatpush2.bf16.msra.mxu0 0
  %499 = vmatprep.subr.bf16.mxu0 0
  %500 = vmatpush2.bf16.msra.mxu0 0
  %501 = vmatprep.subr.bf16.mxu0 0
  %502 = vmatpush2.bf16.msra.mxu0 0
  %503 = vmatprep.subr.bf16.mxu0 0
  %504 = vmatpush2.bf16.msra.mxu0 0
  %505 = vmatprep.subr.bf16.mxu0 0
  %506 = vmatpush2.bf16.msra.mxu0 0
  %507 = vmatprep.subr.bf16.mxu0 0
  %508 = vmatpush2.bf16.msra.mxu0 0
  %509 = vmatprep.subr.bf16.mxu0 0
  %510 = vmatpush2.bf16.msra.mxu0 0
  %511 = vmatprep.mubr.bf16.mxu0 0
  %512 = vmatmul.mubr.bf16.gmra.mxu0 %v367
  %v513 = vpop.f32.mrf.mxu0
  %v514 = vadd.f32 0.0, %v513
  %v515 = vpop.f32.mrf.mxu0
  %v516 = vpop.f32.mrf.mxu0
  %v517 = vadd.f32 0.0, %v516
  %v518 = vpop.f32.mrf.mxu0
  %519 = vmatprep.mubr.bf16.mxu0 0
  %520 = vmatmul.mubr.bf16.gmra.mxu0 %v368
  %v521 = vpop.f32.mrf.mxu0
  %v522 = vadd.f32 0.0, %v521
  %v523 = vpop.f32.mrf.mxu0
  %v524 = vpop.f32.mrf.mxu0
  %v525 = vadd.f32 0.0, %v524
  %v526 = vpop.f32.mrf.mxu0
  %527 = vmatprep.mubr.bf16.mxu0 0
  %528 = vmatmul.mubr.bf16.gmra.mxu0 %v369
  %v529 = vpop.f32.mrf.mxu0
  %v530 = vadd.f32 0.0, %v529
  %v531 = vpop.f32.mrf.mxu0
  %v532 = vpop.f32.mrf.mxu0
  %v533 = vadd.f32 0.0, %v532
  %v534 = vpop.f32.mrf.mxu0
  %535 = vmatprep.mubr.bf16.mxu0 0
  %536 = vmatmul.mubr.bf16.gmra.mxu0 %v370
  %v537 = vpop.f32.mrf.mxu0
  %v538 = vadd.f32 0.0, %v537
  %v539 = vpop.f32.mrf.mxu0
  %v540 = vpop.f32.mrf.mxu0
  %v541 = vadd.f32 0.0, %v540
  %v542 = vpop.f32.mrf.mxu0
  %543 = vmatprep.mubr.bf16.mxu0 0
  %544 = vmatmul.mubr.bf16.gmra.mxu0 %v371
  %v545 = vpop.f32.mrf.mxu0
  %v546 = vadd.f32 0.0, %v545
  %v547 = vpop.f32.mrf.mxu0
  %v548 = vpop.f32.mrf.mxu0
  %v549 = vadd.f32 0.0, %v548
  %v550 = vpop.f32.mrf.mxu0
  %551 = vmatprep.mubr.bf16.mxu0 0
  %552 = vmatmul.mubr.bf16.gmra.mxu0 %v372
  %v553 = vpop.f32.mrf.mxu0
  %v554 = vadd.f32 0.0, %v553
  %v555 = vpop.f32.mrf.mxu0
  %v556 = vpop.f32.mrf.mxu0
  %v557 = vadd.f32 0.0, %v556
  %v558 = vpop.f32.mrf.mxu0
  %559 = vmatprep.mubr.bf16.mxu0 0
  %560 = vmatmul.mubr.bf16.gmra.mxu0 %v373
  %v561 = vpop.f32.mrf.mxu0
  %v562 = vadd.f32 0.0, %v561
  %v563 = vpop.f32.mrf.mxu0
  %v564 = vpop.f32.mrf.mxu0
  %v565 = vadd.f32 0.0, %v564
  %v566 = vpop.f32.mrf.mxu0
  %567 = vmatprep.mubr.bf16.mxu0 0
  %568 = vmatmul.mubr.bf16.gmra.mxu0 %v374
  %v569 = vpop.f32.mrf.mxu0
  %v570 = vadd.f32 0.0, %v569
  %v571 = vpop.f32.mrf.mxu0
  %v572 = vpop.f32.mrf.mxu0
  %v573 = vadd.f32 0.0, %v572
  %v574 = vpop.f32.mrf.mxu0
  %575 = vmatprep.mubr.bf16.mxu0 0
  %576 = vmatmul.mubr.bf16.gmra.mxu0 %v375
  %v577 = vpop.f32.mrf.mxu0
  %v578 = vadd.f32 0.0, %v577
  %v579 = vpop.f32.mrf.mxu0
  %v580 = vpop.f32.mrf.mxu0
  %v581 = vadd.f32 0.0, %v580
  %v582 = vpop.f32.mrf.mxu0
  %583 = vmatprep.mubr.bf16.mxu0 0
  %584 = vmatmul.mubr.bf16.gmra.mxu0 %v376
  %v585 = vpop.f32.mrf.mxu0
  %v586 = vadd.f32 0.0, %v585
  %v587 = vpop.f32.mrf.mxu0
  %v588 = vpop.f32.mrf.mxu0
  %v589 = vadd.f32 0.0, %v588
  %v590 = vpop.f32.mrf.mxu0
  %591 = vmatprep.mubr.bf16.mxu0 0
  %592 = vmatmul.mubr.bf16.gmra.mxu0 %v377
  %v593 = vpop.f32.mrf.mxu0
  %v594 = vadd.f32 0.0, %v593
  %v595 = vpop.f32.mrf.mxu0
  %v596 = vpop.f32.mrf.mxu0
  %v597 = vadd.f32 0.0, %v596
  %v598 = vpop.f32.mrf.mxu0
  %599 = vmatprep.mubr.bf16.mxu0 0
  %600 = vmatmul.mubr.bf16.gmra.mxu0 %v378
  %v601 = vpop.f32.mrf.mxu0
  %v602 = vadd.f32 0.0, %v601
  %v603 = vpop.f32.mrf.mxu0
  %v604 = vpop.f32.mrf.mxu0
  %v605 = vadd.f32 0.0, %v604
  %v606 = vpop.f32.mrf.mxu0
  %607 = vmatprep.mubr.bf16.mxu0 0
  %608 = vmatmul.mubr.bf16.gmra.mxu0 %v379
  %v609 = vpop.f32.mrf.mxu0
  %v610 = vadd.f32 0.0, %v609
  %v611 = vpop.f32.mrf.mxu0
  %v612 = vpop.f32.mrf.mxu0
  %v613 = vadd.f32 0.0, %v612
  %v614 = vpop.f32.mrf.mxu0
  %615 = vmatprep.mubr.bf16.mxu0 0
  %616 = vmatmul.mubr.bf16.gmra.mxu0 %v380
  %v617 = vpop.f32.mrf.mxu0
  %v618 = vadd.f32 0.0, %v617
  %v619 = vpop.f32.mrf.mxu0
  %v620 = vpop.f32.mrf.mxu0
  %v621 = vadd.f32 0.0, %v620
  %v622 = vpop.f32.mrf.mxu0
  %623 = vmatprep.mubr.bf16.mxu0 0
  %624 = vmatmul.mubr.bf16.gmra.mxu0 %v381
  %v625 = vpop.f32.mrf.mxu0
  %v626 = vadd.f32 0.0, %v625
  %v627 = vpop.f32.mrf.mxu0
  %v628 = vpop.f32.mrf.mxu0
  %v629 = vadd.f32 0.0, %v628
  %v630 = vpop.f32.mrf.mxu0
  %631 = vmatprep.mubr.bf16.mxu0 0
  %632 = vmatmul.mubr.bf16.gmra.mxu0 %v382
  %v633 = vpop.f32.mrf.mxu0
  %v634 = vadd.f32 0.0, %v633
  %v635 = vpop.f32.mrf.mxu0
  %v636 = vpop.f32.mrf.mxu0
  %v637 = vadd.f32 0.0, %v636
  %v638 = vpop.f32.mrf.mxu0
  %639 = vmatprep.mubr.bf16.mxu0 0
  %640 = vmatmul.mubr.bf16.gmra.mxu0 %v383
  %v641 = vpop.f32.mrf.mxu0
  %v642 = vadd.f32 0.0, %v641
  %v643 = vpop.f32.mrf.mxu0
  %v644 = vpop.f32.mrf.mxu0
  %v645 = vadd.f32 0.0, %v644
  %v646 = vpop.f32.mrf.mxu0
  %647 = vmatprep.mubr.bf16.mxu0 0
  %648 = vmatmul.mubr.bf16.gmra.mxu0 %v384
  %v649 = vpop.f32.mrf.mxu0
  %v650 = vadd.f32 0.0, %v649
  %v651 = vpop.f32.mrf.mxu0
  %v652 = vpop.f32.mrf.mxu0
  %v653 = vadd.f32 0.0, %v652
  %v654 = vpop.f32.mrf.mxu0
  %655 = vmatprep.mubr.bf16.mxu0 0
  %656 = vmatmul.mubr.bf16.gmra.mxu0 %v385
  %v657 = vpop.f32.mrf.mxu0
  %v658 = vadd.f32 0.0, %v657
  %v659 = vpop.f32.mrf.mxu0
  %v660 = vpop.f32.mrf.mxu0
  %v661 = vadd.f32 0.0, %v660
  %v662 = vpop.f32.mrf.mxu0
  %663 = vmatprep.mubr.bf16.mxu0 0
  %664 = vmatmul.mubr.bf16.gmra.mxu0 %v386
  %v665 = vpop.f32.mrf.mxu0
  %v666 = vadd.f32 0.0, %v665
  %v667 = vpop.f32.mrf.mxu0
  %v668 = vpop.f32.mrf.mxu0
  %v669 = vadd.f32 0.0, %v668
  %v670 = vpop.f32.mrf.mxu0
  %671 = vmatprep.mubr.bf16.mxu0 0
  %672 = vmatmul.mubr.bf16.gmra.mxu0 %v387
  %v673 = vpop.f32.mrf.mxu0
  %v674 = vadd.f32 0.0, %v673
  %v675 = vpop.f32.mrf.mxu0
  %v676 = vpop.f32.mrf.mxu0
  %v677 = vadd.f32 0.0, %v676
  %v678 = vpop.f32.mrf.mxu0
  %679 = vmatprep.mubr.bf16.mxu0 0
  %680 = vmatmul.mubr.bf16.gmra.mxu0 %v388
  %v681 = vpop.f32.mrf.mxu0
  %v682 = vadd.f32 0.0, %v681
  %v683 = vpop.f32.mrf.mxu0
  %v684 = vpop.f32.mrf.mxu0
  %v685 = vadd.f32 0.0, %v684
  %v686 = vpop.f32.mrf.mxu0
  %687 = vmatprep.mubr.bf16.mxu0 0
  %688 = vmatmul.mubr.bf16.gmra.mxu0 %v389
  %v689 = vpop.f32.mrf.mxu0
  %v690 = vadd.f32 0.0, %v689
  %v691 = vpop.f32.mrf.mxu0
  %v692 = vpop.f32.mrf.mxu0
  %v693 = vadd.f32 0.0, %v692
  %v694 = vpop.f32.mrf.mxu0
  %695 = vmatprep.mubr.bf16.mxu0 0
  %696 = vmatmul.mubr.bf16.gmra.mxu0 %v390
  %v697 = vpop.f32.mrf.mxu0
  %v698 = vadd.f32 0.0, %v697
  %v699 = vpop.f32.mrf.mxu0
  %v700 = vpop.f32.mrf.mxu0
  %v701 = vadd.f32 0.0, %v700
  %v702 = vpop.f32.mrf.mxu0
  %703 = vmatprep.mubr.bf16.mxu0 0
  %704 = vmatmul.mubr.bf16.gmra.mxu0 %v391
  %v705 = vpop.f32.mrf.mxu0
  %v706 = vadd.f32 0.0, %v705
  %v707 = vpop.f32.mrf.mxu0
  %v708 = vpop.f32.mrf.mxu0
  %v709 = vadd.f32 0.0, %v708
  %v710 = vpop.f32.mrf.mxu0
  %711 = vmatprep.mubr.bf16.mxu0 0
  %712 = vmatmul.mubr.bf16.gmra.mxu0 %v392
  %v713 = vpop.f32.mrf.mxu0
  %v714 = vadd.f32 0.0, %v713
  %v715 = vpop.f32.mrf.mxu0
  %v716 = vpop.f32.mrf.mxu0
  %v717 = vadd.f32 0.0, %v716
  %v718 = vpop.f32.mrf.mxu0
  %719 = vmatprep.mubr.bf16.mxu0 0
  %720 = vmatmul.mubr.bf16.gmra.mxu0 %v393
  %v721 = vpop.f32.mrf.mxu0
  %v722 = vadd.f32 0.0, %v721
  %v723 = vpop.f32.mrf.mxu0
  %v724 = vpop.f32.mrf.mxu0
  %v725 = vadd.f32 0.0, %v724
  %v726 = vpop.f32.mrf.mxu0
  %727 = vmatprep.mubr.bf16.mxu0 0
  %728 = vmatmul.mubr.bf16.gmra.mxu0 %v394
  %v729 = vpop.f32.mrf.mxu0
  %v730 = vadd.f32 0.0, %v729
  %v731 = vpop.f32.mrf.mxu0
  %v732 = vpop.f32.mrf.mxu0
  %v733 = vadd.f32 0.0, %v732
  %v734 = vpop.f32.mrf.mxu0
  %735 = vmatprep.mubr.bf16.mxu0 0
  %736 = vmatmul.mubr.bf16.gmra.mxu0 %v395
  %v737 = vpop.f32.mrf.mxu0
  %v738 = vadd.f32 0.0, %v737
  %v739 = vpop.f32.mrf.mxu0
  %v740 = vpop.f32.mrf.mxu0
  %v741 = vadd.f32 0.0, %v740
  %v742 = vpop.f32.mrf.mxu0
  %743 = vmatprep.mubr.bf16.mxu0 0
  %744 = vmatmul.mubr.bf16.gmra.mxu0 %v396
  %v745 = vpop.f32.mrf.mxu0
  %v746 = vadd.f32 0.0, %v745
  %v747 = vpop.f32.mrf.mxu0
  %v748 = vpop.f32.mrf.mxu0
  %v749 = vadd.f32 0.0, %v748
  %v750 = vpop.f32.mrf.mxu0
  %751 = vmatprep.mubr.bf16.mxu0 0
  %752 = vmatmul.mubr.bf16.gmra.mxu0 %v397
  %v753 = vpop.f32.mrf.mxu0
  %v754 = vadd.f32 0.0, %v753
  %v755 = vpop.f32.mrf.mxu0
  %v756 = vpop.f32.mrf.mxu0
  %v757 = vadd.f32 0.0, %v756
  %v758 = vpop.f32.mrf.mxu0
  %759 = vmatprep.mubr.bf16.mxu0 0
  %760 = vmatmul.mubr.bf16.gmra.mxu0 %v398
  %v761 = vpop.f32.mrf.mxu0
  %v762 = vadd.f32 0.0, %v761
  %v763 = vpop.f32.mrf.mxu0
  %v764 = vpop.f32.mrf.mxu0
  %v765 = vadd.f32 0.0, %v764
  %v766 = vpop.f32.mrf.mxu0
  %767 = vdwg.mxu0
  %v768 = vpack.c.bf16 %v517, %v514
  %v769 = vpack.c.bf16 %v525, %v522
  %v770 = vpack.c.bf16 %v533, %v530
  %v771 = vpack.c.bf16 %v541, %v538
  %v772 = vpack.c.bf16 %v549, %v546
  %v773 = vpack.c.bf16 %v557, %v554
  %v774 = vpack.c.bf16 %v565, %v562
  %v775 = vpack.c.bf16 %v573, %v570
  %v776 = vpack.c.bf16 %v581, %v578
  %v777 = vpack.c.bf16 %v589, %v586
  %v778 = vpack.c.bf16 %v597, %v594
  %v779 = vpack.c.bf16 %v605, %v602
  %v780 = vpack.c.bf16 %v613, %v610
  %v781 = vpack.c.bf16 %v621, %v618
  %v782 = vpack.c.bf16 %v629, %v626
  %v783 = vpack.c.bf16 %v637, %v634
  %v784 = vpack.c.bf16 %v645, %v642
  %v785 = vpack.c.bf16 %v653, %v650
  %v786 = vpack.c.bf16 %v661, %v658
  %v787 = vpack.c.bf16 %v669, %v666
  %v788 = vpack.c.bf16 %v677, %v674
  %v789 = vpack.c.bf16 %v685, %v682
  %v790 = vpack.c.bf16 %v693, %v690
  %v791 = vpack.c.bf16 %v701, %v698
  %v792 = vpack.c.bf16 %v709, %v706
  %v793 = vpack.c.bf16 %v717, %v714
  %v794 = vpack.c.bf16 %v725, %v722
  %v795 = vpack.c.bf16 %v733, %v730
  %v796 = vpack.c.bf16 %v741, %v738
  %v797 = vpack.c.bf16 %v749, %v746
  %v798 = vpack.c.bf16 %v757, %v754
  %v799 = vpack.c.bf16 %v765, %v762
  loop: start=0, step=1, limit=4
  $region83: #{gcn_model_forward.3} parent=0 // loop_pre_header
    _
  $region84: #{gcn_model_forward.3} parent=0 // loop_header
    %s801 = sphi 0, %s805
    %p802 = scmp.ge.s32.totalorder %s801, 4
  $region85: #{gcn_model_forward.3} parent=0 // loop_header_branch
    %804 = sbr.rel (%p802) target = $region89
  $region86: #{gcn_model_forward.3} parent=0 // loop_body
    %s806 = smul.u32 %s801, 128
    %s807 = sshra.s32 %s806, 3
    %s808 = sand.u32 %s806, 7
    %s809 = smul.u32 %s807, 4
    %s810 = smul.addr %s809, 4
    %s811 = scalar_lea.vmem [#allocation2], %s810
    %s812 = scalar_lea.sflag [#allocation5], %s801
    %s813 = smul.u32 4, 16
    %s814 = smul.u32 %s813, 4
    %s815 = sshll.u32 %s814, 4
    %816 = dma.done %s812, %s815
    %v817 = vld [vmem:[%s811] sm:$0xff]
    %v818 = vld [vmem:[%s811 + $0x8] sm:$0xff]
    %v819 = vld [vmem:[%s811 + $0x10] sm:$0xff]
    %v820 = vld [vmem:[%s811 + $0x18] sm:$0xff]
    %v821 = vld [vmem:[%s811 + $0x20] sm:$0xff]
    %v822 = vld [vmem:[%s811 + $0x28] sm:$0xff]
    %v823 = vld [vmem:[%s811 + $0x30] sm:$0xff]
    %v824 = vld [vmem:[%s811 + $0x38] sm:$0xff]
    %v825 = vld [vmem:[%s811 + $0x40] sm:$0xff]
    %v826 = vld [vmem:[%s811 + $0x48] sm:$0xff]
    %v827 = vld [vmem:[%s811 + $0x50] sm:$0xff]
    %v828 = vld [vmem:[%s811 + $0x58] sm:$0xff]
    %v829 = vld [vmem:[%s811 + $0x60] sm:$0xff]
    %v830 = vld [vmem:[%s811 + $0x68] sm:$0xff]
    %v831 = vld [vmem:[%s811 + $0x70] sm:$0xff]
    %v832 = vld [vmem:[%s811 + $0x78] sm:$0xff]
    %v833 = vld [vmem:[%s811 + $0x80] sm:$0xff]
    %v834 = vld [vmem:[%s811 + $0x88] sm:$0xff]
    %v835 = vld [vmem:[%s811 + $0x90] sm:$0xff]
    %v836 = vld [vmem:[%s811 + $0x98] sm:$0xff]
    %v837 = vld [vmem:[%s811 + $0xa0] sm:$0xff]
    %v838 = vld [vmem:[%s811 + $0xa8] sm:$0xff]
    %v839 = vld [vmem:[%s811 + $0xb0] sm:$0xff]
    %v840 = vld [vmem:[%s811 + $0xb8] sm:$0xff]
    %v841 = vld [vmem:[%s811 + $0xc0] sm:$0xff]
    %v842 = vld [vmem:[%s811 + $0xc8] sm:$0xff]
    %v843 = vld [vmem:[%s811 + $0xd0] sm:$0xff]
    %v844 = vld [vmem:[%s811 + $0xd8] sm:$0xff]
    %v845 = vld [vmem:[%s811 + $0xe0] sm:$0xff]
    %v846 = vld [vmem:[%s811 + $0xe8] sm:$0xff]
    %v847 = vld [vmem:[%s811 + $0xf0] sm:$0xff]
    %v848 = vld [vmem:[%s811 + $0xf8] sm:$0xff]
    %v849 = vld [vmem:[%s3] sm:$0x1]
    %v851 = vlaneseq
    %v852 = vshrl.u32 %v851, 7
    %v853 = vsub.s32 0, %v852
    %v854 = vrot.slane %v849, %v853
    %v888 = vunpack.c.l.b16 %v817
    %v889 = vunpack.c.h.b16 %v817
    %v890 = vunpack.c.l.b16 %v818
    %v891 = vunpack.c.h.b16 %v818
    %v892 = vunpack.c.l.b16 %v819
    %v893 = vunpack.c.h.b16 %v819
    %v894 = vunpack.c.l.b16 %v820
    %v895 = vunpack.c.h.b16 %v820
    %v896 = vunpack.c.l.b16 %v821
    %v897 = vunpack.c.h.b16 %v821
    %v898 = vunpack.c.l.b16 %v822
    %v899 = vunpack.c.h.b16 %v822
    %v900 = vunpack.c.l.b16 %v823
    %v901 = vunpack.c.h.b16 %v823
    %v902 = vunpack.c.l.b16 %v824
    %v903 = vunpack.c.h.b16 %v824
    %v904 = vunpack.c.l.b16 %v825
    %v905 = vunpack.c.h.b16 %v825
    %v906 = vunpack.c.l.b16 %v826
    %v907 = vunpack.c.h.b16 %v826
    %v908 = vunpack.c.l.b16 %v827
    %v909 = vunpack.c.h.b16 %v827
    %v910 = vunpack.c.l.b16 %v828
    %v911 = vunpack.c.h.b16 %v828
    %v912 = vunpack.c.l.b16 %v829
    %v913 = vunpack.c.h.b16 %v829
    %v914 = vunpack.c.l.b16 %v830
    %v915 = vunpack.c.h.b16 %v830
    %v916 = vunpack.c.l.b16 %v831
    %v917 = vunpack.c.h.b16 %v831
    %v918 = vunpack.c.l.b16 %v832
    %v919 = vunpack.c.h.b16 %v832
    %v920 = vunpack.c.l.b16 %v833
    %v921 = vunpack.c.h.b16 %v833
    %v922 = vunpack.c.l.b16 %v834
    %v923 = vunpack.c.h.b16 %v834
    %v924 = vunpack.c.l.b16 %v835
    %v925 = vunpack.c.h.b16 %v835
    %v926 = vunpack.c.l.b16 %v836
    %v927 = vunpack.c.h.b16 %v836
    %v928 = vunpack.c.l.b16 %v837
    %v929 = vunpack.c.h.b16 %v837
    %v930 = vunpack.c.l.b16 %v838
    %v931 = vunpack.c.h.b16 %v838
    %v932 = vunpack.c.l.b16 %v839
    %v933 = vunpack.c.h.b16 %v839
    %v934 = vunpack.c.l.b16 %v840
    %v935 = vunpack.c.h.b16 %v840
    %v936 = vunpack.c.l.b16 %v841
    %v937 = vunpack.c.h.b16 %v841
    %v938 = vunpack.c.l.b16 %v842
    %v939 = vunpack.c.h.b16 %v842
    %v940 = vunpack.c.l.b16 %v843
    %v941 = vunpack.c.h.b16 %v843
    %v942 = vunpack.c.l.b16 %v844
    %v943 = vunpack.c.h.b16 %v844
    %v944 = vunpack.c.l.b16 %v845
    %v945 = vunpack.c.h.b16 %v845
    %v946 = vunpack.c.l.b16 %v846
    %v947 = vunpack.c.h.b16 %v846
    %v948 = vunpack.c.l.b16 %v847
    %v949 = vunpack.c.h.b16 %v847
    %v950 = vunpack.c.l.b16 %v848
    %v951 = vunpack.c.h.b16 %v848
    %v952 = vpack.c.b16 %v892, %v888
    %v953 = vpack.c.b16 %v893, %v889
    %v954 = vpack.c.b16 %v894, %v890
    %v955 = vpack.c.b16 %v895, %v891
    %v956 = vpack.c.b16 %v900, %v896
    %v957 = vpack.c.b16 %v901, %v897
    %v958 = vpack.c.b16 %v902, %v898
    %v959 = vpack.c.b16 %v903, %v899
    %v960 = vpack.c.b16 %v908, %v904
    %v961 = vpack.c.b16 %v909, %v905
    %v962 = vpack.c.b16 %v910, %v906
    %v963 = vpack.c.b16 %v911, %v907
    %v964 = vpack.c.b16 %v916, %v912
    %v965 = vpack.c.b16 %v917, %v913
    %v966 = vpack.c.b16 %v918, %v914
    %v967 = vpack.c.b16 %v919, %v915
    %v968 = vpack.c.b16 %v924, %v920
    %v969 = vpack.c.b16 %v925, %v921
    %v970 = vpack.c.b16 %v926, %v922
    %v971 = vpack.c.b16 %v927, %v923
    %v972 = vpack.c.b16 %v932, %v928
    %v973 = vpack.c.b16 %v933, %v929
    %v974 = vpack.c.b16 %v934, %v930
    %v975 = vpack.c.b16 %v935, %v931
    %v976 = vpack.c.b16 %v940, %v936
    %v977 = vpack.c.b16 %v941, %v937
    %v978 = vpack.c.b16 %v942, %v938
    %v979 = vpack.c.b16 %v943, %v939
    %v980 = vpack.c.b16 %v948, %v944
    %v981 = vpack.c.b16 %v949, %v945
    %v982 = vpack.c.b16 %v950, %v946
    %v983 = vpack.c.b16 %v951, %v947
    %1016 = vmatprep.subr.bf16.mxu0 0
    %1017 = vmatpush1.bf16.msra.mxu0 %v775
    %1018 = vmatprep.subr.bf16.mxu0 0
    %1019 = vmatpush1.bf16.msra.mxu0 %v774
    %1020 = vmatprep.subr.bf16.mxu0 0
    %1021 = vmatpush1.bf16.msra.mxu0 %v773
    %1022 = vmatprep.subr.bf16.mxu0 0
    %1023 = vmatpush1.bf16.msra.mxu0 %v772
    %1024 = vmatprep.subr.bf16.mxu0 0
    %1025 = vmatpush1.bf16.msra.mxu0 %v771
    %1026 = vmatprep.subr.bf16.mxu0 0
    %1027 = vmatpush1.bf16.msra.mxu0 %v770
    %1028 = vmatprep.subr.bf16.mxu0 0
    %1029 = vmatpush1.bf16.msra.mxu0 %v769
    %1030 = vmatprep.subr.bf16.mxu0 0
    %1031 = vmatpush1.bf16.msra.mxu0 %v768
    %1032 = vmatprep.subr.bf16.mxu0 0
    %1033 = vmatpush2.bf16.msra.mxu0 %v783
    %1034 = vmatprep.subr.bf16.mxu0 0
    %1035 = vmatpush2.bf16.msra.mxu0 %v782
    %1036 = vmatprep.subr.bf16.mxu0 0
    %1037 = vmatpush2.bf16.msra.mxu0 %v781
    %1038 = vmatprep.subr.bf16.mxu0 0
    %1039 = vmatpush2.bf16.msra.mxu0 %v780
    %1040 = vmatprep.subr.bf16.mxu0 0
    %1041 = vmatpush2.bf16.msra.mxu0 %v779
    %1042 = vmatprep.subr.bf16.mxu0 0
    %1043 = vmatpush2.bf16.msra.mxu0 %v778
    %1044 = vmatprep.subr.bf16.mxu0 0
    %1045 = vmatpush2.bf16.msra.mxu0 %v777
    %1046 = vmatprep.subr.bf16.mxu0 0
    %1047 = vmatpush2.bf16.msra.mxu0 %v776
    %1048 = vmatprep.mubr.bf16.mxu0 %v953
    %1049 = vmatmul.mubr.bf16.gmra.mxu0 %v952
    %v1050 = vpop.f32.mrf.mxu0
    %v1051 = vadd.f32 %v854, %v1050
    %v1052 = vpop.f32.mrf.mxu0
    %v1053 = vpop.f32.mrf.mxu0
    %v1054 = vadd.f32 %v854, %v1053
    %v1055 = vpop.f32.mrf.mxu0
    %1056 = vmatprep.mubr.bf16.mxu0 %v957
    %1057 = vmatmul.mubr.bf16.gmra.mxu0 %v956
    %v1058 = vpop.f32.mrf.mxu0
    %v1059 = vadd.f32 %v854, %v1058
    %v1060 = vpop.f32.mrf.mxu0
    %v1061 = vpop.f32.mrf.mxu0
    %v1062 = vadd.f32 %v854, %v1061
    %v1063 = vpop.f32.mrf.mxu0
    %1064 = vmatprep.mubr.bf16.mxu0 %v961
    %1065 = vmatmul.mubr.bf16.gmra.mxu0 %v960
    %v1066 = vpop.f32.mrf.mxu0
    %v1067 = vadd.f32 %v854, %v1066
    %v1068 = vpop.f32.mrf.mxu0
    %v1069 = vpop.f32.mrf.mxu0
    %v1070 = vadd.f32 %v854, %v1069
    %v1071 = vpop.f32.mrf.mxu0
    %1072 = vmatprep.mubr.bf16.mxu0 %v965
    %1073 = vmatmul.mubr.bf16.gmra.mxu0 %v964
    %v1074 = vpop.f32.mrf.mxu0
    %v1075 = vadd.f32 %v854, %v1074
    %v1076 = vpop.f32.mrf.mxu0
    %v1077 = vpop.f32.mrf.mxu0
    %v1078 = vadd.f32 %v854, %v1077
    %v1079 = vpop.f32.mrf.mxu0
    %1080 = vmatprep.mubr.bf16.mxu0 %v969
    %1081 = vmatmul.mubr.bf16.gmra.mxu0 %v968
    %v1082 = vpop.f32.mrf.mxu0
    %v1083 = vadd.f32 %v854, %v1082
    %v1084 = vpop.f32.mrf.mxu0
    %v1085 = vpop.f32.mrf.mxu0
    %v1086 = vadd.f32 %v854, %v1085
    %v1087 = vpop.f32.mrf.mxu0
    %1088 = vmatprep.mubr.bf16.mxu0 %v973
    %1089 = vmatmul.mubr.bf16.gmra.mxu0 %v972
    %v1090 = vpop.f32.mrf.mxu0
    %v1091 = vadd.f32 %v854, %v1090
    %v1092 = vpop.f32.mrf.mxu0
    %v1093 = vpop.f32.mrf.mxu0
    %v1094 = vadd.f32 %v854, %v1093
    %v1095 = vpop.f32.mrf.mxu0
    %1096 = vmatprep.mubr.bf16.mxu0 %v977
    %1097 = vmatmul.mubr.bf16.gmra.mxu0 %v976
    %v1098 = vpop.f32.mrf.mxu0
    %v1099 = vadd.f32 %v854, %v1098
    %v1100 = vpop.f32.mrf.mxu0
    %v1101 = vpop.f32.mrf.mxu0
    %v1102 = vadd.f32 %v854, %v1101
    %v1103 = vpop.f32.mrf.mxu0
    %1104 = vmatprep.mubr.bf16.mxu0 %v981
    %1105 = vmatmul.mubr.bf16.gmra.mxu0 %v980
    %v1106 = vpop.f32.mrf.mxu0
    %v1107 = vadd.f32 %v854, %v1106
    %v1108 = vpop.f32.mrf.mxu0
    %v1109 = vpop.f32.mrf.mxu0
    %v1110 = vadd.f32 %v854, %v1109
    %v1111 = vpop.f32.mrf.mxu0
    %1112 = vdwg.mxu0
    %1113 = vmatprep.subr.bf16.mxu0 0
    %1114 = vmatpush1.bf16.msra.mxu0 %v791
    %1115 = vmatprep.subr.bf16.mxu0 0
    %1116 = vmatpush1.bf16.msra.mxu0 %v790
    %1117 = vmatprep.subr.bf16.mxu0 0
    %1118 = vmatpush1.bf16.msra.mxu0 %v789
    %1119 = vmatprep.subr.bf16.mxu0 0
    %1120 = vmatpush1.bf16.msra.mxu0 %v788
    %1121 = vmatprep.subr.bf16.mxu0 0
    %1122 = vmatpush1.bf16.msra.mxu0 %v787
    %1123 = vmatprep.subr.bf16.mxu0 0
    %1124 = vmatpush1.bf16.msra.mxu0 %v786
    %1125 = vmatprep.subr.bf16.mxu0 0
    %1126 = vmatpush1.bf16.msra.mxu0 %v785
    %1127 = vmatprep.subr.bf16.mxu0 0
    %1128 = vmatpush1.bf16.msra.mxu0 %v784
    %1129 = vmatprep.subr.bf16.mxu0 0
    %1130 = vmatpush2.bf16.msra.mxu0 %v799
    %1131 = vmatprep.subr.bf16.mxu0 0
    %1132 = vmatpush2.bf16.msra.mxu0 %v798
    %1133 = vmatprep.subr.bf16.mxu0 0
    %1134 = vmatpush2.bf16.msra.mxu0 %v797
    %1135 = vmatprep.subr.bf16.mxu0 0
    %1136 = vmatpush2.bf16.msra.mxu0 %v796
    %1137 = vmatprep.subr.bf16.mxu0 0
    %1138 = vmatpush2.bf16.msra.mxu0 %v795
    %1139 = vmatprep.subr.bf16.mxu0 0
    %1140 = vmatpush2.bf16.msra.mxu0 %v794
    %1141 = vmatprep.subr.bf16.mxu0 0
    %1142 = vmatpush2.bf16.msra.mxu0 %v793
    %1143 = vmatprep.subr.bf16.mxu0 0
    %1144 = vmatpush2.bf16.msra.mxu0 %v792
    %1145 = vmatprep.mubr.bf16.mxu0 %v955
    %1146 = vmatmul.mubr.bf16.gmra.mxu0 %v954
    %v1147 = vpop.f32.mrf.mxu0
    %v1148 = vadd.f32 %v1051, %v1147
    %v1149 = vpop.f32.mrf.mxu0
    %v1150 = vpop.f32.mrf.mxu0
    %v1151 = vadd.f32 %v1054, %v1150
    %v1152 = vpop.f32.mrf.mxu0
    %1153 = vmatprep.mubr.bf16.mxu0 %v959
    %1154 = vmatmul.mubr.bf16.gmra.mxu0 %v958
    %v1155 = vpop.f32.mrf.mxu0
    %v1156 = vadd.f32 %v1059, %v1155
    %v1157 = vpop.f32.mrf.mxu0
    %v1158 = vpop.f32.mrf.mxu0
    %v1159 = vadd.f32 %v1062, %v1158
    %v1160 = vpop.f32.mrf.mxu0
    %1161 = vmatprep.mubr.bf16.mxu0 %v963
    %1162 = vmatmul.mubr.bf16.gmra.mxu0 %v962
    %v1163 = vpop.f32.mrf.mxu0
    %v1164 = vadd.f32 %v1067, %v1163
    %v1165 = vpop.f32.mrf.mxu0
    %v1166 = vpop.f32.mrf.mxu0
    %v1167 = vadd.f32 %v1070, %v1166
    %v1168 = vpop.f32.mrf.mxu0
    %1169 = vmatprep.mubr.bf16.mxu0 %v967
    %1170 = vmatmul.mubr.bf16.gmra.mxu0 %v966
    %v1171 = vpop.f32.mrf.mxu0
    %v1172 = vadd.f32 %v1075, %v1171
    %v1173 = vpop.f32.mrf.mxu0
    %v1174 = vpop.f32.mrf.mxu0
    %v1175 = vadd.f32 %v1078, %v1174
    %v1176 = vpop.f32.mrf.mxu0
    %1177 = vmatprep.mubr.bf16.mxu0 %v971
    %1178 = vmatmul.mubr.bf16.gmra.mxu0 %v970
    %v1179 = vpop.f32.mrf.mxu0
    %v1180 = vadd.f32 %v1083, %v1179
    %v1181 = vpop.f32.mrf.mxu0
    %v1182 = vpop.f32.mrf.mxu0
    %v1183 = vadd.f32 %v1086, %v1182
    %v1184 = vpop.f32.mrf.mxu0
    %1185 = vmatprep.mubr.bf16.mxu0 %v975
    %1186 = vmatmul.mubr.bf16.gmra.mxu0 %v974
    %v1187 = vpop.f32.mrf.mxu0
    %v1188 = vadd.f32 %v1091, %v1187
    %v1189 = vpop.f32.mrf.mxu0
    %v1190 = vpop.f32.mrf.mxu0
    %v1191 = vadd.f32 %v1094, %v1190
    %v1192 = vpop.f32.mrf.mxu0
    %1193 = vmatprep.mubr.bf16.mxu0 %v979
    %1194 = vmatmul.mubr.bf16.gmra.mxu0 %v978
    %v1195 = vpop.f32.mrf.mxu0
    %v1196 = vadd.f32 %v1099, %v1195
    %v1197 = vpop.f32.mrf.mxu0
    %v1198 = vpop.f32.mrf.mxu0
    %v1199 = vadd.f32 %v1102, %v1198
    %v1200 = vpop.f32.mrf.mxu0
    %1201 = vmatprep.mubr.bf16.mxu0 %v983
    %1202 = vmatmul.mubr.bf16.gmra.mxu0 %v982
    %v1203 = vpop.f32.mrf.mxu0
    %v1204 = vadd.f32 %v1107, %v1203
    %v1205 = vpop.f32.mrf.mxu0
    %v1206 = vpop.f32.mrf.mxu0
    %v1207 = vadd.f32 %v1110, %v1206
    %v1208 = vpop.f32.mrf.mxu0
    %1209 = vdwg.mxu0
    %v1210 = vmax.f32 %v1148, 0.0
    %v1211 = vmax.f32 %v1151, 0.0
    %v1212 = vmax.f32 %v1156, 0.0
    %v1213 = vmax.f32 %v1159, 0.0
    %v1214 = vmax.f32 %v1164, 0.0
    %v1215 = vmax.f32 %v1167, 0.0
    %v1216 = vmax.f32 %v1172, 0.0
    %v1217 = vmax.f32 %v1175, 0.0
    %v1218 = vmax.f32 %v1180, 0.0
    %v1219 = vmax.f32 %v1183, 0.0
    %v1220 = vmax.f32 %v1188, 0.0
    %v1221 = vmax.f32 %v1191, 0.0
    %v1222 = vmax.f32 %v1196, 0.0
    %v1223 = vmax.f32 %v1199, 0.0
    %v1224 = vmax.f32 %v1204, 0.0
    %v1225 = vmax.f32 %v1207, 0.0
    %v1226 = vpack.c.bf16 %v1211, %v1210
    %v1227 = vpack.c.bf16 %v1213, %v1212
    %v1228 = vpack.c.bf16 %v1215, %v1214
    %v1229 = vpack.c.bf16 %v1217, %v1216
    %v1230 = vpack.c.bf16 %v1219, %v1218
    %v1231 = vpack.c.bf16 %v1221, %v1220
    %v1232 = vpack.c.bf16 %v1223, %v1222
    %v1233 = vpack.c.bf16 %v1225, %v1224
    %v1242 = vunpack.c.l.b16 %v1226
    %v1243 = vunpack.c.h.b16 %v1226
    %v1244 = vunpack.c.l.b16 %v1227
    %v1245 = vunpack.c.h.b16 %v1227
    %v1246 = vunpack.c.l.b16 %v1228
    %v1247 = vunpack.c.h.b16 %v1228
    %v1248 = vunpack.c.l.b16 %v1229
    %v1249 = vunpack.c.h.b16 %v1229
    %v1250 = vunpack.c.l.b16 %v1230
    %v1251 = vunpack.c.h.b16 %v1230
    %v1252 = vunpack.c.l.b16 %v1231
    %v1253 = vunpack.c.h.b16 %v1231
    %v1254 = vunpack.c.l.b16 %v1232
    %v1255 = vunpack.c.h.b16 %v1232
    %v1256 = vunpack.c.l.b16 %v1233
    %v1257 = vunpack.c.h.b16 %v1233
    %v1258 = vpack.c.b16 %v1242, %v1242
    %v1259 = vpack.c.b16 %v1243, %v1243
    %v1260 = vpack.c.b16 %v1244, %v1244
    %v1261 = vpack.c.b16 %v1245, %v1245
    %v1262 = vpack.c.b16 %v1246, %v1246
    %v1263 = vpack.c.b16 %v1247, %v1247
    %v1264 = vpack.c.b16 %v1248, %v1248
    %v1265 = vpack.c.b16 %v1249, %v1249
    %v1266 = vpack.c.b16 %v1250, %v1250
    %v1267 = vpack.c.b16 %v1251, %v1251
    %v1268 = vpack.c.b16 %v1252, %v1252
    %v1269 = vpack.c.b16 %v1253, %v1253
    %v1270 = vpack.c.b16 %v1254, %v1254
    %v1271 = vpack.c.b16 %v1255, %v1255
    %v1272 = vpack.c.b16 %v1256, %v1256
    %v1273 = vpack.c.b16 %v1257, %v1257
    %s1290 = smul.addr %s807, 4
    %s1291 = scalar_lea.vmem [#allocation3], %s1290
    %1292 = vst [vmem:[%s1291] sm:$0xf] %v1258
    %1293 = vst [vmem:[%s1291 + $0x4] sm:$0xf] %v1259
    %1294 = vst [vmem:[%s1291 + $0x8] sm:$0xf] %v1260
    %1295 = vst [vmem:[%s1291 + $0xc] sm:$0xf] %v1261
    %1296 = vst [vmem:[%s1291 + $0x10] sm:$0xf] %v1262
    %1297 = vst [vmem:[%s1291 + $0x14] sm:$0xf] %v1263
    %1298 = vst [vmem:[%s1291 + $0x18] sm:$0xf] %v1264
    %1299 = vst [vmem:[%s1291 + $0x1c] sm:$0xf] %v1265
    %1300 = vst [vmem:[%s1291 + $0x20] sm:$0xf] %v1266
    %1301 = vst [vmem:[%s1291 + $0x24] sm:$0xf] %v1267
    %1302 = vst [vmem:[%s1291 + $0x28] sm:$0xf] %v1268
    %1303 = vst [vmem:[%s1291 + $0x2c] sm:$0xf] %v1269
    %1304 = vst [vmem:[%s1291 + $0x30] sm:$0xf] %v1270
    %1305 = vst [vmem:[%s1291 + $0x34] sm:$0xf] %v1271
    %1306 = vst [vmem:[%s1291 + $0x38] sm:$0xf] %v1272
    %1307 = vst [vmem:[%s1291 + $0x3c] sm:$0xf] %v1273
  $region87: #{gcn_model_forward.3} parent=0 // loop_footer
    %s805 = sadd.s32 1, %s801
  $region88: #{gcn_model_forward.3} parent=0 // loop_footer_branch
    %800 = sbr.rel target = $region84
  $region89: #{gcn_model_forward.3} parent=0 // loop_exit
    _
  %v1308 = vld [vmem:[#allocation3] sm:$0xf]
  %v1309 = vld [vmem:[#allocation3 + $0x4] sm:$0xf]
  %v1310 = vld [vmem:[#allocation3 + $0x8] sm:$0xf]
  %v1311 = vld [vmem:[#allocation3 + $0xc] sm:$0xf]
  %v1312 = vld [vmem:[#allocation3 + $0x10] sm:$0xf]
  %v1313 = vld [vmem:[#allocation3 + $0x14] sm:$0xf]
  %v1314 = vld [vmem:[#allocation3 + $0x18] sm:$0xf]
  %v1315 = vld [vmem:[#allocation3 + $0x1c] sm:$0xf]
  %v1316 = vld [vmem:[#allocation3 + $0x20] sm:$0xf]
  %v1317 = vld [vmem:[#allocation3 + $0x24] sm:$0xf]
  %v1318 = vld [vmem:[#allocation3 + $0x28] sm:$0xf]
  %v1319 = vld [vmem:[#allocation3 + $0x2c] sm:$0xf]
  %v1320 = vld [vmem:[#allocation3 + $0x30] sm:$0xf]
  %v1321 = vld [vmem:[#allocation3 + $0x34] sm:$0xf]
  %v1322 = vld [vmem:[#allocation3 + $0x38] sm:$0xf]
  %v1323 = vld [vmem:[#allocation3 + $0x3c] sm:$0xf]
  %v1324 = vld [vmem:[#allocation3 + $0x40] sm:$0xf]
  %v1325 = vld [vmem:[#allocation3 + $0x44] sm:$0xf]
  %v1326 = vld [vmem:[#allocation3 + $0x48] sm:$0xf]
  %v1327 = vld [vmem:[#allocation3 + $0x4c] sm:$0xf]
  %v1328 = vld [vmem:[#allocation3 + $0x50] sm:$0xf]
  %v1329 = vld [vmem:[#allocation3 + $0x54] sm:$0xf]
  %v1330 = vld [vmem:[#allocation3 + $0x58] sm:$0xf]
  %v1331 = vld [vmem:[#allocation3 + $0x5c] sm:$0xf]
  %v1332 = vld [vmem:[#allocation3 + $0x60] sm:$0xf]
  %v1333 = vld [vmem:[#allocation3 + $0x64] sm:$0xf]
  %v1334 = vld [vmem:[#allocation3 + $0x68] sm:$0xf]
  %v1335 = vld [vmem:[#allocation3 + $0x6c] sm:$0xf]
  %v1336 = vld [vmem:[#allocation3 + $0x70] sm:$0xf]
  %v1337 = vld [vmem:[#allocation3 + $0x74] sm:$0xf]
  %v1338 = vld [vmem:[#allocation3 + $0x78] sm:$0xf]
  %v1339 = vld [vmem:[#allocation3 + $0x7c] sm:$0xf]
  %v1340 = vld [vmem:[#allocation3 + $0x80] sm:$0xf]
  %v1341 = vld [vmem:[#allocation3 + $0x84] sm:$0xf]
  %v1342 = vld [vmem:[#allocation3 + $0x88] sm:$0xf]
  %v1343 = vld [vmem:[#allocation3 + $0x8c] sm:$0xf]
  %v1344 = vld [vmem:[#allocation3 + $0x90] sm:$0xf]
  %v1345 = vld [vmem:[#allocation3 + $0x94] sm:$0xf]
  %v1346 = vld [vmem:[#allocation3 + $0x98] sm:$0xf]
  %v1347 = vld [vmem:[#allocation3 + $0x9c] sm:$0xf]
  %v1348 = vld [vmem:[#allocation3 + $0xa0] sm:$0xf]
  %v1349 = vld [vmem:[#allocation3 + $0xa4] sm:$0xf]
  %v1350 = vld [vmem:[#allocation3 + $0xa8] sm:$0xf]
  %v1351 = vld [vmem:[#allocation3 + $0xac] sm:$0xf]
  %v1352 = vld [vmem:[#allocation3 + $0xb0] sm:$0xf]
  %v1353 = vld [vmem:[#allocation3 + $0xb4] sm:$0xf]
  %v1354 = vld [vmem:[#allocation3 + $0xb8] sm:$0xf]
  %v1355 = vld [vmem:[#allocation3 + $0xbc] sm:$0xf]
  %v1356 = vld [vmem:[#allocation3 + $0xc0] sm:$0xf]
  %v1357 = vld [vmem:[#allocation3 + $0xc4] sm:$0xf]
  %v1358 = vld [vmem:[#allocation3 + $0xc8] sm:$0xf]
  %v1359 = vld [vmem:[#allocation3 + $0xcc] sm:$0xf]
  %v1360 = vld [vmem:[#allocation3 + $0xd0] sm:$0xf]
  %v1361 = vld [vmem:[#allocation3 + $0xd4] sm:$0xf]
  %v1362 = vld [vmem:[#allocation3 + $0xd8] sm:$0xf]
  %v1363 = vld [vmem:[#allocation3 + $0xdc] sm:$0xf]
  %v1364 = vld [vmem:[#allocation3 + $0xe0] sm:$0xf]
  %v1365 = vld [vmem:[#allocation3 + $0xe4] sm:$0xf]
  %v1366 = vld [vmem:[#allocation3 + $0xe8] sm:$0xf]
  %v1367 = vld [vmem:[#allocation3 + $0xec] sm:$0xf]
  %v1368 = vld [vmem:[#allocation3 + $0xf0] sm:$0xf]
  %v1369 = vld [vmem:[#allocation3 + $0xf4] sm:$0xf]
  %v1370 = vld [vmem:[#allocation3 + $0xf8] sm:$0xf]
  %v1371 = vld [vmem:[#allocation3 + $0xfc] sm:$0xf]
  %v1372 = vld [vmem:[%s4] sm:$0xf]
  %v1373 = vld [vmem:[%s4 + $0x4] sm:$0xf]
  %v1374 = vld [vmem:[%s4 + $0x8] sm:$0xf]
  %v1375 = vld [vmem:[%s4 + $0xc] sm:$0xf]
  %v1376 = vld [vmem:[%s4 + $0x10] sm:$0xf]
  %v1377 = vld [vmem:[%s4 + $0x14] sm:$0xf]
  %v1378 = vld [vmem:[%s4 + $0x18] sm:$0xf]
  %v1379 = vld [vmem:[%s4 + $0x1c] sm:$0xf]
  %v1380 = vld [vmem:[%s4 + $0x20] sm:$0xf]
  %v1381 = vld [vmem:[%s4 + $0x24] sm:$0xf]
  %v1382 = vld [vmem:[%s4 + $0x28] sm:$0xf]
  %v1383 = vld [vmem:[%s4 + $0x2c] sm:$0xf]
  %v1384 = vld [vmem:[%s4 + $0x30] sm:$0xf]
  %v1385 = vld [vmem:[%s4 + $0x34] sm:$0xf]
  %v1386 = vld [vmem:[%s4 + $0x38] sm:$0xf]
  %v1387 = vld [vmem:[%s4 + $0x3c] sm:$0xf]
  %v1452 = vunpack.c.l.b16 %v1308
  %v1453 = vunpack.c.l.b16 %v1309
  %v1454 = vunpack.c.l.b16 %v1310
  %v1455 = vunpack.c.l.b16 %v1311
  %v1456 = vunpack.c.l.b16 %v1312
  %v1457 = vunpack.c.l.b16 %v1313
  %v1458 = vunpack.c.l.b16 %v1314
  %v1459 = vunpack.c.l.b16 %v1315
  %v1460 = vunpack.c.l.b16 %v1316
  %v1461 = vunpack.c.l.b16 %v1317
  %v1462 = vunpack.c.l.b16 %v1318
  %v1463 = vunpack.c.l.b16 %v1319
  %v1464 = vunpack.c.l.b16 %v1320
  %v1465 = vunpack.c.l.b16 %v1321
  %v1466 = vunpack.c.l.b16 %v1322
  %v1467 = vunpack.c.l.b16 %v1323
  %v1468 = vunpack.c.l.b16 %v1324
  %v1469 = vunpack.c.l.b16 %v1325
  %v1470 = vunpack.c.l.b16 %v1326
  %v1471 = vunpack.c.l.b16 %v1327
  %v1472 = vunpack.c.l.b16 %v1328
  %v1473 = vunpack.c.l.b16 %v1329
  %v1474 = vunpack.c.l.b16 %v1330
  %v1475 = vunpack.c.l.b16 %v1331
  %v1476 = vunpack.c.l.b16 %v1332
  %v1477 = vunpack.c.l.b16 %v1333
  %v1478 = vunpack.c.l.b16 %v1334
  %v1479 = vunpack.c.l.b16 %v1335
  %v1480 = vunpack.c.l.b16 %v1336
  %v1481 = vunpack.c.l.b16 %v1337
  %v1482 = vunpack.c.l.b16 %v1338
  %v1483 = vunpack.c.l.b16 %v1339
  %v1484 = vunpack.c.l.b16 %v1340
  %v1485 = vunpack.c.l.b16 %v1341
  %v1486 = vunpack.c.l.b16 %v1342
  %v1487 = vunpack.c.l.b16 %v1343
  %v1488 = vunpack.c.l.b16 %v1344
  %v1489 = vunpack.c.l.b16 %v1345
  %v1490 = vunpack.c.l.b16 %v1346
  %v1491 = vunpack.c.l.b16 %v1347
  %v1492 = vunpack.c.l.b16 %v1348
  %v1493 = vunpack.c.l.b16 %v1349
  %v1494 = vunpack.c.l.b16 %v1350
  %v1495 = vunpack.c.l.b16 %v1351
  %v1496 = vunpack.c.l.b16 %v1352
  %v1497 = vunpack.c.l.b16 %v1353
  %v1498 = vunpack.c.l.b16 %v1354
  %v1499 = vunpack.c.l.b16 %v1355
  %v1500 = vunpack.c.l.b16 %v1356
  %v1501 = vunpack.c.l.b16 %v1357
  %v1502 = vunpack.c.l.b16 %v1358
  %v1503 = vunpack.c.l.b16 %v1359
  %v1504 = vunpack.c.l.b16 %v1360
  %v1505 = vunpack.c.l.b16 %v1361
  %v1506 = vunpack.c.l.b16 %v1362
  %v1507 = vunpack.c.l.b16 %v1363
  %v1508 = vunpack.c.l.b16 %v1364
  %v1509 = vunpack.c.l.b16 %v1365
  %v1510 = vunpack.c.l.b16 %v1366
  %v1511 = vunpack.c.l.b16 %v1367
  %v1512 = vunpack.c.l.b16 %v1368
  %v1513 = vunpack.c.l.b16 %v1369
  %v1514 = vunpack.c.l.b16 %v1370
  %v1515 = vunpack.c.l.b16 %v1371
  %v1516 = vpack.c.b16 %v1453, %v1452
  %v1517 = vpack.c.b16 %v1455, %v1454
  %v1518 = vpack.c.b16 %v1457, %v1456
  %v1519 = vpack.c.b16 %v1459, %v1458
  %v1520 = vpack.c.b16 %v1461, %v1460
  %v1521 = vpack.c.b16 %v1463, %v1462
  %v1522 = vpack.c.b16 %v1465, %v1464
  %v1523 = vpack.c.b16 %v1467, %v1466
  %v1524 = vpack.c.b16 %v1469, %v1468
  %v1525 = vpack.c.b16 %v1471, %v1470
  %v1526 = vpack.c.b16 %v1473, %v1472
  %v1527 = vpack.c.b16 %v1475, %v1474
  %v1528 = vpack.c.b16 %v1477, %v1476
  %v1529 = vpack.c.b16 %v1479, %v1478
  %v1530 = vpack.c.b16 %v1481, %v1480
  %v1531 = vpack.c.b16 %v1483, %v1482
  %v1532 = vpack.c.b16 %v1485, %v1484
  %v1533 = vpack.c.b16 %v1487, %v1486
  %v1534 = vpack.c.b16 %v1489, %v1488
  %v1535 = vpack.c.b16 %v1491, %v1490
  %v1536 = vpack.c.b16 %v1493, %v1492
  %v1537 = vpack.c.b16 %v1495, %v1494
  %v1538 = vpack.c.b16 %v1497, %v1496
  %v1539 = vpack.c.b16 %v1499, %v1498
  %v1540 = vpack.c.b16 %v1501, %v1500
  %v1541 = vpack.c.b16 %v1503, %v1502
  %v1542 = vpack.c.b16 %v1505, %v1504
  %v1543 = vpack.c.b16 %v1507, %v1506
  %v1544 = vpack.c.b16 %v1509, %v1508
  %v1545 = vpack.c.b16 %v1511, %v1510
  %v1546 = vpack.c.b16 %v1513, %v1512
  %v1547 = vpack.c.b16 %v1515, %v1514
  %v1596 = vunpack.c.l.b16 %v1372
  %v1597 = vunpack.c.l.b16 %v1373
  %v1598 = vunpack.c.l.b16 %v1374
  %v1599 = vunpack.c.l.b16 %v1375
  %v1600 = vunpack.c.l.b16 %v1376
  %v1601 = vunpack.c.l.b16 %v1377
  %v1602 = vunpack.c.l.b16 %v1378
  %v1603 = vunpack.c.l.b16 %v1379
  %v1604 = vunpack.c.l.b16 %v1380
  %v1605 = vunpack.c.l.b16 %v1381
  %v1606 = vunpack.c.l.b16 %v1382
  %v1607 = vunpack.c.l.b16 %v1383
  %v1608 = vunpack.c.l.b16 %v1384
  %v1609 = vunpack.c.l.b16 %v1385
  %v1610 = vunpack.c.l.b16 %v1386
  %v1611 = vunpack.c.l.b16 %v1387
  %v1612 = vpack.c.b16 %v1597, %v1596
  %v1613 = vpack.c.b16 %v1599, %v1598
  %v1614 = vpack.c.b16 %v1601, %v1600
  %v1615 = vpack.c.b16 %v1603, %v1602
  %v1616 = vpack.c.b16 %v1605, %v1604
  %v1617 = vpack.c.b16 %v1607, %v1606
  %v1618 = vpack.c.b16 %v1609, %v1608
  %v1619 = vpack.c.b16 %v1611, %v1610
  %1628 = vmatprep.subr.bf16.mxu0 0
  %1629 = vmatpush1.bf16.msra.mxu0 %v1619
  %1630 = vmatprep.subr.bf16.mxu0 0
  %1631 = vmatpush1.bf16.msra.mxu0 %v1618
  %1632 = vmatprep.subr.bf16.mxu0 0
  %1633 = vmatpush1.bf16.msra.mxu0 %v1617
  %1634 = vmatprep.subr.bf16.mxu0 0
  %1635 = vmatpush1.bf16.msra.mxu0 %v1616
  %1636 = vmatprep.subr.bf16.mxu0 0
  %1637 = vmatpush1.bf16.msra.mxu0 %v1615
  %1638 = vmatprep.subr.bf16.mxu0 0
  %1639 = vmatpush1.bf16.msra.mxu0 %v1614
  %1640 = vmatprep.subr.bf16.mxu0 0
  %1641 = vmatpush1.bf16.msra.mxu0 %v1613
  %1642 = vmatprep.subr.bf16.mxu0 0
  %1643 = vmatpush1.bf16.msra.mxu0 %v1612
  %1644 = vmatprep.subr.bf16.mxu0 0
  %1645 = vmatpush2.bf16.msra.mxu0 0
  %1646 = vmatprep.subr.bf16.mxu0 0
  %1647 = vmatpush2.bf16.msra.mxu0 0
  %1648 = vmatprep.subr.bf16.mxu0 0
  %1649 = vmatpush2.bf16.msra.mxu0 0
  %1650 = vmatprep.subr.bf16.mxu0 0
  %1651 = vmatpush2.bf16.msra.mxu0 0
  %1652 = vmatprep.subr.bf16.mxu0 0
  %1653 = vmatpush2.bf16.msra.mxu0 0
  %1654 = vmatprep.subr.bf16.mxu0 0
  %1655 = vmatpush2.bf16.msra.mxu0 0
  %1656 = vmatprep.subr.bf16.mxu0 0
  %1657 = vmatpush2.bf16.msra.mxu0 0
  %1658 = vmatprep.subr.bf16.mxu0 0
  %1659 = vmatpush2.bf16.msra.mxu0 0
  %1660 = vmatprep.mubr.bf16.mxu0 0
  %1661 = vmatmul.mubr.bf16.gmra.mxu0 %v1516
  %v1662 = vpop.f32.mrf.mxu0
  %v1663 = vadd.f32 0.0, %v1662
  %v1664 = vpop.f32.mrf.mxu0
  %v1665 = vpop.f32.mrf.mxu0
  %v1666 = vadd.f32 0.0, %v1665
  %v1667 = vpop.f32.mrf.mxu0
  %1668 = vmatprep.mubr.bf16.mxu0 0
  %1669 = vmatmul.mubr.bf16.gmra.mxu0 %v1517
  %v1670 = vpop.f32.mrf.mxu0
  %v1671 = vadd.f32 0.0, %v1670
  %v1672 = vpop.f32.mrf.mxu0
  %v1673 = vpop.f32.mrf.mxu0
  %v1674 = vadd.f32 0.0, %v1673
  %v1675 = vpop.f32.mrf.mxu0
  %1676 = vmatprep.mubr.bf16.mxu0 0
  %1677 = vmatmul.mubr.bf16.gmra.mxu0 %v1518
  %v1678 = vpop.f32.mrf.mxu0
  %v1679 = vadd.f32 0.0, %v1678
  %v1680 = vpop.f32.mrf.mxu0
  %v1681 = vpop.f32.mrf.mxu0
  %v1682 = vadd.f32 0.0, %v1681
  %v1683 = vpop.f32.mrf.mxu0
  %1684 = vmatprep.mubr.bf16.mxu0 0
  %1685 = vmatmul.mubr.bf16.gmra.mxu0 %v1519
  %v1686 = vpop.f32.mrf.mxu0
  %v1687 = vadd.f32 0.0, %v1686
  %v1688 = vpop.f32.mrf.mxu0
  %v1689 = vpop.f32.mrf.mxu0
  %v1690 = vadd.f32 0.0, %v1689
  %v1691 = vpop.f32.mrf.mxu0
  %1692 = vmatprep.mubr.bf16.mxu0 0
  %1693 = vmatmul.mubr.bf16.gmra.mxu0 %v1520
  %v1694 = vpop.f32.mrf.mxu0
  %v1695 = vadd.f32 0.0, %v1694
  %v1696 = vpop.f32.mrf.mxu0
  %v1697 = vpop.f32.mrf.mxu0
  %v1698 = vadd.f32 0.0, %v1697
  %v1699 = vpop.f32.mrf.mxu0
  %1700 = vmatprep.mubr.bf16.mxu0 0
  %1701 = vmatmul.mubr.bf16.gmra.mxu0 %v1521
  %v1702 = vpop.f32.mrf.mxu0
  %v1703 = vadd.f32 0.0, %v1702
  %v1704 = vpop.f32.mrf.mxu0
  %v1705 = vpop.f32.mrf.mxu0
  %v1706 = vadd.f32 0.0, %v1705
  %v1707 = vpop.f32.mrf.mxu0
  %1708 = vmatprep.mubr.bf16.mxu0 0
  %1709 = vmatmul.mubr.bf16.gmra.mxu0 %v1522
  %v1710 = vpop.f32.mrf.mxu0
  %v1711 = vadd.f32 0.0, %v1710
  %v1712 = vpop.f32.mrf.mxu0
  %v1713 = vpop.f32.mrf.mxu0
  %v1714 = vadd.f32 0.0, %v1713
  %v1715 = vpop.f32.mrf.mxu0
  %1716 = vmatprep.mubr.bf16.mxu0 0
  %1717 = vmatmul.mubr.bf16.gmra.mxu0 %v1523
  %v1718 = vpop.f32.mrf.mxu0
  %v1719 = vadd.f32 0.0, %v1718
  %v1720 = vpop.f32.mrf.mxu0
  %v1721 = vpop.f32.mrf.mxu0
  %v1722 = vadd.f32 0.0, %v1721
  %v1723 = vpop.f32.mrf.mxu0
  %1724 = vmatprep.mubr.bf16.mxu0 0
  %1725 = vmatmul.mubr.bf16.gmra.mxu0 %v1524
  %v1726 = vpop.f32.mrf.mxu0
  %v1727 = vadd.f32 0.0, %v1726
  %v1728 = vpop.f32.mrf.mxu0
  %v1729 = vpop.f32.mrf.mxu0
  %v1730 = vadd.f32 0.0, %v1729
  %v1731 = vpop.f32.mrf.mxu0
  %1732 = vmatprep.mubr.bf16.mxu0 0
  %1733 = vmatmul.mubr.bf16.gmra.mxu0 %v1525
  %v1734 = vpop.f32.mrf.mxu0
  %v1735 = vadd.f32 0.0, %v1734
  %v1736 = vpop.f32.mrf.mxu0
  %v1737 = vpop.f32.mrf.mxu0
  %v1738 = vadd.f32 0.0, %v1737
  %v1739 = vpop.f32.mrf.mxu0
  %1740 = vmatprep.mubr.bf16.mxu0 0
  %1741 = vmatmul.mubr.bf16.gmra.mxu0 %v1526
  %v1742 = vpop.f32.mrf.mxu0
  %v1743 = vadd.f32 0.0, %v1742
  %v1744 = vpop.f32.mrf.mxu0
  %v1745 = vpop.f32.mrf.mxu0
  %v1746 = vadd.f32 0.0, %v1745
  %v1747 = vpop.f32.mrf.mxu0
  %1748 = vmatprep.mubr.bf16.mxu0 0
  %1749 = vmatmul.mubr.bf16.gmra.mxu0 %v1527
  %v1750 = vpop.f32.mrf.mxu0
  %v1751 = vadd.f32 0.0, %v1750
  %v1752 = vpop.f32.mrf.mxu0
  %v1753 = vpop.f32.mrf.mxu0
  %v1754 = vadd.f32 0.0, %v1753
  %v1755 = vpop.f32.mrf.mxu0
  %1756 = vmatprep.mubr.bf16.mxu0 0
  %1757 = vmatmul.mubr.bf16.gmra.mxu0 %v1528
  %v1758 = vpop.f32.mrf.mxu0
  %v1759 = vadd.f32 0.0, %v1758
  %v1760 = vpop.f32.mrf.mxu0
  %v1761 = vpop.f32.mrf.mxu0
  %v1762 = vadd.f32 0.0, %v1761
  %v1763 = vpop.f32.mrf.mxu0
  %1764 = vmatprep.mubr.bf16.mxu0 0
  %1765 = vmatmul.mubr.bf16.gmra.mxu0 %v1529
  %v1766 = vpop.f32.mrf.mxu0
  %v1767 = vadd.f32 0.0, %v1766
  %v1768 = vpop.f32.mrf.mxu0
  %v1769 = vpop.f32.mrf.mxu0
  %v1770 = vadd.f32 0.0, %v1769
  %v1771 = vpop.f32.mrf.mxu0
  %1772 = vmatprep.mubr.bf16.mxu0 0
  %1773 = vmatmul.mubr.bf16.gmra.mxu0 %v1530
  %v1774 = vpop.f32.mrf.mxu0
  %v1775 = vadd.f32 0.0, %v1774
  %v1776 = vpop.f32.mrf.mxu0
  %v1777 = vpop.f32.mrf.mxu0
  %v1778 = vadd.f32 0.0, %v1777
  %v1779 = vpop.f32.mrf.mxu0
  %1780 = vmatprep.mubr.bf16.mxu0 0
  %1781 = vmatmul.mubr.bf16.gmra.mxu0 %v1531
  %v1782 = vpop.f32.mrf.mxu0
  %v1783 = vadd.f32 0.0, %v1782
  %v1784 = vpop.f32.mrf.mxu0
  %v1785 = vpop.f32.mrf.mxu0
  %v1786 = vadd.f32 0.0, %v1785
  %v1787 = vpop.f32.mrf.mxu0
  %1788 = vmatprep.mubr.bf16.mxu0 0
  %1789 = vmatmul.mubr.bf16.gmra.mxu0 %v1532
  %v1790 = vpop.f32.mrf.mxu0
  %v1791 = vadd.f32 0.0, %v1790
  %v1792 = vpop.f32.mrf.mxu0
  %v1793 = vpop.f32.mrf.mxu0
  %v1794 = vadd.f32 0.0, %v1793
  %v1795 = vpop.f32.mrf.mxu0
  %1796 = vmatprep.mubr.bf16.mxu0 0
  %1797 = vmatmul.mubr.bf16.gmra.mxu0 %v1533
  %v1798 = vpop.f32.mrf.mxu0
  %v1799 = vadd.f32 0.0, %v1798
  %v1800 = vpop.f32.mrf.mxu0
  %v1801 = vpop.f32.mrf.mxu0
  %v1802 = vadd.f32 0.0, %v1801
  %v1803 = vpop.f32.mrf.mxu0
  %1804 = vmatprep.mubr.bf16.mxu0 0
  %1805 = vmatmul.mubr.bf16.gmra.mxu0 %v1534
  %v1806 = vpop.f32.mrf.mxu0
  %v1807 = vadd.f32 0.0, %v1806
  %v1808 = vpop.f32.mrf.mxu0
  %v1809 = vpop.f32.mrf.mxu0
  %v1810 = vadd.f32 0.0, %v1809
  %v1811 = vpop.f32.mrf.mxu0
  %1812 = vmatprep.mubr.bf16.mxu0 0
  %1813 = vmatmul.mubr.bf16.gmra.mxu0 %v1535
  %v1814 = vpop.f32.mrf.mxu0
  %v1815 = vadd.f32 0.0, %v1814
  %v1816 = vpop.f32.mrf.mxu0
  %v1817 = vpop.f32.mrf.mxu0
  %v1818 = vadd.f32 0.0, %v1817
  %v1819 = vpop.f32.mrf.mxu0
  %1820 = vmatprep.mubr.bf16.mxu0 0
  %1821 = vmatmul.mubr.bf16.gmra.mxu0 %v1536
  %v1822 = vpop.f32.mrf.mxu0
  %v1823 = vadd.f32 0.0, %v1822
  %v1824 = vpop.f32.mrf.mxu0
  %v1825 = vpop.f32.mrf.mxu0
  %v1826 = vadd.f32 0.0, %v1825
  %v1827 = vpop.f32.mrf.mxu0
  %1828 = vmatprep.mubr.bf16.mxu0 0
  %1829 = vmatmul.mubr.bf16.gmra.mxu0 %v1537
  %v1830 = vpop.f32.mrf.mxu0
  %v1831 = vadd.f32 0.0, %v1830
  %v1832 = vpop.f32.mrf.mxu0
  %v1833 = vpop.f32.mrf.mxu0
  %v1834 = vadd.f32 0.0, %v1833
  %v1835 = vpop.f32.mrf.mxu0
  %1836 = vmatprep.mubr.bf16.mxu0 0
  %1837 = vmatmul.mubr.bf16.gmra.mxu0 %v1538
  %v1838 = vpop.f32.mrf.mxu0
  %v1839 = vadd.f32 0.0, %v1838
  %v1840 = vpop.f32.mrf.mxu0
  %v1841 = vpop.f32.mrf.mxu0
  %v1842 = vadd.f32 0.0, %v1841
  %v1843 = vpop.f32.mrf.mxu0
  %1844 = vmatprep.mubr.bf16.mxu0 0
  %1845 = vmatmul.mubr.bf16.gmra.mxu0 %v1539
  %v1846 = vpop.f32.mrf.mxu0
  %v1847 = vadd.f32 0.0, %v1846
  %v1848 = vpop.f32.mrf.mxu0
  %v1849 = vpop.f32.mrf.mxu0
  %v1850 = vadd.f32 0.0, %v1849
  %v1851 = vpop.f32.mrf.mxu0
  %1852 = vmatprep.mubr.bf16.mxu0 0
  %1853 = vmatmul.mubr.bf16.gmra.mxu0 %v1540
  %v1854 = vpop.f32.mrf.mxu0
  %v1855 = vadd.f32 0.0, %v1854
  %v1856 = vpop.f32.mrf.mxu0
  %v1857 = vpop.f32.mrf.mxu0
  %v1858 = vadd.f32 0.0, %v1857
  %v1859 = vpop.f32.mrf.mxu0
  %1860 = vmatprep.mubr.bf16.mxu0 0
  %1861 = vmatmul.mubr.bf16.gmra.mxu0 %v1541
  %v1862 = vpop.f32.mrf.mxu0
  %v1863 = vadd.f32 0.0, %v1862
  %v1864 = vpop.f32.mrf.mxu0
  %v1865 = vpop.f32.mrf.mxu0
  %v1866 = vadd.f32 0.0, %v1865
  %v1867 = vpop.f32.mrf.mxu0
  %1868 = vmatprep.mubr.bf16.mxu0 0
  %1869 = vmatmul.mubr.bf16.gmra.mxu0 %v1542
  %v1870 = vpop.f32.mrf.mxu0
  %v1871 = vadd.f32 0.0, %v1870
  %v1872 = vpop.f32.mrf.mxu0
  %v1873 = vpop.f32.mrf.mxu0
  %v1874 = vadd.f32 0.0, %v1873
  %v1875 = vpop.f32.mrf.mxu0
  %1876 = vmatprep.mubr.bf16.mxu0 0
  %1877 = vmatmul.mubr.bf16.gmra.mxu0 %v1543
  %v1878 = vpop.f32.mrf.mxu0
  %v1879 = vadd.f32 0.0, %v1878
  %v1880 = vpop.f32.mrf.mxu0
  %v1881 = vpop.f32.mrf.mxu0
  %v1882 = vadd.f32 0.0, %v1881
  %v1883 = vpop.f32.mrf.mxu0
  %1884 = vmatprep.mubr.bf16.mxu0 0
  %1885 = vmatmul.mubr.bf16.gmra.mxu0 %v1544
  %v1886 = vpop.f32.mrf.mxu0
  %v1887 = vadd.f32 0.0, %v1886
  %v1888 = vpop.f32.mrf.mxu0
  %v1889 = vpop.f32.mrf.mxu0
  %v1890 = vadd.f32 0.0, %v1889
  %v1891 = vpop.f32.mrf.mxu0
  %1892 = vmatprep.mubr.bf16.mxu0 0
  %1893 = vmatmul.mubr.bf16.gmra.mxu0 %v1545
  %v1894 = vpop.f32.mrf.mxu0
  %v1895 = vadd.f32 0.0, %v1894
  %v1896 = vpop.f32.mrf.mxu0
  %v1897 = vpop.f32.mrf.mxu0
  %v1898 = vadd.f32 0.0, %v1897
  %v1899 = vpop.f32.mrf.mxu0
  %1900 = vmatprep.mubr.bf16.mxu0 0
  %1901 = vmatmul.mubr.bf16.gmra.mxu0 %v1546
  %v1902 = vpop.f32.mrf.mxu0
  %v1903 = vadd.f32 0.0, %v1902
  %v1904 = vpop.f32.mrf.mxu0
  %v1905 = vpop.f32.mrf.mxu0
  %v1906 = vadd.f32 0.0, %v1905
  %v1907 = vpop.f32.mrf.mxu0
  %1908 = vmatprep.mubr.bf16.mxu0 0
  %1909 = vmatmul.mubr.bf16.gmra.mxu0 %v1547
  %v1910 = vpop.f32.mrf.mxu0
  %v1911 = vadd.f32 0.0, %v1910
  %v1912 = vpop.f32.mrf.mxu0
  %v1913 = vpop.f32.mrf.mxu0
  %v1914 = vadd.f32 0.0, %v1913
  %v1915 = vpop.f32.mrf.mxu0
  %1916 = vdwg.mxu0
  %v1917 = vpack.c.bf16 %v1666, %v1663
  %v1918 = vpack.c.bf16 %v1674, %v1671
  %v1919 = vpack.c.bf16 %v1682, %v1679
  %v1920 = vpack.c.bf16 %v1690, %v1687
  %v1921 = vpack.c.bf16 %v1698, %v1695
  %v1922 = vpack.c.bf16 %v1706, %v1703
  %v1923 = vpack.c.bf16 %v1714, %v1711
  %v1924 = vpack.c.bf16 %v1722, %v1719
  %v1925 = vpack.c.bf16 %v1730, %v1727
  %v1926 = vpack.c.bf16 %v1738, %v1735
  %v1927 = vpack.c.bf16 %v1746, %v1743
  %v1928 = vpack.c.bf16 %v1754, %v1751
  %v1929 = vpack.c.bf16 %v1762, %v1759
  %v1930 = vpack.c.bf16 %v1770, %v1767
  %v1931 = vpack.c.bf16 %v1778, %v1775
  %v1932 = vpack.c.bf16 %v1786, %v1783
  %v1933 = vpack.c.bf16 %v1794, %v1791
  %v1934 = vpack.c.bf16 %v1802, %v1799
  %v1935 = vpack.c.bf16 %v1810, %v1807
  %v1936 = vpack.c.bf16 %v1818, %v1815
  %v1937 = vpack.c.bf16 %v1826, %v1823
  %v1938 = vpack.c.bf16 %v1834, %v1831
  %v1939 = vpack.c.bf16 %v1842, %v1839
  %v1940 = vpack.c.bf16 %v1850, %v1847
  %v1941 = vpack.c.bf16 %v1858, %v1855
  %v1942 = vpack.c.bf16 %v1866, %v1863
  %v1943 = vpack.c.bf16 %v1874, %v1871
  %v1944 = vpack.c.bf16 %v1882, %v1879
  %v1945 = vpack.c.bf16 %v1890, %v1887
  %v1946 = vpack.c.bf16 %v1898, %v1895
  %v1947 = vpack.c.bf16 %v1906, %v1903
  %v1948 = vpack.c.bf16 %v1914, %v1911
  loop: start=0, step=1, limit=4
  $region90: #{gcn_model_forward.3} parent=0 // loop_pre_header
    _
  $region91: #{gcn_model_forward.3} parent=0 // loop_header
    %s1950 = sphi 0, %s1954
    %p1951 = scmp.ge.s32.totalorder %s1950, 4
  $region92: #{gcn_model_forward.3} parent=0 // loop_header_branch
    %1953 = sbr.rel (%p1951) target = $region96
  $region93: #{gcn_model_forward.3} parent=0 // loop_body
    %s1955 = smul.u32 %s1950, 128
    %s1956 = sshra.s32 %s1955, 3
    %s1957 = sand.u32 %s1955, 7
    %s1958 = smul.u32 %s1956, 4
    %s1959 = smul.addr %s1958, 4
    %s1960 = scalar_lea.vmem [#allocation2], %s1959
    %v1961 = vld [vmem:[%s1960] sm:$0xff]
    %v1962 = vld [vmem:[%s1960 + $0x8] sm:$0xff]
    %v1963 = vld [vmem:[%s1960 + $0x10] sm:$0xff]
    %v1964 = vld [vmem:[%s1960 + $0x18] sm:$0xff]
    %v1965 = vld [vmem:[%s1960 + $0x20] sm:$0xff]
    %v1966 = vld [vmem:[%s1960 + $0x28] sm:$0xff]
    %v1967 = vld [vmem:[%s1960 + $0x30] sm:$0xff]
    %v1968 = vld [vmem:[%s1960 + $0x38] sm:$0xff]
    %v1969 = vld [vmem:[%s1960 + $0x40] sm:$0xff]
    %v1970 = vld [vmem:[%s1960 + $0x48] sm:$0xff]
    %v1971 = vld [vmem:[%s1960 + $0x50] sm:$0xff]
    %v1972 = vld [vmem:[%s1960 + $0x58] sm:$0xff]
    %v1973 = vld [vmem:[%s1960 + $0x60] sm:$0xff]
    %v1974 = vld [vmem:[%s1960 + $0x68] sm:$0xff]
    %v1975 = vld [vmem:[%s1960 + $0x70] sm:$0xff]
    %v1976 = vld [vmem:[%s1960 + $0x78] sm:$0xff]
    %v1977 = vld [vmem:[%s1960 + $0x80] sm:$0xff]
    %v1978 = vld [vmem:[%s1960 + $0x88] sm:$0xff]
    %v1979 = vld [vmem:[%s1960 + $0x90] sm:$0xff]
    %v1980 = vld [vmem:[%s1960 + $0x98] sm:$0xff]
    %v1981 = vld [vmem:[%s1960 + $0xa0] sm:$0xff]
    %v1982 = vld [vmem:[%s1960 + $0xa8] sm:$0xff]
    %v1983 = vld [vmem:[%s1960 + $0xb0] sm:$0xff]
    %v1984 = vld [vmem:[%s1960 + $0xb8] sm:$0xff]
    %v1985 = vld [vmem:[%s1960 + $0xc0] sm:$0xff]
    %v1986 = vld [vmem:[%s1960 + $0xc8] sm:$0xff]
    %v1987 = vld [vmem:[%s1960 + $0xd0] sm:$0xff]
    %v1988 = vld [vmem:[%s1960 + $0xd8] sm:$0xff]
    %v1989 = vld [vmem:[%s1960 + $0xe0] sm:$0xff]
    %v1990 = vld [vmem:[%s1960 + $0xe8] sm:$0xff]
    %v1991 = vld [vmem:[%s1960 + $0xf0] sm:$0xff]
    %v1992 = vld [vmem:[%s1960 + $0xf8] sm:$0xff]
    %v1993 = vld [vmem:[%s5] sm:$0x1]
    %v1995 = vlaneseq
    %v1996 = vshrl.u32 %v1995, 7
    %v1997 = vsub.s32 0, %v1996
    %v1998 = vrot.slane %v1993, %v1997
    %v2032 = vunpack.c.l.b16 %v1961
    %v2033 = vunpack.c.h.b16 %v1961
    %v2034 = vunpack.c.l.b16 %v1962
    %v2035 = vunpack.c.h.b16 %v1962
    %v2036 = vunpack.c.l.b16 %v1963
    %v2037 = vunpack.c.h.b16 %v1963
    %v2038 = vunpack.c.l.b16 %v1964
    %v2039 = vunpack.c.h.b16 %v1964
    %v2040 = vunpack.c.l.b16 %v1965
    %v2041 = vunpack.c.h.b16 %v1965
    %v2042 = vunpack.c.l.b16 %v1966
    %v2043 = vunpack.c.h.b16 %v1966
    %v2044 = vunpack.c.l.b16 %v1967
    %v2045 = vunpack.c.h.b16 %v1967
    %v2046 = vunpack.c.l.b16 %v1968
    %v2047 = vunpack.c.h.b16 %v1968
    %v2048 = vunpack.c.l.b16 %v1969
    %v2049 = vunpack.c.h.b16 %v1969
    %v2050 = vunpack.c.l.b16 %v1970
    %v2051 = vunpack.c.h.b16 %v1970
    %v2052 = vunpack.c.l.b16 %v1971
    %v2053 = vunpack.c.h.b16 %v1971
    %v2054 = vunpack.c.l.b16 %v1972
    %v2055 = vunpack.c.h.b16 %v1972
    %v2056 = vunpack.c.l.b16 %v1973
    %v2057 = vunpack.c.h.b16 %v1973
    %v2058 = vunpack.c.l.b16 %v1974
    %v2059 = vunpack.c.h.b16 %v1974
    %v2060 = vunpack.c.l.b16 %v1975
    %v2061 = vunpack.c.h.b16 %v1975
    %v2062 = vunpack.c.l.b16 %v1976
    %v2063 = vunpack.c.h.b16 %v1976
    %v2064 = vunpack.c.l.b16 %v1977
    %v2065 = vunpack.c.h.b16 %v1977
    %v2066 = vunpack.c.l.b16 %v1978
    %v2067 = vunpack.c.h.b16 %v1978
    %v2068 = vunpack.c.l.b16 %v1979
    %v2069 = vunpack.c.h.b16 %v1979
    %v2070 = vunpack.c.l.b16 %v1980
    %v2071 = vunpack.c.h.b16 %v1980
    %v2072 = vunpack.c.l.b16 %v1981
    %v2073 = vunpack.c.h.b16 %v1981
    %v2074 = vunpack.c.l.b16 %v1982
    %v2075 = vunpack.c.h.b16 %v1982
    %v2076 = vunpack.c.l.b16 %v1983
    %v2077 = vunpack.c.h.b16 %v1983
    %v2078 = vunpack.c.l.b16 %v1984
    %v2079 = vunpack.c.h.b16 %v1984
    %v2080 = vunpack.c.l.b16 %v1985
    %v2081 = vunpack.c.h.b16 %v1985
    %v2082 = vunpack.c.l.b16 %v1986
    %v2083 = vunpack.c.h.b16 %v1986
    %v2084 = vunpack.c.l.b16 %v1987
    %v2085 = vunpack.c.h.b16 %v1987
    %v2086 = vunpack.c.l.b16 %v1988
    %v2087 = vunpack.c.h.b16 %v1988
    %v2088 = vunpack.c.l.b16 %v1989
    %v2089 = vunpack.c.h.b16 %v1989
    %v2090 = vunpack.c.l.b16 %v1990
    %v2091 = vunpack.c.h.b16 %v1990
    %v2092 = vunpack.c.l.b16 %v1991
    %v2093 = vunpack.c.h.b16 %v1991
    %v2094 = vunpack.c.l.b16 %v1992
    %v2095 = vunpack.c.h.b16 %v1992
    %v2096 = vpack.c.b16 %v2036, %v2032
    %v2097 = vpack.c.b16 %v2037, %v2033
    %v2098 = vpack.c.b16 %v2038, %v2034
    %v2099 = vpack.c.b16 %v2039, %v2035
    %v2100 = vpack.c.b16 %v2044, %v2040
    %v2101 = vpack.c.b16 %v2045, %v2041
    %v2102 = vpack.c.b16 %v2046, %v2042
    %v2103 = vpack.c.b16 %v2047, %v2043
    %v2104 = vpack.c.b16 %v2052, %v2048
    %v2105 = vpack.c.b16 %v2053, %v2049
    %v2106 = vpack.c.b16 %v2054, %v2050
    %v2107 = vpack.c.b16 %v2055, %v2051
    %v2108 = vpack.c.b16 %v2060, %v2056
    %v2109 = vpack.c.b16 %v2061, %v2057
    %v2110 = vpack.c.b16 %v2062, %v2058
    %v2111 = vpack.c.b16 %v2063, %v2059
    %v2112 = vpack.c.b16 %v2068, %v2064
    %v2113 = vpack.c.b16 %v2069, %v2065
    %v2114 = vpack.c.b16 %v2070, %v2066
    %v2115 = vpack.c.b16 %v2071, %v2067
    %v2116 = vpack.c.b16 %v2076, %v2072
    %v2117 = vpack.c.b16 %v2077, %v2073
    %v2118 = vpack.c.b16 %v2078, %v2074
    %v2119 = vpack.c.b16 %v2079, %v2075
    %v2120 = vpack.c.b16 %v2084, %v2080
    %v2121 = vpack.c.b16 %v2085, %v2081
    %v2122 = vpack.c.b16 %v2086, %v2082
    %v2123 = vpack.c.b16 %v2087, %v2083
    %v2124 = vpack.c.b16 %v2092, %v2088
    %v2125 = vpack.c.b16 %v2093, %v2089
    %v2126 = vpack.c.b16 %v2094, %v2090
    %v2127 = vpack.c.b16 %v2095, %v2091
    %2160 = vmatprep.subr.bf16.mxu0 0
    %2161 = vmatpush1.bf16.msra.mxu0 %v1924
    %2162 = vmatprep.subr.bf16.mxu0 0
    %2163 = vmatpush1.bf16.msra.mxu0 %v1923
    %2164 = vmatprep.subr.bf16.mxu0 0
    %2165 = vmatpush1.bf16.msra.mxu0 %v1922
    %2166 = vmatprep.subr.bf16.mxu0 0
    %2167 = vmatpush1.bf16.msra.mxu0 %v1921
    %2168 = vmatprep.subr.bf16.mxu0 0
    %2169 = vmatpush1.bf16.msra.mxu0 %v1920
    %2170 = vmatprep.subr.bf16.mxu0 0
    %2171 = vmatpush1.bf16.msra.mxu0 %v1919
    %2172 = vmatprep.subr.bf16.mxu0 0
    %2173 = vmatpush1.bf16.msra.mxu0 %v1918
    %2174 = vmatprep.subr.bf16.mxu0 0
    %2175 = vmatpush1.bf16.msra.mxu0 %v1917
    %2176 = vmatprep.subr.bf16.mxu0 0
    %2177 = vmatpush2.bf16.msra.mxu0 %v1932
    %2178 = vmatprep.subr.bf16.mxu0 0
    %2179 = vmatpush2.bf16.msra.mxu0 %v1931
    %2180 = vmatprep.subr.bf16.mxu0 0
    %2181 = vmatpush2.bf16.msra.mxu0 %v1930
    %2182 = vmatprep.subr.bf16.mxu0 0
    %2183 = vmatpush2.bf16.msra.mxu0 %v1929
    %2184 = vmatprep.subr.bf16.mxu0 0
    %2185 = vmatpush2.bf16.msra.mxu0 %v1928
    %2186 = vmatprep.subr.bf16.mxu0 0
    %2187 = vmatpush2.bf16.msra.mxu0 %v1927
    %2188 = vmatprep.subr.bf16.mxu0 0
    %2189 = vmatpush2.bf16.msra.mxu0 %v1926
    %2190 = vmatprep.subr.bf16.mxu0 0
    %2191 = vmatpush2.bf16.msra.mxu0 %v1925
    %2192 = vmatprep.mubr.bf16.mxu0 %v2097
    %2193 = vmatmul.mubr.bf16.gmra.mxu0 %v2096
    %v2194 = vpop.f32.mrf.mxu0
    %v2195 = vadd.f32 %v1998, %v2194
    %v2196 = vpop.f32.mrf.mxu0
    %v2197 = vpop.f32.mrf.mxu0
    %v2198 = vadd.f32 %v1998, %v2197
    %v2199 = vpop.f32.mrf.mxu0
    %2200 = vmatprep.mubr.bf16.mxu0 %v2101
    %2201 = vmatmul.mubr.bf16.gmra.mxu0 %v2100
    %v2202 = vpop.f32.mrf.mxu0
    %v2203 = vadd.f32 %v1998, %v2202
    %v2204 = vpop.f32.mrf.mxu0
    %v2205 = vpop.f32.mrf.mxu0
    %v2206 = vadd.f32 %v1998, %v2205
    %v2207 = vpop.f32.mrf.mxu0
    %2208 = vmatprep.mubr.bf16.mxu0 %v2105
    %2209 = vmatmul.mubr.bf16.gmra.mxu0 %v2104
    %v2210 = vpop.f32.mrf.mxu0
    %v2211 = vadd.f32 %v1998, %v2210
    %v2212 = vpop.f32.mrf.mxu0
    %v2213 = vpop.f32.mrf.mxu0
    %v2214 = vadd.f32 %v1998, %v2213
    %v2215 = vpop.f32.mrf.mxu0
    %2216 = vmatprep.mubr.bf16.mxu0 %v2109
    %2217 = vmatmul.mubr.bf16.gmra.mxu0 %v2108
    %v2218 = vpop.f32.mrf.mxu0
    %v2219 = vadd.f32 %v1998, %v2218
    %v2220 = vpop.f32.mrf.mxu0
    %v2221 = vpop.f32.mrf.mxu0
    %v2222 = vadd.f32 %v1998, %v2221
    %v2223 = vpop.f32.mrf.mxu0
    %2224 = vmatprep.mubr.bf16.mxu0 %v2113
    %2225 = vmatmul.mubr.bf16.gmra.mxu0 %v2112
    %v2226 = vpop.f32.mrf.mxu0
    %v2227 = vadd.f32 %v1998, %v2226
    %v2228 = vpop.f32.mrf.mxu0
    %v2229 = vpop.f32.mrf.mxu0
    %v2230 = vadd.f32 %v1998, %v2229
    %v2231 = vpop.f32.mrf.mxu0
    %2232 = vmatprep.mubr.bf16.mxu0 %v2117
    %2233 = vmatmul.mubr.bf16.gmra.mxu0 %v2116
    %v2234 = vpop.f32.mrf.mxu0
    %v2235 = vadd.f32 %v1998, %v2234
    %v2236 = vpop.f32.mrf.mxu0
    %v2237 = vpop.f32.mrf.mxu0
    %v2238 = vadd.f32 %v1998, %v2237
    %v2239 = vpop.f32.mrf.mxu0
    %2240 = vmatprep.mubr.bf16.mxu0 %v2121
    %2241 = vmatmul.mubr.bf16.gmra.mxu0 %v2120
    %v2242 = vpop.f32.mrf.mxu0
    %v2243 = vadd.f32 %v1998, %v2242
    %v2244 = vpop.f32.mrf.mxu0
    %v2245 = vpop.f32.mrf.mxu0
    %v2246 = vadd.f32 %v1998, %v2245
    %v2247 = vpop.f32.mrf.mxu0
    %2248 = vmatprep.mubr.bf16.mxu0 %v2125
    %2249 = vmatmul.mubr.bf16.gmra.mxu0 %v2124
    %v2250 = vpop.f32.mrf.mxu0
    %v2251 = vadd.f32 %v1998, %v2250
    %v2252 = vpop.f32.mrf.mxu0
    %v2253 = vpop.f32.mrf.mxu0
    %v2254 = vadd.f32 %v1998, %v2253
    %v2255 = vpop.f32.mrf.mxu0
    %2256 = vdwg.mxu0
    %2257 = vmatprep.subr.bf16.mxu0 0
    %2258 = vmatpush1.bf16.msra.mxu0 %v1940
    %2259 = vmatprep.subr.bf16.mxu0 0
    %2260 = vmatpush1.bf16.msra.mxu0 %v1939
    %2261 = vmatprep.subr.bf16.mxu0 0
    %2262 = vmatpush1.bf16.msra.mxu0 %v1938
    %2263 = vmatprep.subr.bf16.mxu0 0
    %2264 = vmatpush1.bf16.msra.mxu0 %v1937
    %2265 = vmatprep.subr.bf16.mxu0 0
    %2266 = vmatpush1.bf16.msra.mxu0 %v1936
    %2267 = vmatprep.subr.bf16.mxu0 0
    %2268 = vmatpush1.bf16.msra.mxu0 %v1935
    %2269 = vmatprep.subr.bf16.mxu0 0
    %2270 = vmatpush1.bf16.msra.mxu0 %v1934
    %2271 = vmatprep.subr.bf16.mxu0 0
    %2272 = vmatpush1.bf16.msra.mxu0 %v1933
    %2273 = vmatprep.subr.bf16.mxu0 0
    %2274 = vmatpush2.bf16.msra.mxu0 %v1948
    %2275 = vmatprep.subr.bf16.mxu0 0
    %2276 = vmatpush2.bf16.msra.mxu0 %v1947
    %2277 = vmatprep.subr.bf16.mxu0 0
    %2278 = vmatpush2.bf16.msra.mxu0 %v1946
    %2279 = vmatprep.subr.bf16.mxu0 0
    %2280 = vmatpush2.bf16.msra.mxu0 %v1945
    %2281 = vmatprep.subr.bf16.mxu0 0
    %2282 = vmatpush2.bf16.msra.mxu0 %v1944
    %2283 = vmatprep.subr.bf16.mxu0 0
    %2284 = vmatpush2.bf16.msra.mxu0 %v1943
    %2285 = vmatprep.subr.bf16.mxu0 0
    %2286 = vmatpush2.bf16.msra.mxu0 %v1942
    %2287 = vmatprep.subr.bf16.mxu0 0
    %2288 = vmatpush2.bf16.msra.mxu0 %v1941
    %2289 = vmatprep.mubr.bf16.mxu0 %v2099
    %2290 = vmatmul.mubr.bf16.gmra.mxu0 %v2098
    %v2291 = vpop.f32.mrf.mxu0
    %v2292 = vadd.f32 %v2195, %v2291
    %v2293 = vpop.f32.mrf.mxu0
    %v2294 = vpop.f32.mrf.mxu0
    %v2295 = vadd.f32 %v2198, %v2294
    %v2296 = vpop.f32.mrf.mxu0
    %2297 = vmatprep.mubr.bf16.mxu0 %v2103
    %2298 = vmatmul.mubr.bf16.gmra.mxu0 %v2102
    %v2299 = vpop.f32.mrf.mxu0
    %v2300 = vadd.f32 %v2203, %v2299
    %v2301 = vpop.f32.mrf.mxu0
    %v2302 = vpop.f32.mrf.mxu0
    %v2303 = vadd.f32 %v2206, %v2302
    %v2304 = vpop.f32.mrf.mxu0
    %2305 = vmatprep.mubr.bf16.mxu0 %v2107
    %2306 = vmatmul.mubr.bf16.gmra.mxu0 %v2106
    %v2307 = vpop.f32.mrf.mxu0
    %v2308 = vadd.f32 %v2211, %v2307
    %v2309 = vpop.f32.mrf.mxu0
    %v2310 = vpop.f32.mrf.mxu0
    %v2311 = vadd.f32 %v2214, %v2310
    %v2312 = vpop.f32.mrf.mxu0
    %2313 = vmatprep.mubr.bf16.mxu0 %v2111
    %2314 = vmatmul.mubr.bf16.gmra.mxu0 %v2110
    %v2315 = vpop.f32.mrf.mxu0
    %v2316 = vadd.f32 %v2219, %v2315
    %v2317 = vpop.f32.mrf.mxu0
    %v2318 = vpop.f32.mrf.mxu0
    %v2319 = vadd.f32 %v2222, %v2318
    %v2320 = vpop.f32.mrf.mxu0
    %2321 = vmatprep.mubr.bf16.mxu0 %v2115
    %2322 = vmatmul.mubr.bf16.gmra.mxu0 %v2114
    %v2323 = vpop.f32.mrf.mxu0
    %v2324 = vadd.f32 %v2227, %v2323
    %v2325 = vpop.f32.mrf.mxu0
    %v2326 = vpop.f32.mrf.mxu0
    %v2327 = vadd.f32 %v2230, %v2326
    %v2328 = vpop.f32.mrf.mxu0
    %2329 = vmatprep.mubr.bf16.mxu0 %v2119
    %2330 = vmatmul.mubr.bf16.gmra.mxu0 %v2118
    %v2331 = vpop.f32.mrf.mxu0
    %v2332 = vadd.f32 %v2235, %v2331
    %v2333 = vpop.f32.mrf.mxu0
    %v2334 = vpop.f32.mrf.mxu0
    %v2335 = vadd.f32 %v2238, %v2334
    %v2336 = vpop.f32.mrf.mxu0
    %2337 = vmatprep.mubr.bf16.mxu0 %v2123
    %2338 = vmatmul.mubr.bf16.gmra.mxu0 %v2122
    %v2339 = vpop.f32.mrf.mxu0
    %v2340 = vadd.f32 %v2243, %v2339
    %v2341 = vpop.f32.mrf.mxu0
    %v2342 = vpop.f32.mrf.mxu0
    %v2343 = vadd.f32 %v2246, %v2342
    %v2344 = vpop.f32.mrf.mxu0
    %2345 = vmatprep.mubr.bf16.mxu0 %v2127
    %2346 = vmatmul.mubr.bf16.gmra.mxu0 %v2126
    %v2347 = vpop.f32.mrf.mxu0
    %v2348 = vadd.f32 %v2251, %v2347
    %v2349 = vpop.f32.mrf.mxu0
    %v2350 = vpop.f32.mrf.mxu0
    %v2351 = vadd.f32 %v2254, %v2350
    %v2352 = vpop.f32.mrf.mxu0
    %2353 = vdwg.mxu0
    %v2354 = vmax.f32 %v2292, 0.0
    %v2355 = vmax.f32 %v2295, 0.0
    %v2356 = vmax.f32 %v2300, 0.0
    %v2357 = vmax.f32 %v2303, 0.0
    %v2358 = vmax.f32 %v2308, 0.0
    %v2359 = vmax.f32 %v2311, 0.0
    %v2360 = vmax.f32 %v2316, 0.0
    %v2361 = vmax.f32 %v2319, 0.0
    %v2362 = vmax.f32 %v2324, 0.0
    %v2363 = vmax.f32 %v2327, 0.0
    %v2364 = vmax.f32 %v2332, 0.0
    %v2365 = vmax.f32 %v2335, 0.0
    %v2366 = vmax.f32 %v2340, 0.0
    %v2367 = vmax.f32 %v2343, 0.0
    %v2368 = vmax.f32 %v2348, 0.0
    %v2369 = vmax.f32 %v2351, 0.0
    %v2370 = vpack.c.bf16 %v2355, %v2354
    %v2371 = vpack.c.bf16 %v2357, %v2356
    %v2372 = vpack.c.bf16 %v2359, %v2358
    %v2373 = vpack.c.bf16 %v2361, %v2360
    %v2374 = vpack.c.bf16 %v2363, %v2362
    %v2375 = vpack.c.bf16 %v2365, %v2364
    %v2376 = vpack.c.bf16 %v2367, %v2366
    %v2377 = vpack.c.bf16 %v2369, %v2368
    %v2386 = vunpack.c.l.b16 %v2370
    %v2387 = vunpack.c.h.b16 %v2370
    %v2388 = vunpack.c.l.b16 %v2371
    %v2389 = vunpack.c.h.b16 %v2371
    %v2390 = vunpack.c.l.b16 %v2372
    %v2391 = vunpack.c.h.b16 %v2372
    %v2392 = vunpack.c.l.b16 %v2373
    %v2393 = vunpack.c.h.b16 %v2373
    %v2394 = vunpack.c.l.b16 %v2374
    %v2395 = vunpack.c.h.b16 %v2374
    %v2396 = vunpack.c.l.b16 %v2375
    %v2397 = vunpack.c.h.b16 %v2375
    %v2398 = vunpack.c.l.b16 %v2376
    %v2399 = vunpack.c.h.b16 %v2376
    %v2400 = vunpack.c.l.b16 %v2377
    %v2401 = vunpack.c.h.b16 %v2377
    %v2402 = vpack.c.b16 %v2386, %v2386
    %v2403 = vpack.c.b16 %v2387, %v2387
    %v2404 = vpack.c.b16 %v2388, %v2388
    %v2405 = vpack.c.b16 %v2389, %v2389
    %v2406 = vpack.c.b16 %v2390, %v2390
    %v2407 = vpack.c.b16 %v2391, %v2391
    %v2408 = vpack.c.b16 %v2392, %v2392
    %v2409 = vpack.c.b16 %v2393, %v2393
    %v2410 = vpack.c.b16 %v2394, %v2394
    %v2411 = vpack.c.b16 %v2395, %v2395
    %v2412 = vpack.c.b16 %v2396, %v2396
    %v2413 = vpack.c.b16 %v2397, %v2397
    %v2414 = vpack.c.b16 %v2398, %v2398
    %v2415 = vpack.c.b16 %v2399, %v2399
    %v2416 = vpack.c.b16 %v2400, %v2400
    %v2417 = vpack.c.b16 %v2401, %v2401
    %s2434 = smul.addr %s1956, 4
    %s2435 = scalar_lea.vmem [#allocation3], %s2434
    %2436 = vst [vmem:[%s2435] sm:$0xf] %v2402
    %2437 = vst [vmem:[%s2435 + $0x4] sm:$0xf] %v2403
    %2438 = vst [vmem:[%s2435 + $0x8] sm:$0xf] %v2404
    %2439 = vst [vmem:[%s2435 + $0xc] sm:$0xf] %v2405
    %2440 = vst [vmem:[%s2435 + $0x10] sm:$0xf] %v2406
    %2441 = vst [vmem:[%s2435 + $0x14] sm:$0xf] %v2407
    %2442 = vst [vmem:[%s2435 + $0x18] sm:$0xf] %v2408
    %2443 = vst [vmem:[%s2435 + $0x1c] sm:$0xf] %v2409
    %2444 = vst [vmem:[%s2435 + $0x20] sm:$0xf] %v2410
    %2445 = vst [vmem:[%s2435 + $0x24] sm:$0xf] %v2411
    %2446 = vst [vmem:[%s2435 + $0x28] sm:$0xf] %v2412
    %2447 = vst [vmem:[%s2435 + $0x2c] sm:$0xf] %v2413
    %2448 = vst [vmem:[%s2435 + $0x30] sm:$0xf] %v2414
    %2449 = vst [vmem:[%s2435 + $0x34] sm:$0xf] %v2415
    %2450 = vst [vmem:[%s2435 + $0x38] sm:$0xf] %v2416
    %2451 = vst [vmem:[%s2435 + $0x3c] sm:$0xf] %v2417
  $region94: #{gcn_model_forward.3} parent=0 // loop_footer
    %s1954 = sadd.s32 1, %s1950
  $region95: #{gcn_model_forward.3} parent=0 // loop_footer_branch
    %1949 = sbr.rel target = $region91
  $region96: #{gcn_model_forward.3} parent=0 // loop_exit
    _
  %v2452 = vld [vmem:[#allocation3] sm:$0xf]
  %v2453 = vld [vmem:[#allocation3 + $0x4] sm:$0xf]
  %v2454 = vld [vmem:[#allocation3 + $0x8] sm:$0xf]
  %v2455 = vld [vmem:[#allocation3 + $0xc] sm:$0xf]
  %v2456 = vld [vmem:[#allocation3 + $0x10] sm:$0xf]
  %v2457 = vld [vmem:[#allocation3 + $0x14] sm:$0xf]
  %v2458 = vld [vmem:[#allocation3 + $0x18] sm:$0xf]
  %v2459 = vld [vmem:[#allocation3 + $0x1c] sm:$0xf]
  %v2460 = vld [vmem:[#allocation3 + $0x20] sm:$0xf]
  %v2461 = vld [vmem:[#allocation3 + $0x24] sm:$0xf]
  %v2462 = vld [vmem:[#allocation3 + $0x28] sm:$0xf]
  %v2463 = vld [vmem:[#allocation3 + $0x2c] sm:$0xf]
  %v2464 = vld [vmem:[#allocation3 + $0x30] sm:$0xf]
  %v2465 = vld [vmem:[#allocation3 + $0x34] sm:$0xf]
  %v2466 = vld [vmem:[#allocation3 + $0x38] sm:$0xf]
  %v2467 = vld [vmem:[#allocation3 + $0x3c] sm:$0xf]
  %v2468 = vld [vmem:[#allocation3 + $0x40] sm:$0xf]
  %v2469 = vld [vmem:[#allocation3 + $0x44] sm:$0xf]
  %v2470 = vld [vmem:[#allocation3 + $0x48] sm:$0xf]
  %v2471 = vld [vmem:[#allocation3 + $0x4c] sm:$0xf]
  %v2472 = vld [vmem:[#allocation3 + $0x50] sm:$0xf]
  %v2473 = vld [vmem:[#allocation3 + $0x54] sm:$0xf]
  %v2474 = vld [vmem:[#allocation3 + $0x58] sm:$0xf]
  %v2475 = vld [vmem:[#allocation3 + $0x5c] sm:$0xf]
  %v2476 = vld [vmem:[#allocation3 + $0x60] sm:$0xf]
  %v2477 = vld [vmem:[#allocation3 + $0x64] sm:$0xf]
  %v2478 = vld [vmem:[#allocation3 + $0x68] sm:$0xf]
  %v2479 = vld [vmem:[#allocation3 + $0x6c] sm:$0xf]
  %v2480 = vld [vmem:[#allocation3 + $0x70] sm:$0xf]
  %v2481 = vld [vmem:[#allocation3 + $0x74] sm:$0xf]
  %v2482 = vld [vmem:[#allocation3 + $0x78] sm:$0xf]
  %v2483 = vld [vmem:[#allocation3 + $0x7c] sm:$0xf]
  %v2484 = vld [vmem:[#allocation3 + $0x80] sm:$0xf]
  %v2485 = vld [vmem:[#allocation3 + $0x84] sm:$0xf]
  %v2486 = vld [vmem:[#allocation3 + $0x88] sm:$0xf]
  %v2487 = vld [vmem:[#allocation3 + $0x8c] sm:$0xf]
  %v2488 = vld [vmem:[#allocation3 + $0x90] sm:$0xf]
  %v2489 = vld [vmem:[#allocation3 + $0x94] sm:$0xf]
  %v2490 = vld [vmem:[#allocation3 + $0x98] sm:$0xf]
  %v2491 = vld [vmem:[#allocation3 + $0x9c] sm:$0xf]
  %v2492 = vld [vmem:[#allocation3 + $0xa0] sm:$0xf]
  %v2493 = vld [vmem:[#allocation3 + $0xa4] sm:$0xf]
  %v2494 = vld [vmem:[#allocation3 + $0xa8] sm:$0xf]
  %v2495 = vld [vmem:[#allocation3 + $0xac] sm:$0xf]
  %v2496 = vld [vmem:[#allocation3 + $0xb0] sm:$0xf]
  %v2497 = vld [vmem:[#allocation3 + $0xb4] sm:$0xf]
  %v2498 = vld [vmem:[#allocation3 + $0xb8] sm:$0xf]
  %v2499 = vld [vmem:[#allocation3 + $0xbc] sm:$0xf]
  %v2500 = vld [vmem:[#allocation3 + $0xc0] sm:$0xf]
  %v2501 = vld [vmem:[#allocation3 + $0xc4] sm:$0xf]
  %v2502 = vld [vmem:[#allocation3 + $0xc8] sm:$0xf]
  %v2503 = vld [vmem:[#allocation3 + $0xcc] sm:$0xf]
  %v2504 = vld [vmem:[#allocation3 + $0xd0] sm:$0xf]
  %v2505 = vld [vmem:[#allocation3 + $0xd4] sm:$0xf]
  %v2506 = vld [vmem:[#allocation3 + $0xd8] sm:$0xf]
  %v2507 = vld [vmem:[#allocation3 + $0xdc] sm:$0xf]
  %v2508 = vld [vmem:[#allocation3 + $0xe0] sm:$0xf]
  %v2509 = vld [vmem:[#allocation3 + $0xe4] sm:$0xf]
  %v2510 = vld [vmem:[#allocation3 + $0xe8] sm:$0xf]
  %v2511 = vld [vmem:[#allocation3 + $0xec] sm:$0xf]
  %v2512 = vld [vmem:[#allocation3 + $0xf0] sm:$0xf]
  %v2513 = vld [vmem:[#allocation3 + $0xf4] sm:$0xf]
  %v2514 = vld [vmem:[#allocation3 + $0xf8] sm:$0xf]
  %v2515 = vld [vmem:[#allocation3 + $0xfc] sm:$0xf]
  %v2516 = vld [vmem:[%s6] sm:$0xf]
  %v2517 = vld [vmem:[%s6 + $0x4] sm:$0xf]
  %v2518 = vld [vmem:[%s6 + $0x8] sm:$0xf]
  %v2519 = vld [vmem:[%s6 + $0xc] sm:$0xf]
  %v2520 = vld [vmem:[%s6 + $0x10] sm:$0xf]
  %v2521 = vld [vmem:[%s6 + $0x14] sm:$0xf]
  %v2522 = vld [vmem:[%s6 + $0x18] sm:$0xf]
  %v2523 = vld [vmem:[%s6 + $0x1c] sm:$0xf]
  %v2524 = vld [vmem:[%s6 + $0x20] sm:$0xf]
  %v2525 = vld [vmem:[%s6 + $0x24] sm:$0xf]
  %v2526 = vld [vmem:[%s6 + $0x28] sm:$0xf]
  %v2527 = vld [vmem:[%s6 + $0x2c] sm:$0xf]
  %v2528 = vld [vmem:[%s6 + $0x30] sm:$0xf]
  %v2529 = vld [vmem:[%s6 + $0x34] sm:$0xf]
  %v2530 = vld [vmem:[%s6 + $0x38] sm:$0xf]
  %v2531 = vld [vmem:[%s6 + $0x3c] sm:$0xf]
  %v2596 = vunpack.c.l.b16 %v2452
  %v2597 = vunpack.c.l.b16 %v2453
  %v2598 = vunpack.c.l.b16 %v2454
  %v2599 = vunpack.c.l.b16 %v2455
  %v2600 = vunpack.c.l.b16 %v2456
  %v2601 = vunpack.c.l.b16 %v2457
  %v2602 = vunpack.c.l.b16 %v2458
  %v2603 = vunpack.c.l.b16 %v2459
  %v2604 = vunpack.c.l.b16 %v2460
  %v2605 = vunpack.c.l.b16 %v2461
  %v2606 = vunpack.c.l.b16 %v2462
  %v2607 = vunpack.c.l.b16 %v2463
  %v2608 = vunpack.c.l.b16 %v2464
  %v2609 = vunpack.c.l.b16 %v2465
  %v2610 = vunpack.c.l.b16 %v2466
  %v2611 = vunpack.c.l.b16 %v2467
  %v2612 = vunpack.c.l.b16 %v2468
  %v2613 = vunpack.c.l.b16 %v2469
  %v2614 = vunpack.c.l.b16 %v2470
  %v2615 = vunpack.c.l.b16 %v2471
  %v2616 = vunpack.c.l.b16 %v2472
  %v2617 = vunpack.c.l.b16 %v2473
  %v2618 = vunpack.c.l.b16 %v2474
  %v2619 = vunpack.c.l.b16 %v2475
  %v2620 = vunpack.c.l.b16 %v2476
  %v2621 = vunpack.c.l.b16 %v2477
  %v2622 = vunpack.c.l.b16 %v2478
  %v2623 = vunpack.c.l.b16 %v2479
  %v2624 = vunpack.c.l.b16 %v2480
  %v2625 = vunpack.c.l.b16 %v2481
  %v2626 = vunpack.c.l.b16 %v2482
  %v2627 = vunpack.c.l.b16 %v2483
  %v2628 = vunpack.c.l.b16 %v2484
  %v2629 = vunpack.c.l.b16 %v2485
  %v2630 = vunpack.c.l.b16 %v2486
  %v2631 = vunpack.c.l.b16 %v2487
  %v2632 = vunpack.c.l.b16 %v2488
  %v2633 = vunpack.c.l.b16 %v2489
  %v2634 = vunpack.c.l.b16 %v2490
  %v2635 = vunpack.c.l.b16 %v2491
  %v2636 = vunpack.c.l.b16 %v2492
  %v2637 = vunpack.c.l.b16 %v2493
  %v2638 = vunpack.c.l.b16 %v2494
  %v2639 = vunpack.c.l.b16 %v2495
  %v2640 = vunpack.c.l.b16 %v2496
  %v2641 = vunpack.c.l.b16 %v2497
  %v2642 = vunpack.c.l.b16 %v2498
  %v2643 = vunpack.c.l.b16 %v2499
  %v2644 = vunpack.c.l.b16 %v2500
  %v2645 = vunpack.c.l.b16 %v2501
  %v2646 = vunpack.c.l.b16 %v2502
  %v2647 = vunpack.c.l.b16 %v2503
  %v2648 = vunpack.c.l.b16 %v2504
  %v2649 = vunpack.c.l.b16 %v2505
  %v2650 = vunpack.c.l.b16 %v2506
  %v2651 = vunpack.c.l.b16 %v2507
  %v2652 = vunpack.c.l.b16 %v2508
  %v2653 = vunpack.c.l.b16 %v2509
  %v2654 = vunpack.c.l.b16 %v2510
  %v2655 = vunpack.c.l.b16 %v2511
  %v2656 = vunpack.c.l.b16 %v2512
  %v2657 = vunpack.c.l.b16 %v2513
  %v2658 = vunpack.c.l.b16 %v2514
  %v2659 = vunpack.c.l.b16 %v2515
  %v2660 = vpack.c.b16 %v2597, %v2596
  %v2661 = vpack.c.b16 %v2599, %v2598
  %v2662 = vpack.c.b16 %v2601, %v2600
  %v2663 = vpack.c.b16 %v2603, %v2602
  %v2664 = vpack.c.b16 %v2605, %v2604
  %v2665 = vpack.c.b16 %v2607, %v2606
  %v2666 = vpack.c.b16 %v2609, %v2608
  %v2667 = vpack.c.b16 %v2611, %v2610
  %v2668 = vpack.c.b16 %v2613, %v2612
  %v2669 = vpack.c.b16 %v2615, %v2614
  %v2670 = vpack.c.b16 %v2617, %v2616
  %v2671 = vpack.c.b16 %v2619, %v2618
  %v2672 = vpack.c.b16 %v2621, %v2620
  %v2673 = vpack.c.b16 %v2623, %v2622
  %v2674 = vpack.c.b16 %v2625, %v2624
  %v2675 = vpack.c.b16 %v2627, %v2626
  %v2676 = vpack.c.b16 %v2629, %v2628
  %v2677 = vpack.c.b16 %v2631, %v2630
  %v2678 = vpack.c.b16 %v2633, %v2632
  %v2679 = vpack.c.b16 %v2635, %v2634
  %v2680 = vpack.c.b16 %v2637, %v2636
  %v2681 = vpack.c.b16 %v2639, %v2638
  %v2682 = vpack.c.b16 %v2641, %v2640
  %v2683 = vpack.c.b16 %v2643, %v2642
  %v2684 = vpack.c.b16 %v2645, %v2644
  %v2685 = vpack.c.b16 %v2647, %v2646
  %v2686 = vpack.c.b16 %v2649, %v2648
  %v2687 = vpack.c.b16 %v2651, %v2650
  %v2688 = vpack.c.b16 %v2653, %v2652
  %v2689 = vpack.c.b16 %v2655, %v2654
  %v2690 = vpack.c.b16 %v2657, %v2656
  %v2691 = vpack.c.b16 %v2659, %v2658
  %v2740 = vunpack.c.l.b16 %v2516
  %v2741 = vunpack.c.l.b16 %v2517
  %v2742 = vunpack.c.l.b16 %v2518
  %v2743 = vunpack.c.l.b16 %v2519
  %v2744 = vunpack.c.l.b16 %v2520
  %v2745 = vunpack.c.l.b16 %v2521
  %v2746 = vunpack.c.l.b16 %v2522
  %v2747 = vunpack.c.l.b16 %v2523
  %v2748 = vunpack.c.l.b16 %v2524
  %v2749 = vunpack.c.l.b16 %v2525
  %v2750 = vunpack.c.l.b16 %v2526
  %v2751 = vunpack.c.l.b16 %v2527
  %v2752 = vunpack.c.l.b16 %v2528
  %v2753 = vunpack.c.l.b16 %v2529
  %v2754 = vunpack.c.l.b16 %v2530
  %v2755 = vunpack.c.l.b16 %v2531
  %v2756 = vpack.c.b16 %v2741, %v2740
  %v2757 = vpack.c.b16 %v2743, %v2742
  %v2758 = vpack.c.b16 %v2745, %v2744
  %v2759 = vpack.c.b16 %v2747, %v2746
  %v2760 = vpack.c.b16 %v2749, %v2748
  %v2761 = vpack.c.b16 %v2751, %v2750
  %v2762 = vpack.c.b16 %v2753, %v2752
  %v2763 = vpack.c.b16 %v2755, %v2754
  %2772 = vmatprep.subr.bf16.mxu0 0
  %2773 = vmatpush1.bf16.msra.mxu0 %v2763
  %2774 = vmatprep.subr.bf16.mxu0 0
  %2775 = vmatpush1.bf16.msra.mxu0 %v2762
  %2776 = vmatprep.subr.bf16.mxu0 0
  %2777 = vmatpush1.bf16.msra.mxu0 %v2761
  %2778 = vmatprep.subr.bf16.mxu0 0
  %2779 = vmatpush1.bf16.msra.mxu0 %v2760
  %2780 = vmatprep.subr.bf16.mxu0 0
  %2781 = vmatpush1.bf16.msra.mxu0 %v2759
  %2782 = vmatprep.subr.bf16.mxu0 0
  %2783 = vmatpush1.bf16.msra.mxu0 %v2758
  %2784 = vmatprep.subr.bf16.mxu0 0
  %2785 = vmatpush1.bf16.msra.mxu0 %v2757
  %2786 = vmatprep.subr.bf16.mxu0 0
  %2787 = vmatpush1.bf16.msra.mxu0 %v2756
  %2788 = vmatprep.subr.bf16.mxu0 0
  %2789 = vmatpush2.bf16.msra.mxu0 0
  %2790 = vmatprep.subr.bf16.mxu0 0
  %2791 = vmatpush2.bf16.msra.mxu0 0
  %2792 = vmatprep.subr.bf16.mxu0 0
  %2793 = vmatpush2.bf16.msra.mxu0 0
  %2794 = vmatprep.subr.bf16.mxu0 0
  %2795 = vmatpush2.bf16.msra.mxu0 0
  %2796 = vmatprep.subr.bf16.mxu0 0
  %2797 = vmatpush2.bf16.msra.mxu0 0
  %2798 = vmatprep.subr.bf16.mxu0 0
  %2799 = vmatpush2.bf16.msra.mxu0 0
  %2800 = vmatprep.subr.bf16.mxu0 0
  %2801 = vmatpush2.bf16.msra.mxu0 0
  %2802 = vmatprep.subr.bf16.mxu0 0
  %2803 = vmatpush2.bf16.msra.mxu0 0
  %2804 = vmatprep.mubr.bf16.mxu0 0
  %2805 = vmatmul.mubr.bf16.gmra.mxu0 %v2660
  %v2806 = vpop.f32.mrf.mxu0
  %v2807 = vadd.f32 0.0, %v2806
  %v2808 = vpop.f32.mrf.mxu0
  %v2809 = vpop.f32.mrf.mxu0
  %v2810 = vadd.f32 0.0, %v2809
  %v2811 = vpop.f32.mrf.mxu0
  %2812 = vmatprep.mubr.bf16.mxu0 0
  %2813 = vmatmul.mubr.bf16.gmra.mxu0 %v2661
  %v2814 = vpop.f32.mrf.mxu0
  %v2815 = vadd.f32 0.0, %v2814
  %v2816 = vpop.f32.mrf.mxu0
  %v2817 = vpop.f32.mrf.mxu0
  %v2818 = vadd.f32 0.0, %v2817
  %v2819 = vpop.f32.mrf.mxu0
  %2820 = vmatprep.mubr.bf16.mxu0 0
  %2821 = vmatmul.mubr.bf16.gmra.mxu0 %v2662
  %v2822 = vpop.f32.mrf.mxu0
  %v2823 = vadd.f32 0.0, %v2822
  %v2824 = vpop.f32.mrf.mxu0
  %v2825 = vpop.f32.mrf.mxu0
  %v2826 = vadd.f32 0.0, %v2825
  %v2827 = vpop.f32.mrf.mxu0
  %2828 = vmatprep.mubr.bf16.mxu0 0
  %2829 = vmatmul.mubr.bf16.gmra.mxu0 %v2663
  %v2830 = vpop.f32.mrf.mxu0
  %v2831 = vadd.f32 0.0, %v2830
  %v2832 = vpop.f32.mrf.mxu0
  %v2833 = vpop.f32.mrf.mxu0
  %v2834 = vadd.f32 0.0, %v2833
  %v2835 = vpop.f32.mrf.mxu0
  %2836 = vmatprep.mubr.bf16.mxu0 0
  %2837 = vmatmul.mubr.bf16.gmra.mxu0 %v2664
  %v2838 = vpop.f32.mrf.mxu0
  %v2839 = vadd.f32 0.0, %v2838
  %v2840 = vpop.f32.mrf.mxu0
  %v2841 = vpop.f32.mrf.mxu0
  %v2842 = vadd.f32 0.0, %v2841
  %v2843 = vpop.f32.mrf.mxu0
  %2844 = vmatprep.mubr.bf16.mxu0 0
  %2845 = vmatmul.mubr.bf16.gmra.mxu0 %v2665
  %v2846 = vpop.f32.mrf.mxu0
  %v2847 = vadd.f32 0.0, %v2846
  %v2848 = vpop.f32.mrf.mxu0
  %v2849 = vpop.f32.mrf.mxu0
  %v2850 = vadd.f32 0.0, %v2849
  %v2851 = vpop.f32.mrf.mxu0
  %2852 = vmatprep.mubr.bf16.mxu0 0
  %2853 = vmatmul.mubr.bf16.gmra.mxu0 %v2666
  %v2854 = vpop.f32.mrf.mxu0
  %v2855 = vadd.f32 0.0, %v2854
  %v2856 = vpop.f32.mrf.mxu0
  %v2857 = vpop.f32.mrf.mxu0
  %v2858 = vadd.f32 0.0, %v2857
  %v2859 = vpop.f32.mrf.mxu0
  %2860 = vmatprep.mubr.bf16.mxu0 0
  %2861 = vmatmul.mubr.bf16.gmra.mxu0 %v2667
  %v2862 = vpop.f32.mrf.mxu0
  %v2863 = vadd.f32 0.0, %v2862
  %v2864 = vpop.f32.mrf.mxu0
  %v2865 = vpop.f32.mrf.mxu0
  %v2866 = vadd.f32 0.0, %v2865
  %v2867 = vpop.f32.mrf.mxu0
  %2868 = vmatprep.mubr.bf16.mxu0 0
  %2869 = vmatmul.mubr.bf16.gmra.mxu0 %v2668
  %v2870 = vpop.f32.mrf.mxu0
  %v2871 = vadd.f32 0.0, %v2870
  %v2872 = vpop.f32.mrf.mxu0
  %v2873 = vpop.f32.mrf.mxu0
  %v2874 = vadd.f32 0.0, %v2873
  %v2875 = vpop.f32.mrf.mxu0
  %2876 = vmatprep.mubr.bf16.mxu0 0
  %2877 = vmatmul.mubr.bf16.gmra.mxu0 %v2669
  %v2878 = vpop.f32.mrf.mxu0
  %v2879 = vadd.f32 0.0, %v2878
  %v2880 = vpop.f32.mrf.mxu0
  %v2881 = vpop.f32.mrf.mxu0
  %v2882 = vadd.f32 0.0, %v2881
  %v2883 = vpop.f32.mrf.mxu0
  %2884 = vmatprep.mubr.bf16.mxu0 0
  %2885 = vmatmul.mubr.bf16.gmra.mxu0 %v2670
  %v2886 = vpop.f32.mrf.mxu0
  %v2887 = vadd.f32 0.0, %v2886
  %v2888 = vpop.f32.mrf.mxu0
  %v2889 = vpop.f32.mrf.mxu0
  %v2890 = vadd.f32 0.0, %v2889
  %v2891 = vpop.f32.mrf.mxu0
  %2892 = vmatprep.mubr.bf16.mxu0 0
  %2893 = vmatmul.mubr.bf16.gmra.mxu0 %v2671
  %v2894 = vpop.f32.mrf.mxu0
  %v2895 = vadd.f32 0.0, %v2894
  %v2896 = vpop.f32.mrf.mxu0
  %v2897 = vpop.f32.mrf.mxu0
  %v2898 = vadd.f32 0.0, %v2897
  %v2899 = vpop.f32.mrf.mxu0
  %2900 = vmatprep.mubr.bf16.mxu0 0
  %2901 = vmatmul.mubr.bf16.gmra.mxu0 %v2672
  %v2902 = vpop.f32.mrf.mxu0
  %v2903 = vadd.f32 0.0, %v2902
  %v2904 = vpop.f32.mrf.mxu0
  %v2905 = vpop.f32.mrf.mxu0
  %v2906 = vadd.f32 0.0, %v2905
  %v2907 = vpop.f32.mrf.mxu0
  %2908 = vmatprep.mubr.bf16.mxu0 0
  %2909 = vmatmul.mubr.bf16.gmra.mxu0 %v2673
  %v2910 = vpop.f32.mrf.mxu0
  %v2911 = vadd.f32 0.0, %v2910
  %v2912 = vpop.f32.mrf.mxu0
  %v2913 = vpop.f32.mrf.mxu0
  %v2914 = vadd.f32 0.0, %v2913
  %v2915 = vpop.f32.mrf.mxu0
  %2916 = vmatprep.mubr.bf16.mxu0 0
  %2917 = vmatmul.mubr.bf16.gmra.mxu0 %v2674
  %v2918 = vpop.f32.mrf.mxu0
  %v2919 = vadd.f32 0.0, %v2918
  %v2920 = vpop.f32.mrf.mxu0
  %v2921 = vpop.f32.mrf.mxu0
  %v2922 = vadd.f32 0.0, %v2921
  %v2923 = vpop.f32.mrf.mxu0
  %2924 = vmatprep.mubr.bf16.mxu0 0
  %2925 = vmatmul.mubr.bf16.gmra.mxu0 %v2675
  %v2926 = vpop.f32.mrf.mxu0
  %v2927 = vadd.f32 0.0, %v2926
  %v2928 = vpop.f32.mrf.mxu0
  %v2929 = vpop.f32.mrf.mxu0
  %v2930 = vadd.f32 0.0, %v2929
  %v2931 = vpop.f32.mrf.mxu0
  %2932 = vmatprep.mubr.bf16.mxu0 0
  %2933 = vmatmul.mubr.bf16.gmra.mxu0 %v2676
  %v2934 = vpop.f32.mrf.mxu0
  %v2935 = vadd.f32 0.0, %v2934
  %v2936 = vpop.f32.mrf.mxu0
  %v2937 = vpop.f32.mrf.mxu0
  %v2938 = vadd.f32 0.0, %v2937
  %v2939 = vpop.f32.mrf.mxu0
  %2940 = vmatprep.mubr.bf16.mxu0 0
  %2941 = vmatmul.mubr.bf16.gmra.mxu0 %v2677
  %v2942 = vpop.f32.mrf.mxu0
  %v2943 = vadd.f32 0.0, %v2942
  %v2944 = vpop.f32.mrf.mxu0
  %v2945 = vpop.f32.mrf.mxu0
  %v2946 = vadd.f32 0.0, %v2945
  %v2947 = vpop.f32.mrf.mxu0
  %2948 = vmatprep.mubr.bf16.mxu0 0
  %2949 = vmatmul.mubr.bf16.gmra.mxu0 %v2678
  %v2950 = vpop.f32.mrf.mxu0
  %v2951 = vadd.f32 0.0, %v2950
  %v2952 = vpop.f32.mrf.mxu0
  %v2953 = vpop.f32.mrf.mxu0
  %v2954 = vadd.f32 0.0, %v2953
  %v2955 = vpop.f32.mrf.mxu0
  %2956 = vmatprep.mubr.bf16.mxu0 0
  %2957 = vmatmul.mubr.bf16.gmra.mxu0 %v2679
  %v2958 = vpop.f32.mrf.mxu0
  %v2959 = vadd.f32 0.0, %v2958
  %v2960 = vpop.f32.mrf.mxu0
  %v2961 = vpop.f32.mrf.mxu0
  %v2962 = vadd.f32 0.0, %v2961
  %v2963 = vpop.f32.mrf.mxu0
  %2964 = vmatprep.mubr.bf16.mxu0 0
  %2965 = vmatmul.mubr.bf16.gmra.mxu0 %v2680
  %v2966 = vpop.f32.mrf.mxu0
  %v2967 = vadd.f32 0.0, %v2966
  %v2968 = vpop.f32.mrf.mxu0
  %v2969 = vpop.f32.mrf.mxu0
  %v2970 = vadd.f32 0.0, %v2969
  %v2971 = vpop.f32.mrf.mxu0
  %2972 = vmatprep.mubr.bf16.mxu0 0
  %2973 = vmatmul.mubr.bf16.gmra.mxu0 %v2681
  %v2974 = vpop.f32.mrf.mxu0
  %v2975 = vadd.f32 0.0, %v2974
  %v2976 = vpop.f32.mrf.mxu0
  %v2977 = vpop.f32.mrf.mxu0
  %v2978 = vadd.f32 0.0, %v2977
  %v2979 = vpop.f32.mrf.mxu0
  %2980 = vmatprep.mubr.bf16.mxu0 0
  %2981 = vmatmul.mubr.bf16.gmra.mxu0 %v2682
  %v2982 = vpop.f32.mrf.mxu0
  %v2983 = vadd.f32 0.0, %v2982
  %v2984 = vpop.f32.mrf.mxu0
  %v2985 = vpop.f32.mrf.mxu0
  %v2986 = vadd.f32 0.0, %v2985
  %v2987 = vpop.f32.mrf.mxu0
  %2988 = vmatprep.mubr.bf16.mxu0 0
  %2989 = vmatmul.mubr.bf16.gmra.mxu0 %v2683
  %v2990 = vpop.f32.mrf.mxu0
  %v2991 = vadd.f32 0.0, %v2990
  %v2992 = vpop.f32.mrf.mxu0
  %v2993 = vpop.f32.mrf.mxu0
  %v2994 = vadd.f32 0.0, %v2993
  %v2995 = vpop.f32.mrf.mxu0
  %2996 = vmatprep.mubr.bf16.mxu0 0
  %2997 = vmatmul.mubr.bf16.gmra.mxu0 %v2684
  %v2998 = vpop.f32.mrf.mxu0
  %v2999 = vadd.f32 0.0, %v2998
  %v3000 = vpop.f32.mrf.mxu0
  %v3001 = vpop.f32.mrf.mxu0
  %v3002 = vadd.f32 0.0, %v3001
  %v3003 = vpop.f32.mrf.mxu0
  %3004 = vmatprep.mubr.bf16.mxu0 0
  %3005 = vmatmul.mubr.bf16.gmra.mxu0 %v2685
  %v3006 = vpop.f32.mrf.mxu0
  %v3007 = vadd.f32 0.0, %v3006
  %v3008 = vpop.f32.mrf.mxu0
  %v3009 = vpop.f32.mrf.mxu0
  %v3010 = vadd.f32 0.0, %v3009
  %v3011 = vpop.f32.mrf.mxu0
  %3012 = vmatprep.mubr.bf16.mxu0 0
  %3013 = vmatmul.mubr.bf16.gmra.mxu0 %v2686
  %v3014 = vpop.f32.mrf.mxu0
  %v3015 = vadd.f32 0.0, %v3014
  %v3016 = vpop.f32.mrf.mxu0
  %v3017 = vpop.f32.mrf.mxu0
  %v3018 = vadd.f32 0.0, %v3017
  %v3019 = vpop.f32.mrf.mxu0
  %3020 = vmatprep.mubr.bf16.mxu0 0
  %3021 = vmatmul.mubr.bf16.gmra.mxu0 %v2687
  %v3022 = vpop.f32.mrf.mxu0
  %v3023 = vadd.f32 0.0, %v3022
  %v3024 = vpop.f32.mrf.mxu0
  %v3025 = vpop.f32.mrf.mxu0
  %v3026 = vadd.f32 0.0, %v3025
  %v3027 = vpop.f32.mrf.mxu0
  %3028 = vmatprep.mubr.bf16.mxu0 0
  %3029 = vmatmul.mubr.bf16.gmra.mxu0 %v2688
  %v3030 = vpop.f32.mrf.mxu0
  %v3031 = vadd.f32 0.0, %v3030
  %v3032 = vpop.f32.mrf.mxu0
  %v3033 = vpop.f32.mrf.mxu0
  %v3034 = vadd.f32 0.0, %v3033
  %v3035 = vpop.f32.mrf.mxu0
  %3036 = vmatprep.mubr.bf16.mxu0 0
  %3037 = vmatmul.mubr.bf16.gmra.mxu0 %v2689
  %v3038 = vpop.f32.mrf.mxu0
  %v3039 = vadd.f32 0.0, %v3038
  %v3040 = vpop.f32.mrf.mxu0
  %v3041 = vpop.f32.mrf.mxu0
  %v3042 = vadd.f32 0.0, %v3041
  %v3043 = vpop.f32.mrf.mxu0
  %3044 = vmatprep.mubr.bf16.mxu0 0
  %3045 = vmatmul.mubr.bf16.gmra.mxu0 %v2690
  %v3046 = vpop.f32.mrf.mxu0
  %v3047 = vadd.f32 0.0, %v3046
  %v3048 = vpop.f32.mrf.mxu0
  %v3049 = vpop.f32.mrf.mxu0
  %v3050 = vadd.f32 0.0, %v3049
  %v3051 = vpop.f32.mrf.mxu0
  %3052 = vmatprep.mubr.bf16.mxu0 0
  %3053 = vmatmul.mubr.bf16.gmra.mxu0 %v2691
  %v3054 = vpop.f32.mrf.mxu0
  %v3055 = vadd.f32 0.0, %v3054
  %v3056 = vpop.f32.mrf.mxu0
  %v3057 = vpop.f32.mrf.mxu0
  %v3058 = vadd.f32 0.0, %v3057
  %v3059 = vpop.f32.mrf.mxu0
  %3060 = vdwg.mxu0
  %v3061 = vpack.c.bf16 %v2810, %v2807
  %v3062 = vpack.c.bf16 %v2818, %v2815
  %v3063 = vpack.c.bf16 %v2826, %v2823
  %v3064 = vpack.c.bf16 %v2834, %v2831
  %v3065 = vpack.c.bf16 %v2842, %v2839
  %v3066 = vpack.c.bf16 %v2850, %v2847
  %v3067 = vpack.c.bf16 %v2858, %v2855
  %v3068 = vpack.c.bf16 %v2866, %v2863
  %v3069 = vpack.c.bf16 %v2874, %v2871
  %v3070 = vpack.c.bf16 %v2882, %v2879
  %v3071 = vpack.c.bf16 %v2890, %v2887
  %v3072 = vpack.c.bf16 %v2898, %v2895
  %v3073 = vpack.c.bf16 %v2906, %v2903
  %v3074 = vpack.c.bf16 %v2914, %v2911
  %v3075 = vpack.c.bf16 %v2922, %v2919
  %v3076 = vpack.c.bf16 %v2930, %v2927
  %v3077 = vpack.c.bf16 %v2938, %v2935
  %v3078 = vpack.c.bf16 %v2946, %v2943
  %v3079 = vpack.c.bf16 %v2954, %v2951
  %v3080 = vpack.c.bf16 %v2962, %v2959
  %v3081 = vpack.c.bf16 %v2970, %v2967
  %v3082 = vpack.c.bf16 %v2978, %v2975
  %v3083 = vpack.c.bf16 %v2986, %v2983
  %v3084 = vpack.c.bf16 %v2994, %v2991
  %v3085 = vpack.c.bf16 %v3002, %v2999
  %v3086 = vpack.c.bf16 %v3010, %v3007
  %v3087 = vpack.c.bf16 %v3018, %v3015
  %v3088 = vpack.c.bf16 %v3026, %v3023
  %v3089 = vpack.c.bf16 %v3034, %v3031
  %v3090 = vpack.c.bf16 %v3042, %v3039
  %v3091 = vpack.c.bf16 %v3050, %v3047
  %v3092 = vpack.c.bf16 %v3058, %v3055
  loop: start=0, step=1, limit=4
  $region97: #{gcn_model_forward.3} parent=0 // loop_pre_header
    _
  $region98: #{gcn_model_forward.3} parent=0 // loop_header
    %s3094 = sphi 0, %s3098
    %p3095 = scmp.ge.s32.totalorder %s3094, 4
  $region99: #{gcn_model_forward.3} parent=0 // loop_header_branch
    %3097 = sbr.rel (%p3095) target = $region103
  $region100: #{gcn_model_forward.3} parent=0 // loop_body
    %s3099 = smul.u32 %s3094, 128
    %s3100 = sshra.s32 %s3099, 3
    %s3101 = sand.u32 %s3099, 7
    %s3102 = smul.u32 %s3100, 4
    %s3103 = smul.addr %s3102, 4
    %s3104 = scalar_lea.vmem [#allocation2], %s3103
    %v3105 = vld [vmem:[%s3104] sm:$0xff]
    %v3106 = vld [vmem:[%s3104 + $0x8] sm:$0xff]
    %v3107 = vld [vmem:[%s3104 + $0x10] sm:$0xff]
    %v3108 = vld [vmem:[%s3104 + $0x18] sm:$0xff]
    %v3109 = vld [vmem:[%s3104 + $0x20] sm:$0xff]
    %v3110 = vld [vmem:[%s3104 + $0x28] sm:$0xff]
    %v3111 = vld [vmem:[%s3104 + $0x30] sm:$0xff]
    %v3112 = vld [vmem:[%s3104 + $0x38] sm:$0xff]
    %v3113 = vld [vmem:[%s3104 + $0x40] sm:$0xff]
    %v3114 = vld [vmem:[%s3104 + $0x48] sm:$0xff]
    %v3115 = vld [vmem:[%s3104 + $0x50] sm:$0xff]
    %v3116 = vld [vmem:[%s3104 + $0x58] sm:$0xff]
    %v3117 = vld [vmem:[%s3104 + $0x60] sm:$0xff]
    %v3118 = vld [vmem:[%s3104 + $0x68] sm:$0xff]
    %v3119 = vld [vmem:[%s3104 + $0x70] sm:$0xff]
    %v3120 = vld [vmem:[%s3104 + $0x78] sm:$0xff]
    %v3121 = vld [vmem:[%s3104 + $0x80] sm:$0xff]
    %v3122 = vld [vmem:[%s3104 + $0x88] sm:$0xff]
    %v3123 = vld [vmem:[%s3104 + $0x90] sm:$0xff]
    %v3124 = vld [vmem:[%s3104 + $0x98] sm:$0xff]
    %v3125 = vld [vmem:[%s3104 + $0xa0] sm:$0xff]
    %v3126 = vld [vmem:[%s3104 + $0xa8] sm:$0xff]
    %v3127 = vld [vmem:[%s3104 + $0xb0] sm:$0xff]
    %v3128 = vld [vmem:[%s3104 + $0xb8] sm:$0xff]
    %v3129 = vld [vmem:[%s3104 + $0xc0] sm:$0xff]
    %v3130 = vld [vmem:[%s3104 + $0xc8] sm:$0xff]
    %v3131 = vld [vmem:[%s3104 + $0xd0] sm:$0xff]
    %v3132 = vld [vmem:[%s3104 + $0xd8] sm:$0xff]
    %v3133 = vld [vmem:[%s3104 + $0xe0] sm:$0xff]
    %v3134 = vld [vmem:[%s3104 + $0xe8] sm:$0xff]
    %v3135 = vld [vmem:[%s3104 + $0xf0] sm:$0xff]
    %v3136 = vld [vmem:[%s3104 + $0xf8] sm:$0xff]
    %v3137 = vld [vmem:[%s7] sm:$0x1]
    %v3139 = vlaneseq
    %v3140 = vshrl.u32 %v3139, 7
    %v3141 = vsub.s32 0, %v3140
    %v3142 = vrot.slane %v3137, %v3141
    %v3176 = vunpack.c.l.b16 %v3105
    %v3177 = vunpack.c.h.b16 %v3105
    %v3178 = vunpack.c.l.b16 %v3106
    %v3179 = vunpack.c.h.b16 %v3106
    %v3180 = vunpack.c.l.b16 %v3107
    %v3181 = vunpack.c.h.b16 %v3107
    %v3182 = vunpack.c.l.b16 %v3108
    %v3183 = vunpack.c.h.b16 %v3108
    %v3184 = vunpack.c.l.b16 %v3109
    %v3185 = vunpack.c.h.b16 %v3109
    %v3186 = vunpack.c.l.b16 %v3110
    %v3187 = vunpack.c.h.b16 %v3110
    %v3188 = vunpack.c.l.b16 %v3111
    %v3189 = vunpack.c.h.b16 %v3111
    %v3190 = vunpack.c.l.b16 %v3112
    %v3191 = vunpack.c.h.b16 %v3112
    %v3192 = vunpack.c.l.b16 %v3113
    %v3193 = vunpack.c.h.b16 %v3113
    %v3194 = vunpack.c.l.b16 %v3114
    %v3195 = vunpack.c.h.b16 %v3114
    %v3196 = vunpack.c.l.b16 %v3115
    %v3197 = vunpack.c.h.b16 %v3115
    %v3198 = vunpack.c.l.b16 %v3116
    %v3199 = vunpack.c.h.b16 %v3116
    %v3200 = vunpack.c.l.b16 %v3117
    %v3201 = vunpack.c.h.b16 %v3117
    %v3202 = vunpack.c.l.b16 %v3118
    %v3203 = vunpack.c.h.b16 %v3118
    %v3204 = vunpack.c.l.b16 %v3119
    %v3205 = vunpack.c.h.b16 %v3119
    %v3206 = vunpack.c.l.b16 %v3120
    %v3207 = vunpack.c.h.b16 %v3120
    %v3208 = vunpack.c.l.b16 %v3121
    %v3209 = vunpack.c.h.b16 %v3121
    %v3210 = vunpack.c.l.b16 %v3122
    %v3211 = vunpack.c.h.b16 %v3122
    %v3212 = vunpack.c.l.b16 %v3123
    %v3213 = vunpack.c.h.b16 %v3123
    %v3214 = vunpack.c.l.b16 %v3124
    %v3215 = vunpack.c.h.b16 %v3124
    %v3216 = vunpack.c.l.b16 %v3125
    %v3217 = vunpack.c.h.b16 %v3125
    %v3218 = vunpack.c.l.b16 %v3126
    %v3219 = vunpack.c.h.b16 %v3126
    %v3220 = vunpack.c.l.b16 %v3127
    %v3221 = vunpack.c.h.b16 %v3127
    %v3222 = vunpack.c.l.b16 %v3128
    %v3223 = vunpack.c.h.b16 %v3128
    %v3224 = vunpack.c.l.b16 %v3129
    %v3225 = vunpack.c.h.b16 %v3129
    %v3226 = vunpack.c.l.b16 %v3130
    %v3227 = vunpack.c.h.b16 %v3130
    %v3228 = vunpack.c.l.b16 %v3131
    %v3229 = vunpack.c.h.b16 %v3131
    %v3230 = vunpack.c.l.b16 %v3132
    %v3231 = vunpack.c.h.b16 %v3132
    %v3232 = vunpack.c.l.b16 %v3133
    %v3233 = vunpack.c.h.b16 %v3133
    %v3234 = vunpack.c.l.b16 %v3134
    %v3235 = vunpack.c.h.b16 %v3134
    %v3236 = vunpack.c.l.b16 %v3135
    %v3237 = vunpack.c.h.b16 %v3135
    %v3238 = vunpack.c.l.b16 %v3136
    %v3239 = vunpack.c.h.b16 %v3136
    %v3240 = vpack.c.b16 %v3180, %v3176
    %v3241 = vpack.c.b16 %v3181, %v3177
    %v3242 = vpack.c.b16 %v3182, %v3178
    %v3243 = vpack.c.b16 %v3183, %v3179
    %v3244 = vpack.c.b16 %v3188, %v3184
    %v3245 = vpack.c.b16 %v3189, %v3185
    %v3246 = vpack.c.b16 %v3190, %v3186
    %v3247 = vpack.c.b16 %v3191, %v3187
    %v3248 = vpack.c.b16 %v3196, %v3192
    %v3249 = vpack.c.b16 %v3197, %v3193
    %v3250 = vpack.c.b16 %v3198, %v3194
    %v3251 = vpack.c.b16 %v3199, %v3195
    %v3252 = vpack.c.b16 %v3204, %v3200
    %v3253 = vpack.c.b16 %v3205, %v3201
    %v3254 = vpack.c.b16 %v3206, %v3202
    %v3255 = vpack.c.b16 %v3207, %v3203
    %v3256 = vpack.c.b16 %v3212, %v3208
    %v3257 = vpack.c.b16 %v3213, %v3209
    %v3258 = vpack.c.b16 %v3214, %v3210
    %v3259 = vpack.c.b16 %v3215, %v3211
    %v3260 = vpack.c.b16 %v3220, %v3216
    %v3261 = vpack.c.b16 %v3221, %v3217
    %v3262 = vpack.c.b16 %v3222, %v3218
    %v3263 = vpack.c.b16 %v3223, %v3219
    %v3264 = vpack.c.b16 %v3228, %v3224
    %v3265 = vpack.c.b16 %v3229, %v3225
    %v3266 = vpack.c.b16 %v3230, %v3226
    %v3267 = vpack.c.b16 %v3231, %v3227
    %v3268 = vpack.c.b16 %v3236, %v3232
    %v3269 = vpack.c.b16 %v3237, %v3233
    %v3270 = vpack.c.b16 %v3238, %v3234
    %v3271 = vpack.c.b16 %v3239, %v3235
    %3304 = vmatprep.subr.bf16.mxu0 0
    %3305 = vmatpush1.bf16.msra.mxu0 %v3068
    %3306 = vmatprep.subr.bf16.mxu0 0
    %3307 = vmatpush1.bf16.msra.mxu0 %v3067
    %3308 = vmatprep.subr.bf16.mxu0 0
    %3309 = vmatpush1.bf16.msra.mxu0 %v3066
    %3310 = vmatprep.subr.bf16.mxu0 0
    %3311 = vmatpush1.bf16.msra.mxu0 %v3065
    %3312 = vmatprep.subr.bf16.mxu0 0
    %3313 = vmatpush1.bf16.msra.mxu0 %v3064
    %3314 = vmatprep.subr.bf16.mxu0 0
    %3315 = vmatpush1.bf16.msra.mxu0 %v3063
    %3316 = vmatprep.subr.bf16.mxu0 0
    %3317 = vmatpush1.bf16.msra.mxu0 %v3062
    %3318 = vmatprep.subr.bf16.mxu0 0
    %3319 = vmatpush1.bf16.msra.mxu0 %v3061
    %3320 = vmatprep.subr.bf16.mxu0 0
    %3321 = vmatpush2.bf16.msra.mxu0 %v3076
    %3322 = vmatprep.subr.bf16.mxu0 0
    %3323 = vmatpush2.bf16.msra.mxu0 %v3075
    %3324 = vmatprep.subr.bf16.mxu0 0
    %3325 = vmatpush2.bf16.msra.mxu0 %v3074
    %3326 = vmatprep.subr.bf16.mxu0 0
    %3327 = vmatpush2.bf16.msra.mxu0 %v3073
    %3328 = vmatprep.subr.bf16.mxu0 0
    %3329 = vmatpush2.bf16.msra.mxu0 %v3072
    %3330 = vmatprep.subr.bf16.mxu0 0
    %3331 = vmatpush2.bf16.msra.mxu0 %v3071
    %3332 = vmatprep.subr.bf16.mxu0 0
    %3333 = vmatpush2.bf16.msra.mxu0 %v3070
    %3334 = vmatprep.subr.bf16.mxu0 0
    %3335 = vmatpush2.bf16.msra.mxu0 %v3069
    %3336 = vmatprep.mubr.bf16.mxu0 %v3241
    %3337 = vmatmul.mubr.bf16.gmra.mxu0 %v3240
    %v3338 = vpop.f32.mrf.mxu0
    %v3339 = vadd.f32 %v3142, %v3338
    %v3340 = vpop.f32.mrf.mxu0
    %v3341 = vpop.f32.mrf.mxu0
    %v3342 = vadd.f32 %v3142, %v3341
    %v3343 = vpop.f32.mrf.mxu0
    %3344 = vmatprep.mubr.bf16.mxu0 %v3245
    %3345 = vmatmul.mubr.bf16.gmra.mxu0 %v3244
    %v3346 = vpop.f32.mrf.mxu0
    %v3347 = vadd.f32 %v3142, %v3346
    %v3348 = vpop.f32.mrf.mxu0
    %v3349 = vpop.f32.mrf.mxu0
    %v3350 = vadd.f32 %v3142, %v3349
    %v3351 = vpop.f32.mrf.mxu0
    %3352 = vmatprep.mubr.bf16.mxu0 %v3249
    %3353 = vmatmul.mubr.bf16.gmra.mxu0 %v3248
    %v3354 = vpop.f32.mrf.mxu0
    %v3355 = vadd.f32 %v3142, %v3354
    %v3356 = vpop.f32.mrf.mxu0
    %v3357 = vpop.f32.mrf.mxu0
    %v3358 = vadd.f32 %v3142, %v3357
    %v3359 = vpop.f32.mrf.mxu0
    %3360 = vmatprep.mubr.bf16.mxu0 %v3253
    %3361 = vmatmul.mubr.bf16.gmra.mxu0 %v3252
    %v3362 = vpop.f32.mrf.mxu0
    %v3363 = vadd.f32 %v3142, %v3362
    %v3364 = vpop.f32.mrf.mxu0
    %v3365 = vpop.f32.mrf.mxu0
    %v3366 = vadd.f32 %v3142, %v3365
    %v3367 = vpop.f32.mrf.mxu0
    %3368 = vmatprep.mubr.bf16.mxu0 %v3257
    %3369 = vmatmul.mubr.bf16.gmra.mxu0 %v3256
    %v3370 = vpop.f32.mrf.mxu0
    %v3371 = vadd.f32 %v3142, %v3370
    %v3372 = vpop.f32.mrf.mxu0
    %v3373 = vpop.f32.mrf.mxu0
    %v3374 = vadd.f32 %v3142, %v3373
    %v3375 = vpop.f32.mrf.mxu0
    %3376 = vmatprep.mubr.bf16.mxu0 %v3261
    %3377 = vmatmul.mubr.bf16.gmra.mxu0 %v3260
    %v3378 = vpop.f32.mrf.mxu0
    %v3379 = vadd.f32 %v3142, %v3378
    %v3380 = vpop.f32.mrf.mxu0
    %v3381 = vpop.f32.mrf.mxu0
    %v3382 = vadd.f32 %v3142, %v3381
    %v3383 = vpop.f32.mrf.mxu0
    %3384 = vmatprep.mubr.bf16.mxu0 %v3265
    %3385 = vmatmul.mubr.bf16.gmra.mxu0 %v3264
    %v3386 = vpop.f32.mrf.mxu0
    %v3387 = vadd.f32 %v3142, %v3386
    %v3388 = vpop.f32.mrf.mxu0
    %v3389 = vpop.f32.mrf.mxu0
    %v3390 = vadd.f32 %v3142, %v3389
    %v3391 = vpop.f32.mrf.mxu0
    %3392 = vmatprep.mubr.bf16.mxu0 %v3269
    %3393 = vmatmul.mubr.bf16.gmra.mxu0 %v3268
    %v3394 = vpop.f32.mrf.mxu0
    %v3395 = vadd.f32 %v3142, %v3394
    %v3396 = vpop.f32.mrf.mxu0
    %v3397 = vpop.f32.mrf.mxu0
    %v3398 = vadd.f32 %v3142, %v3397
    %v3399 = vpop.f32.mrf.mxu0
    %3400 = vdwg.mxu0
    %3401 = vmatprep.subr.bf16.mxu0 0
    %3402 = vmatpush1.bf16.msra.mxu0 %v3084
    %3403 = vmatprep.subr.bf16.mxu0 0
    %3404 = vmatpush1.bf16.msra.mxu0 %v3083
    %3405 = vmatprep.subr.bf16.mxu0 0
    %3406 = vmatpush1.bf16.msra.mxu0 %v3082
    %3407 = vmatprep.subr.bf16.mxu0 0
    %3408 = vmatpush1.bf16.msra.mxu0 %v3081
    %3409 = vmatprep.subr.bf16.mxu0 0
    %3410 = vmatpush1.bf16.msra.mxu0 %v3080
    %3411 = vmatprep.subr.bf16.mxu0 0
    %3412 = vmatpush1.bf16.msra.mxu0 %v3079
    %3413 = vmatprep.subr.bf16.mxu0 0
    %3414 = vmatpush1.bf16.msra.mxu0 %v3078
    %3415 = vmatprep.subr.bf16.mxu0 0
    %3416 = vmatpush1.bf16.msra.mxu0 %v3077
    %3417 = vmatprep.subr.bf16.mxu0 0
    %3418 = vmatpush2.bf16.msra.mxu0 %v3092
    %3419 = vmatprep.subr.bf16.mxu0 0
    %3420 = vmatpush2.bf16.msra.mxu0 %v3091
    %3421 = vmatprep.subr.bf16.mxu0 0
    %3422 = vmatpush2.bf16.msra.mxu0 %v3090
    %3423 = vmatprep.subr.bf16.mxu0 0
    %3424 = vmatpush2.bf16.msra.mxu0 %v3089
    %3425 = vmatprep.subr.bf16.mxu0 0
    %3426 = vmatpush2.bf16.msra.mxu0 %v3088
    %3427 = vmatprep.subr.bf16.mxu0 0
    %3428 = vmatpush2.bf16.msra.mxu0 %v3087
    %3429 = vmatprep.subr.bf16.mxu0 0
    %3430 = vmatpush2.bf16.msra.mxu0 %v3086
    %3431 = vmatprep.subr.bf16.mxu0 0
    %3432 = vmatpush2.bf16.msra.mxu0 %v3085
    %3433 = vmatprep.mubr.bf16.mxu0 %v3243
    %3434 = vmatmul.mubr.bf16.gmra.mxu0 %v3242
    %v3435 = vpop.f32.mrf.mxu0
    %v3436 = vadd.f32 %v3339, %v3435
    %v3437 = vpop.f32.mrf.mxu0
    %v3438 = vpop.f32.mrf.mxu0
    %v3439 = vadd.f32 %v3342, %v3438
    %v3440 = vpop.f32.mrf.mxu0
    %3441 = vmatprep.mubr.bf16.mxu0 %v3247
    %3442 = vmatmul.mubr.bf16.gmra.mxu0 %v3246
    %v3443 = vpop.f32.mrf.mxu0
    %v3444 = vadd.f32 %v3347, %v3443
    %v3445 = vpop.f32.mrf.mxu0
    %v3446 = vpop.f32.mrf.mxu0
    %v3447 = vadd.f32 %v3350, %v3446
    %v3448 = vpop.f32.mrf.mxu0
    %3449 = vmatprep.mubr.bf16.mxu0 %v3251
    %3450 = vmatmul.mubr.bf16.gmra.mxu0 %v3250
    %v3451 = vpop.f32.mrf.mxu0
    %v3452 = vadd.f32 %v3355, %v3451
    %v3453 = vpop.f32.mrf.mxu0
    %v3454 = vpop.f32.mrf.mxu0
    %v3455 = vadd.f32 %v3358, %v3454
    %v3456 = vpop.f32.mrf.mxu0
    %3457 = vmatprep.mubr.bf16.mxu0 %v3255
    %3458 = vmatmul.mubr.bf16.gmra.mxu0 %v3254
    %v3459 = vpop.f32.mrf.mxu0
    %v3460 = vadd.f32 %v3363, %v3459
    %v3461 = vpop.f32.mrf.mxu0
    %v3462 = vpop.f32.mrf.mxu0
    %v3463 = vadd.f32 %v3366, %v3462
    %v3464 = vpop.f32.mrf.mxu0
    %3465 = vmatprep.mubr.bf16.mxu0 %v3259
    %3466 = vmatmul.mubr.bf16.gmra.mxu0 %v3258
    %v3467 = vpop.f32.mrf.mxu0
    %v3468 = vadd.f32 %v3371, %v3467
    %v3469 = vpop.f32.mrf.mxu0
    %v3470 = vpop.f32.mrf.mxu0
    %v3471 = vadd.f32 %v3374, %v3470
    %v3472 = vpop.f32.mrf.mxu0
    %3473 = vmatprep.mubr.bf16.mxu0 %v3263
    %3474 = vmatmul.mubr.bf16.gmra.mxu0 %v3262
    %v3475 = vpop.f32.mrf.mxu0
    %v3476 = vadd.f32 %v3379, %v3475
    %v3477 = vpop.f32.mrf.mxu0
    %v3478 = vpop.f32.mrf.mxu0
    %v3479 = vadd.f32 %v3382, %v3478
    %v3480 = vpop.f32.mrf.mxu0
    %3481 = vmatprep.mubr.bf16.mxu0 %v3267
    %3482 = vmatmul.mubr.bf16.gmra.mxu0 %v3266
    %v3483 = vpop.f32.mrf.mxu0
    %v3484 = vadd.f32 %v3387, %v3483
    %v3485 = vpop.f32.mrf.mxu0
    %v3486 = vpop.f32.mrf.mxu0
    %v3487 = vadd.f32 %v3390, %v3486
    %v3488 = vpop.f32.mrf.mxu0
    %3489 = vmatprep.mubr.bf16.mxu0 %v3271
    %3490 = vmatmul.mubr.bf16.gmra.mxu0 %v3270
    %v3491 = vpop.f32.mrf.mxu0
    %v3492 = vadd.f32 %v3395, %v3491
    %v3493 = vpop.f32.mrf.mxu0
    %v3494 = vpop.f32.mrf.mxu0
    %v3495 = vadd.f32 %v3398, %v3494
    %v3496 = vpop.f32.mrf.mxu0
    %3497 = vdwg.mxu0
    %v3498 = vmax.f32 %v3436, 0.0
    %v3499 = vmax.f32 %v3439, 0.0
    %v3500 = vmax.f32 %v3444, 0.0
    %v3501 = vmax.f32 %v3447, 0.0
    %v3502 = vmax.f32 %v3452, 0.0
    %v3503 = vmax.f32 %v3455, 0.0
    %v3504 = vmax.f32 %v3460, 0.0
    %v3505 = vmax.f32 %v3463, 0.0
    %v3506 = vmax.f32 %v3468, 0.0
    %v3507 = vmax.f32 %v3471, 0.0
    %v3508 = vmax.f32 %v3476, 0.0
    %v3509 = vmax.f32 %v3479, 0.0
    %v3510 = vmax.f32 %v3484, 0.0
    %v3511 = vmax.f32 %v3487, 0.0
    %v3512 = vmax.f32 %v3492, 0.0
    %v3513 = vmax.f32 %v3495, 0.0
    %s3514 = scalar_lea.vmem [#allocation4], %s3099
    %3515 = vst [vmem:[%s3514] sm:$0xff] %v3498
    %3516 = vst [vmem:[%s3514 + $0x8] sm:$0xff] %v3499
    %3517 = vst [vmem:[%s3514 + $0x10] sm:$0xff] %v3500
    %3518 = vst [vmem:[%s3514 + $0x18] sm:$0xff] %v3501
    %3519 = vst [vmem:[%s3514 + $0x20] sm:$0xff] %v3502
    %3520 = vst [vmem:[%s3514 + $0x28] sm:$0xff] %v3503
    %3521 = vst [vmem:[%s3514 + $0x30] sm:$0xff] %v3504
    %3522 = vst [vmem:[%s3514 + $0x38] sm:$0xff] %v3505
    %3523 = vst [vmem:[%s3514 + $0x40] sm:$0xff] %v3506
    %3524 = vst [vmem:[%s3514 + $0x48] sm:$0xff] %v3507
    %3525 = vst [vmem:[%s3514 + $0x50] sm:$0xff] %v3508
    %3526 = vst [vmem:[%s3514 + $0x58] sm:$0xff] %v3509
    %3527 = vst [vmem:[%s3514 + $0x60] sm:$0xff] %v3510
    %3528 = vst [vmem:[%s3514 + $0x68] sm:$0xff] %v3511
    %3529 = vst [vmem:[%s3514 + $0x70] sm:$0xff] %v3512
    %3530 = vst [vmem:[%s3514 + $0x78] sm:$0xff] %v3513
  $region101: #{gcn_model_forward.3} parent=0 // loop_footer
    %s3098 = sadd.s32 1, %s3094
  $region102: #{gcn_model_forward.3} parent=0 // loop_footer_branch
    %3093 = sbr.rel target = $region98
  $region103: #{gcn_model_forward.3} parent=0 // loop_exit
    _
  %v3531 = vld [vmem:[%s8] sm:$0xff]
  %v3532 = vld [vmem:[%s8 + $0x8] sm:$0xff]
  %v3533 = vld [vmem:[%s8 + $0x10] sm:$0xff]
  %v3534 = vld [vmem:[%s8 + $0x18] sm:$0xff]
  %v3535 = vld [vmem:[#allocation4] sm:$0xff]
  %v3536 = vld [vmem:[#allocation4 + $0x8] sm:$0xff]
  %v3537 = vld [vmem:[#allocation4 + $0x10] sm:$0xff]
  %v3538 = vld [vmem:[#allocation4 + $0x18] sm:$0xff]
  %v3539 = vld [vmem:[#allocation4 + $0x20] sm:$0xff]
  %v3540 = vld [vmem:[#allocation4 + $0x28] sm:$0xff]
  %v3541 = vld [vmem:[#allocation4 + $0x30] sm:$0xff]
  %v3542 = vld [vmem:[#allocation4 + $0x38] sm:$0xff]
  %v3543 = vld [vmem:[#allocation4 + $0x40] sm:$0xff]
  %v3544 = vld [vmem:[#allocation4 + $0x48] sm:$0xff]
  %v3545 = vld [vmem:[#allocation4 + $0x50] sm:$0xff]
  %v3546 = vld [vmem:[#allocation4 + $0x58] sm:$0xff]
  %v3547 = vld [vmem:[#allocation4 + $0x60] sm:$0xff]
  %v3548 = vld [vmem:[#allocation4 + $0x68] sm:$0xff]
  %v3549 = vld [vmem:[#allocation4 + $0x70] sm:$0xff]
  %v3550 = vld [vmem:[#allocation4 + $0x78] sm:$0xff]
  %v3551 = vld [vmem:[#allocation4 + $0x80] sm:$0xff]
  %v3552 = vld [vmem:[#allocation4 + $0x88] sm:$0xff]
  %v3553 = vld [vmem:[#allocation4 + $0x90] sm:$0xff]
  %v3554 = vld [vmem:[#allocation4 + $0x98] sm:$0xff]
  %v3555 = vld [vmem:[#allocation4 + $0xa0] sm:$0xff]
  %v3556 = vld [vmem:[#allocation4 + $0xa8] sm:$0xff]
  %v3557 = vld [vmem:[#allocation4 + $0xb0] sm:$0xff]
  %v3558 = vld [vmem:[#allocation4 + $0xb8] sm:$0xff]
  %v3559 = vld [vmem:[#allocation4 + $0xc0] sm:$0xff]
  %v3560 = vld [vmem:[#allocation4 + $0xc8] sm:$0xff]
  %v3561 = vld [vmem:[#allocation4 + $0xd0] sm:$0xff]
  %v3562 = vld [vmem:[#allocation4 + $0xd8] sm:$0xff]
  %v3563 = vld [vmem:[#allocation4 + $0xe0] sm:$0xff]
  %v3564 = vld [vmem:[#allocation4 + $0xe8] sm:$0xff]
  %v3565 = vld [vmem:[#allocation4 + $0xf0] sm:$0xff]
  %v3566 = vld [vmem:[#allocation4 + $0xf8] sm:$0xff]
  %v3567 = vld [vmem:[#allocation4 + $0x100] sm:$0xff]
  %v3568 = vld [vmem:[#allocation4 + $0x108] sm:$0xff]
  %v3569 = vld [vmem:[#allocation4 + $0x110] sm:$0xff]
  %v3570 = vld [vmem:[#allocation4 + $0x118] sm:$0xff]
  %v3571 = vld [vmem:[#allocation4 + $0x120] sm:$0xff]
  %v3572 = vld [vmem:[#allocation4 + $0x128] sm:$0xff]
  %v3573 = vld [vmem:[#allocation4 + $0x130] sm:$0xff]
  %v3574 = vld [vmem:[#allocation4 + $0x138] sm:$0xff]
  %v3575 = vld [vmem:[#allocation4 + $0x140] sm:$0xff]
  %v3576 = vld [vmem:[#allocation4 + $0x148] sm:$0xff]
  %v3577 = vld [vmem:[#allocation4 + $0x150] sm:$0xff]
  %v3578 = vld [vmem:[#allocation4 + $0x158] sm:$0xff]
  %v3579 = vld [vmem:[#allocation4 + $0x160] sm:$0xff]
  %v3580 = vld [vmem:[#allocation4 + $0x168] sm:$0xff]
  %v3581 = vld [vmem:[#allocation4 + $0x170] sm:$0xff]
  %v3582 = vld [vmem:[#allocation4 + $0x178] sm:$0xff]
  %v3583 = vld [vmem:[#allocation4 + $0x180] sm:$0xff]
  %v3584 = vld [vmem:[#allocation4 + $0x188] sm:$0xff]
  %v3585 = vld [vmem:[#allocation4 + $0x190] sm:$0xff]
  %v3586 = vld [vmem:[#allocation4 + $0x198] sm:$0xff]
  %v3587 = vld [vmem:[#allocation4 + $0x1a0] sm:$0xff]
  %v3588 = vld [vmem:[#allocation4 + $0x1a8] sm:$0xff]
  %v3589 = vld [vmem:[#allocation4 + $0x1b0] sm:$0xff]
  %v3590 = vld [vmem:[#allocation4 + $0x1b8] sm:$0xff]
  %v3591 = vld [vmem:[#allocation4 + $0x1c0] sm:$0xff]
  %v3592 = vld [vmem:[#allocation4 + $0x1c8] sm:$0xff]
  %v3593 = vld [vmem:[#allocation4 + $0x1d0] sm:$0xff]
  %v3594 = vld [vmem:[#allocation4 + $0x1d8] sm:$0xff]
  %v3595 = vld [vmem:[#allocation4 + $0x1e0] sm:$0xff]
  %v3596 = vld [vmem:[#allocation4 + $0x1e8] sm:$0xff]
  %v3597 = vld [vmem:[#allocation4 + $0x1f0] sm:$0xff]
  %v3598 = vld [vmem:[#allocation4 + $0x1f8] sm:$0xff]
  %3599 = vmatprep.subr.mxu0 0.0
  %3600 = vmatpush1.msra.mxu0 %v3550
  %3601 = vmatprep.subr.mxu0 0.0
  %3602 = vmatpush1.msra.mxu0 %v3549
  %3603 = vmatprep.subr.mxu0 0.0
  %3604 = vmatpush1.msra.mxu0 %v3548
  %3605 = vmatprep.subr.mxu0 0.0
  %3606 = vmatpush1.msra.mxu0 %v3547
  %3607 = vmatprep.subr.mxu0 0.0
  %3608 = vmatpush1.msra.mxu0 %v3546
  %3609 = vmatprep.subr.mxu0 0.0
  %3610 = vmatpush1.msra.mxu0 %v3545
  %3611 = vmatprep.subr.mxu0 0.0
  %3612 = vmatpush1.msra.mxu0 %v3544
  %3613 = vmatprep.subr.mxu0 0.0
  %3614 = vmatpush1.msra.mxu0 %v3543
  %3615 = vmatprep.subr.mxu0 0.0
  %3616 = vmatpush1.msra.mxu0 %v3542
  %3617 = vmatprep.subr.mxu0 0.0
  %3618 = vmatpush1.msra.mxu0 %v3541
  %3619 = vmatprep.subr.mxu0 0.0
  %3620 = vmatpush1.msra.mxu0 %v3540
  %3621 = vmatprep.subr.mxu0 0.0
  %3622 = vmatpush1.msra.mxu0 %v3539
  %3623 = vmatprep.subr.mxu0 0.0
  %3624 = vmatpush1.msra.mxu0 %v3538
  %3625 = vmatprep.subr.mxu0 0.0
  %3626 = vmatpush1.msra.mxu0 %v3537
  %3627 = vmatprep.subr.mxu0 0.0
  %3628 = vmatpush1.msra.mxu0 %v3536
  %3629 = vmatprep.subr.mxu0 0.0
  %3630 = vmatpush1.msra.mxu0 %v3535
  %3631 = vmatprep.subr.mxu0 0.0
  %3632 = vmatpush2.msra.mxu0 %v3566
  %3633 = vmatprep.subr.mxu0 0.0
  %3634 = vmatpush2.msra.mxu0 %v3565
  %3635 = vmatprep.subr.mxu0 0.0
  %3636 = vmatpush2.msra.mxu0 %v3564
  %3637 = vmatprep.subr.mxu0 0.0
  %3638 = vmatpush2.msra.mxu0 %v3563
  %3639 = vmatprep.subr.mxu0 0.0
  %3640 = vmatpush2.msra.mxu0 %v3562
  %3641 = vmatprep.subr.mxu0 0.0
  %3642 = vmatpush2.msra.mxu0 %v3561
  %3643 = vmatprep.subr.mxu0 0.0
  %3644 = vmatpush2.msra.mxu0 %v3560
  %3645 = vmatprep.subr.mxu0 0.0
  %3646 = vmatpush2.msra.mxu0 %v3559
  %3647 = vmatprep.subr.mxu0 0.0
  %3648 = vmatpush2.msra.mxu0 %v3558
  %3649 = vmatprep.subr.mxu0 0.0
  %3650 = vmatpush2.msra.mxu0 %v3557
  %3651 = vmatprep.subr.mxu0 0.0
  %3652 = vmatpush2.msra.mxu0 %v3556
  %3653 = vmatprep.subr.mxu0 0.0
  %3654 = vmatpush2.msra.mxu0 %v3555
  %3655 = vmatprep.subr.mxu0 0.0
  %3656 = vmatpush2.msra.mxu0 %v3554
  %3657 = vmatprep.subr.mxu0 0.0
  %3658 = vmatpush2.msra.mxu0 %v3553
  %3659 = vmatprep.subr.mxu0 0.0
  %3660 = vmatpush2.msra.mxu0 %v3552
  %3661 = vmatprep.subr.mxu0 0.0
  %3662 = vmatpush2.msra.mxu0 %v3551
  %3663 = vmatprep.mubr.f32.mxu0 %v3532
  %3664 = vmatmul.mubr.f32.gmra.mxu0 %v3531
  %v3665 = vpop.f32.mrf.mxu0
  %v3666 = vadd.f32 0.0, %v3665
  %v3667 = vpop.f32.mrf.mxu0
  %3668 = vdwg.mxu0
  %3669 = vmatprep.subr.mxu0 0.0
  %3670 = vmatpush1.msra.mxu0 %v3582
  %3671 = vmatprep.subr.mxu0 0.0
  %3672 = vmatpush1.msra.mxu0 %v3581
  %3673 = vmatprep.subr.mxu0 0.0
  %3674 = vmatpush1.msra.mxu0 %v3580
  %3675 = vmatprep.subr.mxu0 0.0
  %3676 = vmatpush1.msra.mxu0 %v3579
  %3677 = vmatprep.subr.mxu0 0.0
  %3678 = vmatpush1.msra.mxu0 %v3578
  %3679 = vmatprep.subr.mxu0 0.0
  %3680 = vmatpush1.msra.mxu0 %v3577
  %3681 = vmatprep.subr.mxu0 0.0
  %3682 = vmatpush1.msra.mxu0 %v3576
  %3683 = vmatprep.subr.mxu0 0.0
  %3684 = vmatpush1.msra.mxu0 %v3575
  %3685 = vmatprep.subr.mxu0 0.0
  %3686 = vmatpush1.msra.mxu0 %v3574
  %3687 = vmatprep.subr.mxu0 0.0
  %3688 = vmatpush1.msra.mxu0 %v3573
  %3689 = vmatprep.subr.mxu0 0.0
  %3690 = vmatpush1.msra.mxu0 %v3572
  %3691 = vmatprep.subr.mxu0 0.0
  %3692 = vmatpush1.msra.mxu0 %v3571
  %3693 = vmatprep.subr.mxu0 0.0
  %3694 = vmatpush1.msra.mxu0 %v3570
  %3695 = vmatprep.subr.mxu0 0.0
  %3696 = vmatpush1.msra.mxu0 %v3569
  %3697 = vmatprep.subr.mxu0 0.0
  %3698 = vmatpush1.msra.mxu0 %v3568
  %3699 = vmatprep.subr.mxu0 0.0
  %3700 = vmatpush1.msra.mxu0 %v3567
  %3701 = vmatprep.subr.mxu0 0.0
  %3702 = vmatpush2.msra.mxu0 %v3598
  %3703 = vmatprep.subr.mxu0 0.0
  %3704 = vmatpush2.msra.mxu0 %v3597
  %3705 = vmatprep.subr.mxu0 0.0
  %3706 = vmatpush2.msra.mxu0 %v3596
  %3707 = vmatprep.subr.mxu0 0.0
  %3708 = vmatpush2.msra.mxu0 %v3595
  %3709 = vmatprep.subr.mxu0 0.0
  %3710 = vmatpush2.msra.mxu0 %v3594
  %3711 = vmatprep.subr.mxu0 0.0
  %3712 = vmatpush2.msra.mxu0 %v3593
  %3713 = vmatprep.subr.mxu0 0.0
  %3714 = vmatpush2.msra.mxu0 %v3592
  %3715 = vmatprep.subr.mxu0 0.0
  %3716 = vmatpush2.msra.mxu0 %v3591
  %3717 = vmatprep.subr.mxu0 0.0
  %3718 = vmatpush2.msra.mxu0 %v3590
  %3719 = vmatprep.subr.mxu0 0.0
  %3720 = vmatpush2.msra.mxu0 %v3589
  %3721 = vmatprep.subr.mxu0 0.0
  %3722 = vmatpush2.msra.mxu0 %v3588
  %3723 = vmatprep.subr.mxu0 0.0
  %3724 = vmatpush2.msra.mxu0 %v3587
  %3725 = vmatprep.subr.mxu0 0.0
  %3726 = vmatpush2.msra.mxu0 %v3586
  %3727 = vmatprep.subr.mxu0 0.0
  %3728 = vmatpush2.msra.mxu0 %v3585
  %3729 = vmatprep.subr.mxu0 0.0
  %3730 = vmatpush2.msra.mxu0 %v3584
  %3731 = vmatprep.subr.mxu0 0.0
  %3732 = vmatpush2.msra.mxu0 %v3583
  %3733 = vmatprep.mubr.f32.mxu0 %v3534
  %3734 = vmatmul.mubr.f32.gmra.mxu0 %v3533
  %v3735 = vpop.f32.mrf.mxu0
  %v3736 = vadd.f32 %v3666, %v3735
  %v3737 = vpop.f32.mrf.mxu0
  %3738 = vdwg.mxu0
  %v3739 = vld [vmem:[%s9] sm:$0x1]
  %v3741 = vlaneseq
  %v3742 = vshrl.u32 %v3741, 7
  %v3743 = vsub.s32 0, %v3742
  %v3744 = vrot.slane %v3739, %v3743
  %v3746 = vmul.f32 %v3736, %v3744
  %3747 = vadd.xlane.f32.xlu0 %v3746
  %v3748 = vpop.xlane.xlu0 %3747
  %v3749 = vld [vmem:[#allocation6] sm:$0x1]
  %v3751 = vlaneseq
  %v3752 = vshrl.u32 %v3751, 7
  %v3753 = vsub.s32 0, %v3752
  %v3754 = vrot.slane %v3749, %v3753
  %v3756 = vadd.f32 %v3748, %v3754
  %vm3757 = vcmask 7168
  %3758 = vst.msk [vmem:[%s11] sm:$0xff] %vm3757, %v3756
  // Predicated region
  $region104: #{gcn_model_forward.3} parent=0 // pred_check
    _
  $region105: #{gcn_model_forward.3} parent=0 // pred_check_branch
    %3760 = sbr.rel (0) target = $region107
  $region106: #{gcn_model_forward.3} parent=0 // pred_region
    _
  $region107: #{gcn_model_forward.3} parent=0 // pred_fallthru
    _
  // Predicated region
  $region108: #{gcn_model_forward.3} parent=0 // pred_check
    _
  $region109: #{gcn_model_forward.3} parent=0 // pred_check_branch
    %3762 = sbr.rel (0) target = $region111
  $region110: #{gcn_model_forward.3} parent=0 // pred_region
    _
  $region111: #{gcn_model_forward.3} parent=0 // pred_fallthru
    _
  %3763 = vsyncmov [#allocation5]
  %s3764 = vpop.sfrf %3763
  %p3765 = scmp.eq.s32.totalorder %s3764, 0
  %p3766 = pneg %p3765
  %3768 = shalt.err (%p3766)
  %s3769 = scalar_lea.sflag [#allocation5], 1
  %3770 = vsyncmov %s3769
  %s3771 = vpop.sfrf %3770
  %p3772 = scmp.eq.s32.totalorder %s3771, 0
  %p3773 = pneg %p3772
  %3775 = shalt.err (%p3773)
  %s3776 = scalar_lea.sflag [#allocation5], 2
  %3777 = vsyncmov %s3776
  %s3778 = vpop.sfrf %3777
  %p3779 = scmp.eq.s32.totalorder %s3778, 0
  %p3780 = pneg %p3779
  %3782 = shalt.err (%p3780)
  %s3783 = scalar_lea.sflag [#allocation5], 3
  %3784 = vsyncmov %s3783
  %s3785 = vpop.sfrf %3784
  %p3786 = scmp.eq.s32.totalorder %s3785, 0
  %p3787 = pneg %p3786
  %3789 = shalt.err (%p3787)

</llo_original>
